<compile_context>
chip_gen: v7x
topology: tpu7x:2x2x1
jax: 0.10.0
libtpu: 0.0.40
codegen_flags: <defaults>
</compile_context>

<pallas_src>
import numpy as np

import jax
import jax.numpy as jnp
from jax.experimental import pallas as pl
from jax.experimental.pallas import tpu as pltpu


# ---------------------------------------------------------------------------
# Host-side (one-time) constant builders
# ---------------------------------------------------------------------------
def _kron_batch(batch, m):
    return np.kron(np.eye(batch, dtype=np.float32), m)


def _conv_constants(w, b, h_in, w_in, dil, pad, stride, batch):
    """Constants implementing Conv2d(w) applied with `stride` to the input
    after dilating it by `dil` (for ConvTranspose) and zero-padding by `pad`,
    acting on activations stored as (batch*H, C*W)."""
    w = np.asarray(w, np.float32)
    b = np.asarray(b, np.float32)
    oc, c_in, kh, kw = w.shape
    hp = (h_in - 1) * dil + 1 + 2 * pad
    wp = (w_in - 1) * dil + 1 + 2 * pad
    oh = (hp - kh) // stride + 1
    ow = (wp - kw) // stride + 1

    # Row selectors: R[ki, oh, hi] = 1 iff padded row (oh*stride + ki) maps to
    # source row hi of the (dilated) input.
    r = np.zeros((kh, oh, h_in), np.float32)
    for ki in range(kh):
        for o in range(oh):
            h = o * stride + ki - pad
            if h >= 0 and h % dil == 0 and h // dil < h_in:
                r[ki, o, h // dil] = 1.0
    r = np.stack([_kron_batch(batch, r[ki]) for ki in range(kh)])

    # Weight-scatter: B[ki, c*W_in + wi, oc*OW + ow] = w[oc, c, ki, kj]
    # with kj = wi*dil + pad - ow*stride (if it is a valid tap).
    bmat = np.zeros((kh, c_in * w_in, oc * ow), np.float32)
    for ki in range(kh):
        for wi in range(w_in):
            for o in range(ow):
                kj = wi * dil + pad - o * stride
                if 0 <= kj < kw:
                    for c in range(c_in):
                        bmat[ki, c * w_in + wi, o::ow] = w[:, c, ki, kj]

    bias_row = np.repeat(b, ow)[None, :]          # (1, OC*OW), oc-major
    return (r, bmat, bias_row), oh, ow, oc


def _pool_constants(c, h_in, w_in, k, stride, batch):
    """MaxPool2d(k, stride) as k row-selectors + k column-selectors."""
    oh = (h_in - k) // stride + 1
    ow = (w_in - k) // stride + 1
    pr = np.zeros((k, oh, h_in), np.float32)
    pc = np.zeros((k, c * w_in, c * ow), np.float32)
    for t in range(k):
        for o in range(oh):
            pr[t, o, o * stride + t] = 1.0
        for ch in range(c):
            for o in range(ow):
                pc[t, ch * w_in + o * stride + t, ch * ow + o] = 1.0
    pr = np.stack([_kron_batch(batch, pr[t]) for t in range(k)])
    return (pr, pc), oh, ow


def prepare_autoencoder(params, batch, h=28, w=28):
    """Precompute (once) every layer's selection / weight-scatter matrices."""
    def tconv_w(wt):  # ConvTranspose2d weight -> equivalent direct-conv weight
        wt = np.asarray(wt, np.float32)
        return wt[:, :, ::-1, ::-1].transpose(1, 0, 2, 3)

    consts = []
    # encoder: Conv(1->16,k3,s3,p1)+ReLU -> MaxPool(2,2) -> Conv(16->8,k3,s2,p1)+ReLU -> MaxPool(2,1)
    (r, bm, br), h, w, c = _conv_constants(params["enc1_w"], params["enc1_b"], h, w, 1, 1, 3, batch)
    consts += [r, bm, br]
    (pr, pc), h, w = _pool_constants(c, h, w, 2, 2, batch)
    consts += [pr, pc]
    (r, bm, br), h, w, c = _conv_constants(params["enc2_w"], params["enc2_b"], h, w, 1, 1, 2, batch)
    consts += [r, bm, br]
    (pr, pc), h, w = _pool_constants(c, h, w, 2, 1, batch)
    consts += [pr, pc]
    # decoder: ConvTranspose == stride-1 conv of the stride-dilated, (k-1-p)-padded input
    for wkey, bkey, st, p in (("dec1_w", "dec1_b", 2, 0),
                              ("dec2_w", "dec2_b", 3, 0),
                              ("dec3_w", "dec3_b", 2, 1)):
        weq = tconv_w(params[wkey])
        k = weq.shape[2]
        (r, bm, br), h, w, c = _conv_constants(weq, params[bkey], h, w, st, k - 1 - p, 1, batch)
        consts += [r, bm, br]

    consts = tuple(jnp.asarray(a) for a in consts)
    return consts, (c, h, w)


# ---------------------------------------------------------------------------
# The single fused Pallas kernel
# ---------------------------------------------------------------------------
def _fused_autoencoder_kernel(x_ref, *refs):
    o_ref = refs[-1]
    (r1, b1, c1, p1r, p1c,
     r2, b2, c2, p2r, p2c,
     r3, b3, c3,
     r4, b4, c4,
     r5, b5, c5) = refs[:-1]

    def conv(y, r_ref, b_ref, bias_ref, act):
        acc = bias_ref[...]                               # (1, OC*OW) broadcasts
        for ki in range(r_ref.shape[0]):                  # fully unrolled (2..5 taps)
            rows = jnp.dot(r_ref[ki], y, preferred_element_type=jnp.float32)
            acc = acc + jnp.dot(rows, b_ref[ki], preferred_element_type=jnp.float32)
        return jnp.tanh(acc) if act == "tanh" else jnp.maximum(acc, 0.0)

    def pool(y, pr_ref, pc_ref):
        v = jnp.maximum(jnp.dot(pr_ref[0], y, preferred_element_type=jnp.float32),
                        jnp.dot(pr_ref[1], y, preferred_element_type=jnp.float32))
        return jnp.maximum(jnp.dot(v, pc_ref[0], preferred_element_type=jnp.float32),
                           jnp.dot(v, pc_ref[1], preferred_element_type=jnp.float32))

    y = x_ref[...]                     # (batch*28, 28)       (C_in == 1)
    y = conv(y, r1, b1, c1, "relu")    # (batch*10, 16*10)
    y = pool(y, p1r, p1c)              # (batch*5,  16*5)
    y = conv(y, r2, b2, c2, "relu")    # (batch*3,  8*3)
    y = pool(y, p2r, p2c)              # (batch*2,  8*2)
    y = conv(y, r3, b3, c3, "relu")    # (batch*5,  16*5)
    y = conv(y, r4, b4, c4, "relu")    # (batch*17, 8*17)
    y = conv(y, r5, b5, c5, "tanh")    # (batch*32, 1*32)

    o_ref[...] = y                     # single contiguous store of the result slab


@jax.jit
def autoencoder_forward(consts, x):
    n, _, h, w = x.shape                    # NCHW, C == 1
    out_rows = consts[-3].shape[1]          # last layer's R selector: (KH, batch*OH, batch*Hin)
    out_w = consts[-1].shape[1]             # last layer's bias row:   (1, OC*OW), OC == 1
    out_h = out_rows // n
    x2d = x.reshape(n * h, w)               # (batch*H, C*W) layout (free reshape)
    y2d = pl.pallas_call(
        _fused_autoencoder_kernel,
        out_shape=jax.ShapeDtypeStruct((out_rows, out_w), jnp.float32),
        in_specs=[pl.BlockSpec(memory_space=pltpu.MemorySpace.VMEM)] * (1 + len(consts)),
        out_specs=pl.BlockSpec(memory_space=pltpu.MemorySpace.VMEM),
    )(x2d, *consts)
    return y2d.reshape(n, out_h, out_w)[:, None]   # -> (N, 1, OH, OW)


# ---------------------------------------------------------------------------
# Parameters + pure-XLA reference (for correctness check only)
# ---------------------------------------------------------------------------
def init_params(key):
    ks = jax.random.split(key, 10)

    def w(k, shape):
        return jax.random.normal(k, shape, jnp.float32) * 0.1

    return {
        # encoder (Conv2d weights: (OC, IC, KH, KW))
        "enc1_w": w(ks[0], (16, 1, 3, 3)),  "enc1_b": w(ks[1], (16,)),
        "enc2_w": w(ks[2], (8, 16, 3, 3)),  "enc2_b": w(ks[3], (8,)),
        # decoder (ConvTranspose2d weights: (IC, OC, KH, KW))
        "dec1_w": w(ks[4], (8, 16, 3, 3)),  "dec1_b": w(ks[5], (16,)),
        "dec2_w": w(ks[6], (16, 8, 5, 5)),  "dec2_b": w(ks[7], (8,)),
        "dec3_w": w(ks[8], (8, 1, 2, 2)),   "dec3_b": w(ks[9], (1,)),
    }


def _conv2d_ref(x, w, b, stride, pad):
    y = jax.lax.conv_general_dilated(x, w, (stride, stride),
                                     [(pad, pad), (pad, pad)],
                                     dimension_numbers=("NCHW", "OIHW", "NCHW"))
    return y + b[None, :, None, None]


def _convT2d_ref(x, w, b, stride, pad):
    w_eq = jnp.flip(w, (2, 3)).transpose(1, 0, 2, 3)
    k = w.shape[2]
    y = jax.lax.conv_general_dilated(x, w_eq, (1, 1),
                                     [(k - 1 - pad, k - 1 - pad)] * 2,
                                     lhs_dilation=(stride, stride),
                                     dimension_numbers=("NCHW", "OIHW", "NCHW"))
    return y + b[None, :, None, None]


def _maxpool_ref(x, k, stride):
    return jax.lax.reduce_window(x, -jnp.inf, jax.lax.max,
                                 (1, 1, k, k), (1, 1, stride, stride), "VALID")


def reference_forward(p, x):
    x = jax.nn.relu(_conv2d_ref(x, p["enc1_w"], p["enc1_b"], 3, 1))
    x = _maxpool_ref(x, 2, 2)
    x = jax.nn.relu(_conv2d_ref(x, p["enc2_w"], p["enc2_b"], 2, 1))
    x = _maxpool_ref(x, 2, 1)
    x = jax.nn.relu(_convT2d_ref(x, p["dec1_w"], p["dec1_b"], 2, 0))
    x = jax.nn.relu(_convT2d_ref(x, p["dec2_w"], p["dec2_b"], 3, 0))
    x = jnp.tanh(_convT2d_ref(x, p["dec3_w"], p["dec3_b"], 2, 1))
    return x


# ---------------------------------------------------------------------------
if __name__ == "__main__":
    key = jax.random.PRNGKey(0)
    pkey, xkey = jax.random.split(key)
    params = init_params(pkey)
    # MNIST-like input: batch=2, 1 channel, 28x28 (NCHW)
    x = jax.random.normal(xkey, (2, 1, 28, 28), jnp.float32)

    consts, (out_c, out_h, out_w) = prepare_autoencoder(params, batch=2, h=28, w=28)
    y = jax.block_until_ready(autoencoder_forward(consts, x))

    assert y.shape == (2, out_c, out_h, out_w) == (2, 1, 32, 32), y.shape
    assert bool(jnp.all(jnp.isfinite(y))) and bool(jnp.all(jnp.abs(y) <= 1.0 + 1e-6))

    # Numerical check against a plain-XLA implementation of the same module
    # (loose tolerance: MXU fp32 matmul rounding differs between paths).
    y_ref = reference_forward(params, x)
    np.testing.assert_allclose(np.asarray(y), np.asarray(y_ref), atol=5e-2, rtol=5e-2)

    print("KERNEL_OK")
</pallas_src>

<mosaic_0001>
module attributes {stable_mosaic.version = 11 : i64} {
  func.func @_fused_autoencoder_kernel(%arg0: memref<56x28xf32, #tpu.memory_space<vmem>>, %arg1: memref<3x20x56xf32, #tpu.memory_space<vmem>>, %arg2: memref<3x28x160xf32, #tpu.memory_space<vmem>>, %arg3: memref<1x160xf32, #tpu.memory_space<vmem>>, %arg4: memref<2x10x20xf32, #tpu.memory_space<vmem>>, %arg5: memref<2x160x80xf32, #tpu.memory_space<vmem>>, %arg6: memref<3x6x10xf32, #tpu.memory_space<vmem>>, %arg7: memref<3x80x24xf32, #tpu.memory_space<vmem>>, %arg8: memref<1x24xf32, #tpu.memory_space<vmem>>, %arg9: memref<2x4x6xf32, #tpu.memory_space<vmem>>, %arg10: memref<2x24x16xf32, #tpu.memory_space<vmem>>, %arg11: memref<3x10x4xf32, #tpu.memory_space<vmem>>, %arg12: memref<3x16x80xf32, #tpu.memory_space<vmem>>, %arg13: memref<1x80xf32, #tpu.memory_space<vmem>>, %arg14: memref<5x34x10xf32, #tpu.memory_space<vmem>>, %arg15: memref<5x80x136xf32, #tpu.memory_space<vmem>>, %arg16: memref<1x136xf32, #tpu.memory_space<vmem>>, %arg17: memref<2x64x34xf32, #tpu.memory_space<vmem>>, %arg18: memref<2x136x32xf32, #tpu.memory_space<vmem>>, %arg19: memref<1x32xf32, #tpu.memory_space<vmem>>, %arg20: memref<64x32xf32, #tpu.memory_space<vmem>>) attributes {dimension_semantics = [], scalar_prefetch = 0 : i64, scratch_operands = 0 : i64, tpu.core_type = #tpu.core_type<tc>} {
    %c0 = arith.constant 0 : index
    %c0_0 = arith.constant 0 : index
    %0 = vector.load %arg0[%c0, %c0_0] : memref<56x28xf32, #tpu.memory_space<vmem>>, vector<56x28xf32>
    %c0_1 = arith.constant 0 : index
    %c0_2 = arith.constant 0 : index
    %1 = vector.load %arg3[%c0_1, %c0_2] : memref<1x160xf32, #tpu.memory_space<vmem>>, vector<1x160xf32>
    %c0_3 = arith.constant 0 : index
    %c0_4 = arith.constant 0 : index
    %c0_5 = arith.constant 0 : index
    %2 = vector.load %arg1[%c0_3, %c0_4, %c0_5] : memref<3x20x56xf32, #tpu.memory_space<vmem>>, vector<1x20x56xf32>
    %3 = vector.shape_cast %2 : vector<1x20x56xf32> to vector<20x56xf32>
    %cst = arith.constant dense<0.000000e+00> : vector<20x28xf32>
    %4 = tpu.matmul %3, %0, %cst {dimension_numbers = #tpu.dot_dimension_numbers<[1], [0], [0], [1], [0, 0, 1, 1], [], []>} : vector<20x56xf32>, vector<56x28xf32>, vector<20x28xf32> -> vector<20x28xf32>
    %c0_6 = arith.constant 0 : index
    %c0_7 = arith.constant 0 : index
    %c0_8 = arith.constant 0 : index
    %5 = vector.load %arg2[%c0_6, %c0_7, %c0_8] : memref<3x28x160xf32, #tpu.memory_space<vmem>>, vector<1x28x160xf32>
    %6 = vector.shape_cast %5 : vector<1x28x160xf32> to vector<28x160xf32>
    %cst_9 = arith.constant dense<0.000000e+00> : vector<20x160xf32>
    %7 = tpu.matmul %4, %6, %cst_9 {dimension_numbers = #tpu.dot_dimension_numbers<[1], [0], [0], [1], [0, 0, 1, 1], [], []>} : vector<20x28xf32>, vector<28x160xf32>, vector<20x160xf32> -> vector<20x160xf32>
    %8 = vector.broadcast %1 : vector<1x160xf32> to vector<20x160xf32>
    %9 = arith.addf %8, %7 : vector<20x160xf32>
    %c1 = arith.constant 1 : index
    %c0_10 = arith.constant 0 : index
    %c0_11 = arith.constant 0 : index
    %10 = vector.load %arg1[%c1, %c0_10, %c0_11] : memref<3x20x56xf32, #tpu.memory_space<vmem>>, vector<1x20x56xf32>
    %11 = vector.shape_cast %10 : vector<1x20x56xf32> to vector<20x56xf32>
    %cst_12 = arith.constant dense<0.000000e+00> : vector<20x28xf32>
    %12 = tpu.matmul %11, %0, %cst_12 {dimension_numbers = #tpu.dot_dimension_numbers<[1], [0], [0], [1], [0, 0, 1, 1], [], []>} : vector<20x56xf32>, vector<56x28xf32>, vector<20x28xf32> -> vector<20x28xf32>
    %c1_13 = arith.constant 1 : index
    %c0_14 = arith.constant 0 : index
    %c0_15 = arith.constant 0 : index
    %13 = vector.load %arg2[%c1_13, %c0_14, %c0_15] : memref<3x28x160xf32, #tpu.memory_space<vmem>>, vector<1x28x160xf32>
    %14 = vector.shape_cast %13 : vector<1x28x160xf32> to vector<28x160xf32>
    %cst_16 = arith.constant dense<0.000000e+00> : vector<20x160xf32>
    %15 = tpu.matmul %12, %14, %cst_16 {dimension_numbers = #tpu.dot_dimension_numbers<[1], [0], [0], [1], [0, 0, 1, 1], [], []>} : vector<20x28xf32>, vector<28x160xf32>, vector<20x160xf32> -> vector<20x160xf32>
    %16 = arith.addf %9, %15 : vector<20x160xf32>
    %c2 = arith.constant 2 : index
    %c0_17 = arith.constant 0 : index
    %c0_18 = arith.constant 0 : index
    %17 = vector.load %arg1[%c2, %c0_17, %c0_18] : memref<3x20x56xf32, #tpu.memory_space<vmem>>, vector<1x20x56xf32>
    %18 = vector.shape_cast %17 : vector<1x20x56xf32> to vector<20x56xf32>
    %cst_19 = arith.constant dense<0.000000e+00> : vector<20x28xf32>
    %19 = tpu.matmul %18, %0, %cst_19 {dimension_numbers = #tpu.dot_dimension_numbers<[1], [0], [0], [1], [0, 0, 1, 1], [], []>} : vector<20x56xf32>, vector<56x28xf32>, vector<20x28xf32> -> vector<20x28xf32>
    %c2_20 = arith.constant 2 : index
    %c0_21 = arith.constant 0 : index
    %c0_22 = arith.constant 0 : index
    %20 = vector.load %arg2[%c2_20, %c0_21, %c0_22] : memref<3x28x160xf32, #tpu.memory_space<vmem>>, vector<1x28x160xf32>
    %21 = vector.shape_cast %20 : vector<1x28x160xf32> to vector<28x160xf32>
    %cst_23 = arith.constant dense<0.000000e+00> : vector<20x160xf32>
    %22 = tpu.matmul %19, %21, %cst_23 {dimension_numbers = #tpu.dot_dimension_numbers<[1], [0], [0], [1], [0, 0, 1, 1], [], []>} : vector<20x28xf32>, vector<28x160xf32>, vector<20x160xf32> -> vector<20x160xf32>
    %23 = arith.addf %16, %22 : vector<20x160xf32>
    %cst_24 = arith.constant 0.000000e+00 : f32
    %24 = vector.broadcast %cst_24 : f32 to vector<20x160xf32>
    %25 = arith.maximumf %23, %24 : vector<20x160xf32>
    %c0_25 = arith.constant 0 : index
    %c0_26 = arith.constant 0 : index
    %c0_27 = arith.constant 0 : index
    %26 = vector.load %arg4[%c0_25, %c0_26, %c0_27] : memref<2x10x20xf32, #tpu.memory_space<vmem>>, vector<1x10x20xf32>
    %27 = vector.shape_cast %26 : vector<1x10x20xf32> to vector<10x20xf32>
    %cst_28 = arith.constant dense<0.000000e+00> : vector<10x160xf32>
    %28 = tpu.matmul %27, %25, %cst_28 {dimension_numbers = #tpu.dot_dimension_numbers<[1], [0], [0], [1], [0, 0, 1, 1], [], []>} : vector<10x20xf32>, vector<20x160xf32>, vector<10x160xf32> -> vector<10x160xf32>
    %c1_29 = arith.constant 1 : index
    %c0_30 = arith.constant 0 : index
    %c0_31 = arith.constant 0 : index
    %29 = vector.load %arg4[%c1_29, %c0_30, %c0_31] : memref<2x10x20xf32, #tpu.memory_space<vmem>>, vector<1x10x20xf32>
    %30 = vector.shape_cast %29 : vector<1x10x20xf32> to vector<10x20xf32>
    %cst_32 = arith.constant dense<0.000000e+00> : vector<10x160xf32>
    %31 = tpu.matmul %30, %25, %cst_32 {dimension_numbers = #tpu.dot_dimension_numbers<[1], [0], [0], [1], [0, 0, 1, 1], [], []>} : vector<10x20xf32>, vector<20x160xf32>, vector<10x160xf32> -> vector<10x160xf32>
    %32 = arith.maximumf %28, %31 : vector<10x160xf32>
    %c0_33 = arith.constant 0 : index
    %c0_34 = arith.constant 0 : index
    %c0_35 = arith.constant 0 : index
    %33 = vector.load %arg5[%c0_33, %c0_34, %c0_35] : memref<2x160x80xf32, #tpu.memory_space<vmem>>, vector<1x160x80xf32>
    %34 = vector.shape_cast %33 : vector<1x160x80xf32> to vector<160x80xf32>
    %cst_36 = arith.constant dense<0.000000e+00> : vector<10x80xf32>
    %35 = tpu.matmul %32, %34, %cst_36 {dimension_numbers = #tpu.dot_dimension_numbers<[1], [0], [0], [1], [0, 0, 1, 1], [], []>} : vector<10x160xf32>, vector<160x80xf32>, vector<10x80xf32> -> vector<10x80xf32>
    %c1_37 = arith.constant 1 : index
    %c0_38 = arith.constant 0 : index
    %c0_39 = arith.constant 0 : index
    %36 = vector.load %arg5[%c1_37, %c0_38, %c0_39] : memref<2x160x80xf32, #tpu.memory_space<vmem>>, vector<1x160x80xf32>
    %37 = vector.shape_cast %36 : vector<1x160x80xf32> to vector<160x80xf32>
    %cst_40 = arith.constant dense<0.000000e+00> : vector<10x80xf32>
    %38 = tpu.matmul %32, %37, %cst_40 {dimension_numbers = #tpu.dot_dimension_numbers<[1], [0], [0], [1], [0, 0, 1, 1], [], []>} : vector<10x160xf32>, vector<160x80xf32>, vector<10x80xf32> -> vector<10x80xf32>
    %39 = arith.maximumf %35, %38 : vector<10x80xf32>
    %c0_41 = arith.constant 0 : index
    %c0_42 = arith.constant 0 : index
    %40 = vector.load %arg8[%c0_41, %c0_42] : memref<1x24xf32, #tpu.memory_space<vmem>>, vector<1x24xf32>
    %c0_43 = arith.constant 0 : index
    %c0_44 = arith.constant 0 : index
    %c0_45 = arith.constant 0 : index
    %41 = vector.load %arg6[%c0_43, %c0_44, %c0_45] : memref<3x6x10xf32, #tpu.memory_space<vmem>>, vector<1x6x10xf32>
    %42 = vector.shape_cast %41 : vector<1x6x10xf32> to vector<6x10xf32>
    %cst_46 = arith.constant dense<0.000000e+00> : vector<6x80xf32>
    %43 = tpu.matmul %42, %39, %cst_46 {dimension_numbers = #tpu.dot_dimension_numbers<[1], [0], [0], [1], [0, 0, 1, 1], [], []>} : vector<6x10xf32>, vector<10x80xf32>, vector<6x80xf32> -> vector<6x80xf32>
    %c0_47 = arith.constant 0 : index
    %c0_48 = arith.constant 0 : index
    %c0_49 = arith.constant 0 : index
    %44 = vector.load %arg7[%c0_47, %c0_48, %c0_49] : memref<3x80x24xf32, #tpu.memory_space<vmem>>, vector<1x80x24xf32>
    %45 = vector.shape_cast %44 : vector<1x80x24xf32> to vector<80x24xf32>
    %cst_50 = arith.constant dense<0.000000e+00> : vector<6x24xf32>
    %46 = tpu.matmul %43, %45, %cst_50 {dimension_numbers = #tpu.dot_dimension_numbers<[1], [0], [0], [1], [0, 0, 1, 1], [], []>} : vector<6x80xf32>, vector<80x24xf32>, vector<6x24xf32> -> vector<6x24xf32>
    %47 = vector.broadcast %40 : vector<1x24xf32> to vector<6x24xf32>
    %48 = arith.addf %47, %46 : vector<6x24xf32>
    %c1_51 = arith.constant 1 : index
    %c0_52 = arith.constant 0 : index
    %c0_53 = arith.constant 0 : index
    %49 = vector.load %arg6[%c1_51, %c0_52, %c0_53] : memref<3x6x10xf32, #tpu.memory_space<vmem>>, vector<1x6x10xf32>
    %50 = vector.shape_cast %49 : vector<1x6x10xf32> to vector<6x10xf32>
    %cst_54 = arith.constant dense<0.000000e+00> : vector<6x80xf32>
    %51 = tpu.matmul %50, %39, %cst_54 {dimension_numbers = #tpu.dot_dimension_numbers<[1], [0], [0], [1], [0, 0, 1, 1], [], []>} : vector<6x10xf32>, vector<10x80xf32>, vector<6x80xf32> -> vector<6x80xf32>
    %c1_55 = arith.constant 1 : index
    %c0_56 = arith.constant 0 : index
    %c0_57 = arith.constant 0 : index
    %52 = vector.load %arg7[%c1_55, %c0_56, %c0_57] : memref<3x80x24xf32, #tpu.memory_space<vmem>>, vector<1x80x24xf32>
    %53 = vector.shape_cast %52 : vector<1x80x24xf32> to vector<80x24xf32>
    %cst_58 = arith.constant dense<0.000000e+00> : vector<6x24xf32>
    %54 = tpu.matmul %51, %53, %cst_58 {dimension_numbers = #tpu.dot_dimension_numbers<[1], [0], [0], [1], [0, 0, 1, 1], [], []>} : vector<6x80xf32>, vector<80x24xf32>, vector<6x24xf32> -> vector<6x24xf32>
    %55 = arith.addf %48, %54 : vector<6x24xf32>
    %c2_59 = arith.constant 2 : index
    %c0_60 = arith.constant 0 : index
    %c0_61 = arith.constant 0 : index
    %56 = vector.load %arg6[%c2_59, %c0_60, %c0_61] : memref<3x6x10xf32, #tpu.memory_space<vmem>>, vector<1x6x10xf32>
    %57 = vector.shape_cast %56 : vector<1x6x10xf32> to vector<6x10xf32>
    %cst_62 = arith.constant dense<0.000000e+00> : vector<6x80xf32>
    %58 = tpu.matmul %57, %39, %cst_62 {dimension_numbers = #tpu.dot_dimension_numbers<[1], [0], [0], [1], [0, 0, 1, 1], [], []>} : vector<6x10xf32>, vector<10x80xf32>, vector<6x80xf32> -> vector<6x80xf32>
    %c2_63 = arith.constant 2 : index
    %c0_64 = arith.constant 0 : index
    %c0_65 = arith.constant 0 : index
    %59 = vector.load %arg7[%c2_63, %c0_64, %c0_65] : memref<3x80x24xf32, #tpu.memory_space<vmem>>, vector<1x80x24xf32>
    %60 = vector.shape_cast %59 : vector<1x80x24xf32> to vector<80x24xf32>
    %cst_66 = arith.constant dense<0.000000e+00> : vector<6x24xf32>
    %61 = tpu.matmul %58, %60, %cst_66 {dimension_numbers = #tpu.dot_dimension_numbers<[1], [0], [0], [1], [0, 0, 1, 1], [], []>} : vector<6x80xf32>, vector<80x24xf32>, vector<6x24xf32> -> vector<6x24xf32>
    %62 = arith.addf %55, %61 : vector<6x24xf32>
    %cst_67 = arith.constant 0.000000e+00 : f32
    %63 = vector.broadcast %cst_67 : f32 to vector<6x24xf32>
    %64 = arith.maximumf %62, %63 : vector<6x24xf32>
    %c0_68 = arith.constant 0 : index
    %c0_69 = arith.constant 0 : index
    %c0_70 = arith.constant 0 : index
    %65 = vector.load %arg9[%c0_68, %c0_69, %c0_70] : memref<2x4x6xf32, #tpu.memory_space<vmem>>, vector<1x4x6xf32>
    %66 = vector.shape_cast %65 : vector<1x4x6xf32> to vector<4x6xf32>
    %cst_71 = arith.constant dense<0.000000e+00> : vector<4x24xf32>
    %67 = tpu.matmul %66, %64, %cst_71 {dimension_numbers = #tpu.dot_dimension_numbers<[1], [0], [0], [1], [0, 0, 1, 1], [], []>} : vector<4x6xf32>, vector<6x24xf32>, vector<4x24xf32> -> vector<4x24xf32>
    %c1_72 = arith.constant 1 : index
    %c0_73 = arith.constant 0 : index
    %c0_74 = arith.constant 0 : index
    %68 = vector.load %arg9[%c1_72, %c0_73, %c0_74] : memref<2x4x6xf32, #tpu.memory_space<vmem>>, vector<1x4x6xf32>
    %69 = vector.shape_cast %68 : vector<1x4x6xf32> to vector<4x6xf32>
    %cst_75 = arith.constant dense<0.000000e+00> : vector<4x24xf32>
    %70 = tpu.matmul %69, %64, %cst_75 {dimension_numbers = #tpu.dot_dimension_numbers<[1], [0], [0], [1], [0, 0, 1, 1], [], []>} : vector<4x6xf32>, vector<6x24xf32>, vector<4x24xf32> -> vector<4x24xf32>
    %71 = arith.maximumf %67, %70 : vector<4x24xf32>
    %c0_76 = arith.constant 0 : index
    %c0_77 = arith.constant 0 : index
    %c0_78 = arith.constant 0 : index
    %72 = vector.load %arg10[%c0_76, %c0_77, %c0_78] : memref<2x24x16xf32, #tpu.memory_space<vmem>>, vector<1x24x16xf32>
    %73 = vector.shape_cast %72 : vector<1x24x16xf32> to vector<24x16xf32>
    %cst_79 = arith.constant dense<0.000000e+00> : vector<4x16xf32>
    %74 = tpu.matmul %71, %73, %cst_79 {dimension_numbers = #tpu.dot_dimension_numbers<[1], [0], [0], [1], [0, 0, 1, 1], [], []>} : vector<4x24xf32>, vector<24x16xf32>, vector<4x16xf32> -> vector<4x16xf32>
    %c1_80 = arith.constant 1 : index
    %c0_81 = arith.constant 0 : index
    %c0_82 = arith.constant 0 : index
    %75 = vector.load %arg10[%c1_80, %c0_81, %c0_82] : memref<2x24x16xf32, #tpu.memory_space<vmem>>, vector<1x24x16xf32>
    %76 = vector.shape_cast %75 : vector<1x24x16xf32> to vector<24x16xf32>
    %cst_83 = arith.constant dense<0.000000e+00> : vector<4x16xf32>
    %77 = tpu.matmul %71, %76, %cst_83 {dimension_numbers = #tpu.dot_dimension_numbers<[1], [0], [0], [1], [0, 0, 1, 1], [], []>} : vector<4x24xf32>, vector<24x16xf32>, vector<4x16xf32> -> vector<4x16xf32>
    %78 = arith.maximumf %74, %77 : vector<4x16xf32>
    %c0_84 = arith.constant 0 : index
    %c0_85 = arith.constant 0 : index
    %79 = vector.load %arg13[%c0_84, %c0_85] : memref<1x80xf32, #tpu.memory_space<vmem>>, vector<1x80xf32>
    %c0_86 = arith.constant 0 : index
    %c0_87 = arith.constant 0 : index
    %c0_88 = arith.constant 0 : index
    %80 = vector.load %arg11[%c0_86, %c0_87, %c0_88] : memref<3x10x4xf32, #tpu.memory_space<vmem>>, vector<1x10x4xf32>
    %81 = vector.shape_cast %80 : vector<1x10x4xf32> to vector<10x4xf32>
    %cst_89 = arith.constant dense<0.000000e+00> : vector<10x16xf32>
    %82 = tpu.matmul %81, %78, %cst_89 {dimension_numbers = #tpu.dot_dimension_numbers<[1], [0], [0], [1], [0, 0, 1, 1], [], []>} : vector<10x4xf32>, vector<4x16xf32>, vector<10x16xf32> -> vector<10x16xf32>
    %c0_90 = arith.constant 0 : index
    %c0_91 = arith.constant 0 : index
    %c0_92 = arith.constant 0 : index
    %83 = vector.load %arg12[%c0_90, %c0_91, %c0_92] : memref<3x16x80xf32, #tpu.memory_space<vmem>>, vector<1x16x80xf32>
    %84 = vector.shape_cast %83 : vector<1x16x80xf32> to vector<16x80xf32>
    %cst_93 = arith.constant dense<0.000000e+00> : vector<10x80xf32>
    %85 = tpu.matmul %82, %84, %cst_93 {dimension_numbers = #tpu.dot_dimension_numbers<[1], [0], [0], [1], [0, 0, 1, 1], [], []>} : vector<10x16xf32>, vector<16x80xf32>, vector<10x80xf32> -> vector<10x80xf32>
    %86 = vector.broadcast %79 : vector<1x80xf32> to vector<10x80xf32>
    %87 = arith.addf %86, %85 : vector<10x80xf32>
    %c1_94 = arith.constant 1 : index
    %c0_95 = arith.constant 0 : index
    %c0_96 = arith.constant 0 : index
    %88 = vector.load %arg11[%c1_94, %c0_95, %c0_96] : memref<3x10x4xf32, #tpu.memory_space<vmem>>, vector<1x10x4xf32>
    %89 = vector.shape_cast %88 : vector<1x10x4xf32> to vector<10x4xf32>
    %cst_97 = arith.constant dense<0.000000e+00> : vector<10x16xf32>
    %90 = tpu.matmul %89, %78, %cst_97 {dimension_numbers = #tpu.dot_dimension_numbers<[1], [0], [0], [1], [0, 0, 1, 1], [], []>} : vector<10x4xf32>, vector<4x16xf32>, vector<10x16xf32> -> vector<10x16xf32>
    %c1_98 = arith.constant 1 : index
    %c0_99 = arith.constant 0 : index
    %c0_100 = arith.constant 0 : index
    %91 = vector.load %arg12[%c1_98, %c0_99, %c0_100] : memref<3x16x80xf32, #tpu.memory_space<vmem>>, vector<1x16x80xf32>
    %92 = vector.shape_cast %91 : vector<1x16x80xf32> to vector<16x80xf32>
    %cst_101 = arith.constant dense<0.000000e+00> : vector<10x80xf32>
    %93 = tpu.matmul %90, %92, %cst_101 {dimension_numbers = #tpu.dot_dimension_numbers<[1], [0], [0], [1], [0, 0, 1, 1], [], []>} : vector<10x16xf32>, vector<16x80xf32>, vector<10x80xf32> -> vector<10x80xf32>
    %94 = arith.addf %87, %93 : vector<10x80xf32>
    %c2_102 = arith.constant 2 : index
    %c0_103 = arith.constant 0 : index
    %c0_104 = arith.constant 0 : index
    %95 = vector.load %arg11[%c2_102, %c0_103, %c0_104] : memref<3x10x4xf32, #tpu.memory_space<vmem>>, vector<1x10x4xf32>
    %96 = vector.shape_cast %95 : vector<1x10x4xf32> to vector<10x4xf32>
    %cst_105 = arith.constant dense<0.000000e+00> : vector<10x16xf32>
    %97 = tpu.matmul %96, %78, %cst_105 {dimension_numbers = #tpu.dot_dimension_numbers<[1], [0], [0], [1], [0, 0, 1, 1], [], []>} : vector<10x4xf32>, vector<4x16xf32>, vector<10x16xf32> -> vector<10x16xf32>
    %c2_106 = arith.constant 2 : index
    %c0_107 = arith.constant 0 : index
    %c0_108 = arith.constant 0 : index
    %98 = vector.load %arg12[%c2_106, %c0_107, %c0_108] : memref<3x16x80xf32, #tpu.memory_space<vmem>>, vector<1x16x80xf32>
    %99 = vector.shape_cast %98 : vector<1x16x80xf32> to vector<16x80xf32>
    %cst_109 = arith.constant dense<0.000000e+00> : vector<10x80xf32>
    %100 = tpu.matmul %97, %99, %cst_109 {dimension_numbers = #tpu.dot_dimension_numbers<[1], [0], [0], [1], [0, 0, 1, 1], [], []>} : vector<10x16xf32>, vector<16x80xf32>, vector<10x80xf32> -> vector<10x80xf32>
    %101 = arith.addf %94, %100 : vector<10x80xf32>
    %cst_110 = arith.constant 0.000000e+00 : f32
    %102 = vector.broadcast %cst_110 : f32 to vector<10x80xf32>
    %103 = arith.maximumf %101, %102 : vector<10x80xf32>
    %c0_111 = arith.constant 0 : index
    %c0_112 = arith.constant 0 : index
    %104 = vector.load %arg16[%c0_111, %c0_112] : memref<1x136xf32, #tpu.memory_space<vmem>>, vector<1x136xf32>
    %c0_113 = arith.constant 0 : index
    %c0_114 = arith.constant 0 : index
    %c0_115 = arith.constant 0 : index
    %105 = vector.load %arg14[%c0_113, %c0_114, %c0_115] : memref<5x34x10xf32, #tpu.memory_space<vmem>>, vector<1x34x10xf32>
    %106 = vector.shape_cast %105 : vector<1x34x10xf32> to vector<34x10xf32>
    %cst_116 = arith.constant dense<0.000000e+00> : vector<34x80xf32>
    %107 = tpu.matmul %106, %103, %cst_116 {dimension_numbers = #tpu.dot_dimension_numbers<[1], [0], [0], [1], [0, 0, 1, 1], [], []>} : vector<34x10xf32>, vector<10x80xf32>, vector<34x80xf32> -> vector<34x80xf32>
    %c0_117 = arith.constant 0 : index
    %c0_118 = arith.constant 0 : index
    %c0_119 = arith.constant 0 : index
    %108 = vector.load %arg15[%c0_117, %c0_118, %c0_119] : memref<5x80x136xf32, #tpu.memory_space<vmem>>, vector<1x80x136xf32>
    %109 = vector.shape_cast %108 : vector<1x80x136xf32> to vector<80x136xf32>
    %cst_120 = arith.constant dense<0.000000e+00> : vector<34x136xf32>
    %110 = tpu.matmul %107, %109, %cst_120 {dimension_numbers = #tpu.dot_dimension_numbers<[1], [0], [0], [1], [0, 0, 1, 1], [], []>} : vector<34x80xf32>, vector<80x136xf32>, vector<34x136xf32> -> vector<34x136xf32>
    %111 = vector.broadcast %104 : vector<1x136xf32> to vector<34x136xf32>
    %112 = arith.addf %111, %110 : vector<34x136xf32>
    %c1_121 = arith.constant 1 : index
    %c0_122 = arith.constant 0 : index
    %c0_123 = arith.constant 0 : index
    %113 = vector.load %arg14[%c1_121, %c0_122, %c0_123] : memref<5x34x10xf32, #tpu.memory_space<vmem>>, vector<1x34x10xf32>
    %114 = vector.shape_cast %113 : vector<1x34x10xf32> to vector<34x10xf32>
    %cst_124 = arith.constant dense<0.000000e+00> : vector<34x80xf32>
    %115 = tpu.matmul %114, %103, %cst_124 {dimension_numbers = #tpu.dot_dimension_numbers<[1], [0], [0], [1], [0, 0, 1, 1], [], []>} : vector<34x10xf32>, vector<10x80xf32>, vector<34x80xf32> -> vector<34x80xf32>
    %c1_125 = arith.constant 1 : index
    %c0_126 = arith.constant 0 : index
    %c0_127 = arith.constant 0 : index
    %116 = vector.load %arg15[%c1_125, %c0_126, %c0_127] : memref<5x80x136xf32, #tpu.memory_space<vmem>>, vector<1x80x136xf32>
    %117 = vector.shape_cast %116 : vector<1x80x136xf32> to vector<80x136xf32>
    %cst_128 = arith.constant dense<0.000000e+00> : vector<34x136xf32>
    %118 = tpu.matmul %115, %117, %cst_128 {dimension_numbers = #tpu.dot_dimension_numbers<[1], [0], [0], [1], [0, 0, 1, 1], [], []>} : vector<34x80xf32>, vector<80x136xf32>, vector<34x136xf32> -> vector<34x136xf32>
    %119 = arith.addf %112, %118 : vector<34x136xf32>
    %c2_129 = arith.constant 2 : index
    %c0_130 = arith.constant 0 : index
    %c0_131 = arith.constant 0 : index
    %120 = vector.load %arg14[%c2_129, %c0_130, %c0_131] : memref<5x34x10xf32, #tpu.memory_space<vmem>>, vector<1x34x10xf32>
    %121 = vector.shape_cast %120 : vector<1x34x10xf32> to vector<34x10xf32>
    %cst_132 = arith.constant dense<0.000000e+00> : vector<34x80xf32>
    %122 = tpu.matmul %121, %103, %cst_132 {dimension_numbers = #tpu.dot_dimension_numbers<[1], [0], [0], [1], [0, 0, 1, 1], [], []>} : vector<34x10xf32>, vector<10x80xf32>, vector<34x80xf32> -> vector<34x80xf32>
    %c2_133 = arith.constant 2 : index
    %c0_134 = arith.constant 0 : index
    %c0_135 = arith.constant 0 : index
    %123 = vector.load %arg15[%c2_133, %c0_134, %c0_135] : memref<5x80x136xf32, #tpu.memory_space<vmem>>, vector<1x80x136xf32>
    %124 = vector.shape_cast %123 : vector<1x80x136xf32> to vector<80x136xf32>
    %cst_136 = arith.constant dense<0.000000e+00> : vector<34x136xf32>
    %125 = tpu.matmul %122, %124, %cst_136 {dimension_numbers = #tpu.dot_dimension_numbers<[1], [0], [0], [1], [0, 0, 1, 1], [], []>} : vector<34x80xf32>, vector<80x136xf32>, vector<34x136xf32> -> vector<34x136xf32>
    %126 = arith.addf %119, %125 : vector<34x136xf32>
    %c3 = arith.constant 3 : index
    %c0_137 = arith.constant 0 : index
    %c0_138 = arith.constant 0 : index
    %127 = vector.load %arg14[%c3, %c0_137, %c0_138] : memref<5x34x10xf32, #tpu.memory_space<vmem>>, vector<1x34x10xf32>
    %128 = vector.shape_cast %127 : vector<1x34x10xf32> to vector<34x10xf32>
    %cst_139 = arith.constant dense<0.000000e+00> : vector<34x80xf32>
    %129 = tpu.matmul %128, %103, %cst_139 {dimension_numbers = #tpu.dot_dimension_numbers<[1], [0], [0], [1], [0, 0, 1, 1], [], []>} : vector<34x10xf32>, vector<10x80xf32>, vector<34x80xf32> -> vector<34x80xf32>
    %c3_140 = arith.constant 3 : index
    %c0_141 = arith.constant 0 : index
    %c0_142 = arith.constant 0 : index
    %130 = vector.load %arg15[%c3_140, %c0_141, %c0_142] : memref<5x80x136xf32, #tpu.memory_space<vmem>>, vector<1x80x136xf32>
    %131 = vector.shape_cast %130 : vector<1x80x136xf32> to vector<80x136xf32>
    %cst_143 = arith.constant dense<0.000000e+00> : vector<34x136xf32>
    %132 = tpu.matmul %129, %131, %cst_143 {dimension_numbers = #tpu.dot_dimension_numbers<[1], [0], [0], [1], [0, 0, 1, 1], [], []>} : vector<34x80xf32>, vector<80x136xf32>, vector<34x136xf32> -> vector<34x136xf32>
    %133 = arith.addf %126, %132 : vector<34x136xf32>
    %c4 = arith.constant 4 : index
    %c0_144 = arith.constant 0 : index
    %c0_145 = arith.constant 0 : index
    %134 = vector.load %arg14[%c4, %c0_144, %c0_145] : memref<5x34x10xf32, #tpu.memory_space<vmem>>, vector<1x34x10xf32>
    %135 = vector.shape_cast %134 : vector<1x34x10xf32> to vector<34x10xf32>
    %cst_146 = arith.constant dense<0.000000e+00> : vector<34x80xf32>
    %136 = tpu.matmul %135, %103, %cst_146 {dimension_numbers = #tpu.dot_dimension_numbers<[1], [0], [0], [1], [0, 0, 1, 1], [], []>} : vector<34x10xf32>, vector<10x80xf32>, vector<34x80xf32> -> vector<34x80xf32>
    %c4_147 = arith.constant 4 : index
    %c0_148 = arith.constant 0 : index
    %c0_149 = arith.constant 0 : index
    %137 = vector.load %arg15[%c4_147, %c0_148, %c0_149] : memref<5x80x136xf32, #tpu.memory_space<vmem>>, vector<1x80x136xf32>
    %138 = vector.shape_cast %137 : vector<1x80x136xf32> to vector<80x136xf32>
    %cst_150 = arith.constant dense<0.000000e+00> : vector<34x136xf32>
    %139 = tpu.matmul %136, %138, %cst_150 {dimension_numbers = #tpu.dot_dimension_numbers<[1], [0], [0], [1], [0, 0, 1, 1], [], []>} : vector<34x80xf32>, vector<80x136xf32>, vector<34x136xf32> -> vector<34x136xf32>
    %140 = arith.addf %133, %139 : vector<34x136xf32>
    %cst_151 = arith.constant 0.000000e+00 : f32
    %141 = vector.broadcast %cst_151 : f32 to vector<34x136xf32>
    %142 = arith.maximumf %140, %141 : vector<34x136xf32>
    %c0_152 = arith.constant 0 : index
    %c0_153 = arith.constant 0 : index
    %143 = vector.load %arg19[%c0_152, %c0_153] : memref<1x32xf32, #tpu.memory_space<vmem>>, vector<1x32xf32>
    %c0_154 = arith.constant 0 : index
    %c0_155 = arith.constant 0 : index
    %c0_156 = arith.constant 0 : index
    %144 = vector.load %arg17[%c0_154, %c0_155, %c0_156] : memref<2x64x34xf32, #tpu.memory_space<vmem>>, vector<1x64x34xf32>
    %145 = vector.shape_cast %144 : vector<1x64x34xf32> to vector<64x34xf32>
    %cst_157 = arith.constant dense<0.000000e+00> : vector<64x136xf32>
    %146 = tpu.matmul %145, %142, %cst_157 {dimension_numbers = #tpu.dot_dimension_numbers<[1], [0], [0], [1], [0, 0, 1, 1], [], []>} : vector<64x34xf32>, vector<34x136xf32>, vector<64x136xf32> -> vector<64x136xf32>
    %c0_158 = arith.constant 0 : index
    %c0_159 = arith.constant 0 : index
    %c0_160 = arith.constant 0 : index
    %147 = vector.load %arg18[%c0_158, %c0_159, %c0_160] : memref<2x136x32xf32, #tpu.memory_space<vmem>>, vector<1x136x32xf32>
    %148 = vector.shape_cast %147 : vector<1x136x32xf32> to vector<136x32xf32>
    %cst_161 = arith.constant dense<0.000000e+00> : vector<64x32xf32>
    %149 = tpu.matmul %146, %148, %cst_161 {dimension_numbers = #tpu.dot_dimension_numbers<[1], [0], [0], [1], [0, 0, 1, 1], [], []>} : vector<64x136xf32>, vector<136x32xf32>, vector<64x32xf32> -> vector<64x32xf32>
    %150 = vector.broadcast %143 : vector<1x32xf32> to vector<64x32xf32>
    %151 = arith.addf %150, %149 : vector<64x32xf32>
    %c1_162 = arith.constant 1 : index
    %c0_163 = arith.constant 0 : index
    %c0_164 = arith.constant 0 : index
    %152 = vector.load %arg17[%c1_162, %c0_163, %c0_164] : memref<2x64x34xf32, #tpu.memory_space<vmem>>, vector<1x64x34xf32>
    %153 = vector.shape_cast %152 : vector<1x64x34xf32> to vector<64x34xf32>
    %cst_165 = arith.constant dense<0.000000e+00> : vector<64x136xf32>
    %154 = tpu.matmul %153, %142, %cst_165 {dimension_numbers = #tpu.dot_dimension_numbers<[1], [0], [0], [1], [0, 0, 1, 1], [], []>} : vector<64x34xf32>, vector<34x136xf32>, vector<64x136xf32> -> vector<64x136xf32>
    %c1_166 = arith.constant 1 : index
    %c0_167 = arith.constant 0 : index
    %c0_168 = arith.constant 0 : index
    %155 = vector.load %arg18[%c1_166, %c0_167, %c0_168] : memref<2x136x32xf32, #tpu.memory_space<vmem>>, vector<1x136x32xf32>
    %156 = vector.shape_cast %155 : vector<1x136x32xf32> to vector<136x32xf32>
    %cst_169 = arith.constant dense<0.000000e+00> : vector<64x32xf32>
    %157 = tpu.matmul %154, %156, %cst_169 {dimension_numbers = #tpu.dot_dimension_numbers<[1], [0], [0], [1], [0, 0, 1, 1], [], []>} : vector<64x136xf32>, vector<136x32xf32>, vector<64x32xf32> -> vector<64x32xf32>
    %158 = arith.addf %151, %157 : vector<64x32xf32>
    %159 = math.tanh %158 : vector<64x32xf32>
    %c0_170 = arith.constant 0 : index
    %c0_171 = arith.constant 0 : index
    %160 = vector.load %arg20[%c0_170, %c0_171] : memref<64x32xf32, #tpu.memory_space<vmem>>, vector<64x32xf32>
    tpu.vector_store %arg20[%c0_170, %c0_171], %159 {strides = array<i32>} : memref<64x32xf32, #tpu.memory_space<vmem>>, vector<64x32xf32>,
    return
  }
}

</mosaic_0001>

<llo_original>
// kernel: autoencoder_forward.1
$region0: #{autoencoder_forward.1}
  #allocation0 [shape = 'u32[]', space=smem, size = 0x4, offset = 0x4, fixed_abs, tag = 'smem constant byte address 0x4 - core index']
  #allocation1 [shape = 'u32[144,128]{1,0:T(1,128)}', space=vmem, size = 0x12000, scoped, tag = 'internal scratch']
  %s0 = inlined_call_operand.vmem [shape: f32[56,28], index: 0, kind: input, shape index: {}]
  %s1 = inlined_call_operand.vmem [shape: f32[3,20,56], index: 1, kind: input, shape index: {}]
  %s2 = inlined_call_operand.vmem [shape: f32[3,28,160], index: 2, kind: input, shape index: {}]
  %s3 = inlined_call_operand.vmem [shape: f32[1,160], index: 3, kind: input, shape index: {}]
  %s4 = inlined_call_operand.vmem [shape: f32[2,10,20], index: 4, kind: input, shape index: {}]
  %s5 = inlined_call_operand.vmem [shape: f32[2,160,80], index: 5, kind: input, shape index: {}]
  %s6 = inlined_call_operand.vmem [shape: f32[3,6,10], index: 6, kind: input, shape index: {}]
  %s7 = inlined_call_operand.vmem [shape: f32[3,80,24], index: 7, kind: input, shape index: {}]
  %s8 = inlined_call_operand.vmem [shape: f32[1,24], index: 8, kind: input, shape index: {}]
  %s9 = inlined_call_operand.vmem [shape: f32[2,4,6], index: 9, kind: input, shape index: {}]
  %s10 = inlined_call_operand.vmem [shape: f32[2,24,16], index: 10, kind: input, shape index: {}]
  %s11 = inlined_call_operand.vmem [shape: f32[3,10,4], index: 11, kind: input, shape index: {}]
  %s12 = inlined_call_operand.vmem [shape: f32[3,16,80], index: 12, kind: input, shape index: {}]
  %s13 = inlined_call_operand.vmem [shape: f32[1,80], index: 13, kind: input, shape index: {}]
  %s14 = inlined_call_operand.vmem [shape: f32[5,34,10], index: 14, kind: input, shape index: {}]
  %s15 = inlined_call_operand.vmem [shape: f32[5,80,136], index: 15, kind: input, shape index: {}]
  %s16 = inlined_call_operand.vmem [shape: f32[1,136], index: 16, kind: input, shape index: {}]
  %s17 = inlined_call_operand.vmem [shape: f32[2,64,34], index: 17, kind: input, shape index: {}]
  %s18 = inlined_call_operand.vmem [shape: f32[2,136,32], index: 18, kind: input, shape index: {}]
  %s19 = inlined_call_operand.vmem [shape: f32[1,32], index: 19, kind: input, shape index: {}]
  %s20 = inlined_call_operand.hbm [shape: f32[64,32], index: 20, kind: output, shape index: {}]
  %s21 = sld [smem:[#allocation0]]
  $region90: #{autoencoder_forward.1} parent=0
    _
  %s23 = ssub.s32 1, %s21
  %s24 = scalar_select 0, %s23, %s21
  $region1: #{autoencoder_forward.1} parent=0
    #allocation2 [shape = 'u8[32768]{0}', space=vmem, size = 0x8000, scoped, tag = 'output window, operand 0, single buffered']
    #allocation3 [shape = 's32[1]{0}', space=sflag, size = 0x4, scoped, tag = 'scoped memory for autoencoder_forward.1']
    %25 = vsyncpa [#allocation3], 0
    // Predicated region
    $region2: #{autoencoder_forward.1} parent=1 // pred_check
      _
    $region3: #{autoencoder_forward.1} parent=1 // pred_check_branch
      %27 = sbr.rel (0) target = $region5
    $region4: #{autoencoder_forward.1} parent=1 // pred_region
      _
    $region5: #{autoencoder_forward.1} parent=1 // pred_fallthru
      _
    // Predicated region
    $region6: #{autoencoder_forward.1} parent=1 // pred_check
      _
    $region7: #{autoencoder_forward.1} parent=1 // pred_check_branch
      %29 = sbr.rel (0) target = $region9
    $region8: #{autoencoder_forward.1} parent=1 // pred_region
      _
    $region9: #{autoencoder_forward.1} parent=1 // pred_fallthru
      _
    // Predicated region
    $region10: #{autoencoder_forward.1} parent=1 // pred_check
      _
    $region11: #{autoencoder_forward.1} parent=1 // pred_check_branch
      %31 = sbr.rel (0) target = $region13
    $region12: #{autoencoder_forward.1} parent=1 // pred_region
      _
    $region13: #{autoencoder_forward.1} parent=1 // pred_fallthru
      _
    // Predicated region
    $region14: #{autoencoder_forward.1} parent=1 // pred_check
      _
    $region15: #{autoencoder_forward.1} parent=1 // pred_check_branch
      %33 = sbr.rel (0) target = $region17
    $region16: #{autoencoder_forward.1} parent=1 // pred_region
      _
    $region17: #{autoencoder_forward.1} parent=1 // pred_fallthru
      _
    // Predicated region
    $region18: #{autoencoder_forward.1} parent=1 // pred_check
      _
    $region19: #{autoencoder_forward.1} parent=1 // pred_check_branch
      %35 = sbr.rel (0) target = $region21
    $region20: #{autoencoder_forward.1} parent=1 // pred_region
      _
    $region21: #{autoencoder_forward.1} parent=1 // pred_fallthru
      _
    // Predicated region
    $region22: #{autoencoder_forward.1} parent=1 // pred_check
      _
    $region23: #{autoencoder_forward.1} parent=1 // pred_check_branch
      %37 = sbr.rel (0) target = $region25
    $region24: #{autoencoder_forward.1} parent=1 // pred_region
      _
    $region25: #{autoencoder_forward.1} parent=1 // pred_fallthru
      _
    // Predicated region
    $region26: #{autoencoder_forward.1} parent=1 // pred_check
      _
    $region27: #{autoencoder_forward.1} parent=1 // pred_check_branch
      %39 = sbr.rel (0) target = $region29
    $region28: #{autoencoder_forward.1} parent=1 // pred_region
      _
    $region29: #{autoencoder_forward.1} parent=1 // pred_fallthru
      _
    // Predicated region
    $region30: #{autoencoder_forward.1} parent=1 // pred_check
      _
    $region31: #{autoencoder_forward.1} parent=1 // pred_check_branch
      %41 = sbr.rel (0) target = $region33
    $region32: #{autoencoder_forward.1} parent=1 // pred_region
      _
    $region33: #{autoencoder_forward.1} parent=1 // pred_fallthru
      _
    // Predicated region
    $region34: #{autoencoder_forward.1} parent=1 // pred_check
      _
    $region35: #{autoencoder_forward.1} parent=1 // pred_check_branch
      %43 = sbr.rel (0) target = $region37
    $region36: #{autoencoder_forward.1} parent=1 // pred_region
      _
    $region37: #{autoencoder_forward.1} parent=1 // pred_fallthru
      _
    // Predicated region
    $region38: #{autoencoder_forward.1} parent=1 // pred_check
      _
    $region39: #{autoencoder_forward.1} parent=1 // pred_check_branch
      %45 = sbr.rel (0) target = $region41
    $region40: #{autoencoder_forward.1} parent=1 // pred_region
      _
    $region41: #{autoencoder_forward.1} parent=1 // pred_fallthru
      _
    // Predicated region
    $region42: #{autoencoder_forward.1} parent=1 // pred_check
      _
    $region43: #{autoencoder_forward.1} parent=1 // pred_check_branch
      %47 = sbr.rel (0) target = $region45
    $region44: #{autoencoder_forward.1} parent=1 // pred_region
      _
    $region45: #{autoencoder_forward.1} parent=1 // pred_fallthru
      _
    // Predicated region
    $region46: #{autoencoder_forward.1} parent=1 // pred_check
      _
    $region47: #{autoencoder_forward.1} parent=1 // pred_check_branch
      %49 = sbr.rel (0) target = $region49
    $region48: #{autoencoder_forward.1} parent=1 // pred_region
      _
    $region49: #{autoencoder_forward.1} parent=1 // pred_fallthru
      _
    // Predicated region
    $region50: #{autoencoder_forward.1} parent=1 // pred_check
      _
    $region51: #{autoencoder_forward.1} parent=1 // pred_check_branch
      %51 = sbr.rel (0) target = $region53
    $region52: #{autoencoder_forward.1} parent=1 // pred_region
      _
    $region53: #{autoencoder_forward.1} parent=1 // pred_fallthru
      _
    // Predicated region
    $region54: #{autoencoder_forward.1} parent=1 // pred_check
      _
    $region55: #{autoencoder_forward.1} parent=1 // pred_check_branch
      %53 = sbr.rel (0) target = $region57
    $region56: #{autoencoder_forward.1} parent=1 // pred_region
      _
    $region57: #{autoencoder_forward.1} parent=1 // pred_fallthru
      _
    // Predicated region
    $region58: #{autoencoder_forward.1} parent=1 // pred_check
      _
    $region59: #{autoencoder_forward.1} parent=1 // pred_check_branch
      %55 = sbr.rel (0) target = $region61
    $region60: #{autoencoder_forward.1} parent=1 // pred_region
      _
    $region61: #{autoencoder_forward.1} parent=1 // pred_fallthru
      _
    // Predicated region
    $region62: #{autoencoder_forward.1} parent=1 // pred_check
      _
    $region63: #{autoencoder_forward.1} parent=1 // pred_check_branch
      %57 = sbr.rel (0) target = $region65
    $region64: #{autoencoder_forward.1} parent=1 // pred_region
      _
    $region65: #{autoencoder_forward.1} parent=1 // pred_fallthru
      _
    // Predicated region
    $region66: #{autoencoder_forward.1} parent=1 // pred_check
      _
    $region67: #{autoencoder_forward.1} parent=1 // pred_check_branch
      %59 = sbr.rel (0) target = $region69
    $region68: #{autoencoder_forward.1} parent=1 // pred_region
      _
    $region69: #{autoencoder_forward.1} parent=1 // pred_fallthru
      _
    // Predicated region
    $region70: #{autoencoder_forward.1} parent=1 // pred_check
      _
    $region71: #{autoencoder_forward.1} parent=1 // pred_check_branch
      %61 = sbr.rel (0) target = $region73
    $region72: #{autoencoder_forward.1} parent=1 // pred_region
      _
    $region73: #{autoencoder_forward.1} parent=1 // pred_fallthru
      _
    // Predicated region
    $region74: #{autoencoder_forward.1} parent=1 // pred_check
      _
    $region75: #{autoencoder_forward.1} parent=1 // pred_check_branch
      %63 = sbr.rel (0) target = $region77
    $region76: #{autoencoder_forward.1} parent=1 // pred_region
      _
    $region77: #{autoencoder_forward.1} parent=1 // pred_fallthru
      _
    // Predicated region
    $region78: #{autoencoder_forward.1} parent=1 // pred_check
      _
    $region79: #{autoencoder_forward.1} parent=1 // pred_check_branch
      %65 = sbr.rel (0) target = $region81
    $region80: #{autoencoder_forward.1} parent=1 // pred_region
      _
    $region81: #{autoencoder_forward.1} parent=1 // pred_fallthru
      _
    %v66 = vld [vmem:[%s0] sm:$0xff]
    %v67 = vld [vmem:[%s0 + $0x8] sm:$0xff]
    %v68 = vld [vmem:[%s0 + $0x10] sm:$0xff]
    %v69 = vld [vmem:[%s0 + $0x18] sm:$0xff]
    %v70 = vld [vmem:[%s0 + $0x20] sm:$0xff]
    %v71 = vld [vmem:[%s0 + $0x28] sm:$0xff]
    %v72 = vld [vmem:[%s0 + $0x30] sm:$0xff]
    %v73 = vld [vmem:[%s3] sm:$0x3]
    %v74 = vld [vmem:[%s1] sm:$0xff]
    %v75 = vld [vmem:[%s1 + $0x8] sm:$0xff]
    %v76 = vld [vmem:[%s1 + $0x10] sm:$0xf]
    %vm77 = vcmask 457728
    %v79 = vsel %vm77, %v74, 0
    %v82 = vsel %vm77, %v75, 0
    %v85 = vsel %vm77, %v76, 0
    %87 = vmatprep.subr.mxu0 0.0
    %88 = vmatpush1.msra.mxu0 %v66
    %89 = vmatprep.subr.mxu0 0.0
    %90 = vmatpush1.msra.mxu0 %v67
    %91 = vmatprep.subr.mxu0 0.0
    %92 = vmatpush1.msra.mxu0 %v68
    %93 = vmatprep.subr.mxu0 0.0
    %94 = vmatpush1.msra.mxu0 %v69
    %95 = vmatprep.subr.mxu0 0.0
    %96 = vmatpush1.msra.mxu0 %v70
    %97 = vmatprep.subr.mxu0 0.0
    %98 = vmatpush1.msra.mxu0 %v71
    %99 = vmatprep.subr.mxu0 0.0
    %100 = vmatpush1.msra.mxu0 %v72
    %101 = vmatprep.subr.mxu0 0.0
    %102 = vmatpush1.msra.mxu0 0.0
    %103 = vmatprep.subr.mxu0 0.0
    %104 = vmatpush1.msra.mxu0 0.0
    %105 = vmatprep.subr.mxu0 0.0
    %106 = vmatpush1.msra.mxu0 0.0
    %107 = vmatprep.subr.mxu0 0.0
    %108 = vmatpush1.msra.mxu0 0.0
    %109 = vmatprep.subr.mxu0 0.0
    %110 = vmatpush1.msra.mxu0 0.0
    %111 = vmatprep.subr.mxu0 0.0
    %112 = vmatpush1.msra.mxu0 0.0
    %113 = vmatprep.subr.mxu0 0.0
    %114 = vmatpush1.msra.mxu0 0.0
    %115 = vmatprep.subr.mxu0 0.0
    %116 = vmatpush1.msra.mxu0 0.0
    %117 = vmatprep.subr.mxu0 0.0
    %118 = vmatpush1.msra.mxu0 0.0
    %119 = vmatprep.subr.mxu0 0.0
    %120 = vmatpush1.msra.mxu0 0.0
    %121 = vmatprep.subr.mxu0 0.0
    %122 = vmatpush1.msra.mxu0 0.0
    %123 = vmatprep.subr.mxu0 0.0
    %124 = vmatpush1.msra.mxu0 0.0
    %125 = vmatprep.subr.mxu0 0.0
    %126 = vmatpush1.msra.mxu0 0.0
    %127 = vmatprep.subr.mxu0 0.0
    %128 = vmatpush1.msra.mxu0 0.0
    %129 = vmatprep.subr.mxu0 0.0
    %130 = vmatpush1.msra.mxu0 0.0
    %131 = vmatprep.subr.mxu0 0.0
    %132 = vmatpush1.msra.mxu0 0.0
    %133 = vmatprep.subr.mxu0 0.0
    %134 = vmatpush1.msra.mxu0 0.0
    %135 = vmatprep.subr.mxu0 0.0
    %136 = vmatpush1.msra.mxu0 0.0
    %137 = vmatprep.subr.mxu0 0.0
    %138 = vmatpush1.msra.mxu0 0.0
    %139 = vmatprep.subr.mxu0 0.0
    %140 = vmatpush1.msra.mxu0 0.0
    %141 = vmatprep.subr.mxu0 0.0
    %142 = vmatpush1.msra.mxu0 0.0
    %143 = vmatprep.subr.mxu0 0.0
    %144 = vmatpush1.msra.mxu0 0.0
    %145 = vmatprep.subr.mxu0 0.0
    %146 = vmatpush1.msra.mxu0 0.0
    %147 = vmatprep.subr.mxu0 0.0
    %148 = vmatpush1.msra.mxu0 0.0
    %149 = vmatprep.subr.mxu0 0.0
    %150 = vmatpush1.msra.mxu0 0.0
    %151 = vmatprep.mubr.f32.mxu0 0.0
    %152 = vmatmul.mubr.f32.gmra.mrb[0].mxu0 %v79
    %v153 = vpop.f32.mrb[0].mxu0
    %v154 = vadd.f32 0.0, %v153
    %v155 = vpop.f32.mrb[0].mxu0
    %156 = vmatprep.mubr.f32.mxu0 0.0
    %157 = vmatmul.mubr.f32.gmra.mrb[0].mxu0 %v82
    %v158 = vpop.f32.mrb[0].mxu0
    %v159 = vadd.f32 0.0, %v158
    %v160 = vpop.f32.mrb[0].mxu0
    %161 = vmatprep.mubr.f32.mxu0 0.0
    %162 = vmatmul.mubr.f32.gmra.mrb[0].mxu0 %v85
    %v163 = vpop.f32.mrb[0].mxu0
    %v164 = vadd.f32 0.0, %v163
    %v165 = vpop.f32.mrb[0].mxu0
    %166 = vdwg.mxu0
    %v167 = vld [vmem:[%s2] sm:$0xff]
    %v168 = vld [vmem:[%s2 + $0x8] sm:$0xff]
    %v169 = vld [vmem:[%s2 + $0x10] sm:$0xff]
    %v170 = vld [vmem:[%s2 + $0x18] sm:$0xff]
    %v171 = vld [vmem:[%s2 + $0x20] sm:$0xff]
    %v172 = vld [vmem:[%s2 + $0x28] sm:$0xff]
    %v173 = vld [vmem:[%s2 + $0x30] sm:$0xf]
    %v174 = vld [vmem:[%s2 + $0x38] sm:$0xf]
    %vm175 = vcmask 228352
    %v177 = vsel %vm175, %v154, 0
    %v180 = vsel %vm175, %v159, 0
    %v183 = vsel %vm175, %v164, 0
    %vm185 = vcmask 1043456
    %v187 = vsel %vm185, %v173, 0
    %v190 = vsel %vm185, %v174, 0
    %192 = vmatprep.subr.mxu0 %v168
    %193 = vmatpush1.msra.mxu0 %v167
    %194 = vmatprep.subr.mxu0 %v170
    %195 = vmatpush1.msra.mxu0 %v169
    %196 = vmatprep.subr.mxu0 %v172
    %197 = vmatpush1.msra.mxu0 %v171
    %198 = vmatprep.subr.mxu0 %v190
    %199 = vmatpush1.msra.mxu0 %v187
    %200 = vmatprep.subr.mxu0 0.0
    %201 = vmatpush1.msra.mxu0 0.0
    %202 = vmatprep.subr.mxu0 0.0
    %203 = vmatpush1.msra.mxu0 0.0
    %204 = vmatprep.subr.mxu0 0.0
    %205 = vmatpush1.msra.mxu0 0.0
    %206 = vmatprep.subr.mxu0 0.0
    %207 = vmatpush1.msra.mxu0 0.0
    %208 = vmatprep.subr.mxu0 0.0
    %209 = vmatpush1.msra.mxu0 0.0
    %210 = vmatprep.subr.mxu0 0.0
    %211 = vmatpush1.msra.mxu0 0.0
    %212 = vmatprep.subr.mxu0 0.0
    %213 = vmatpush1.msra.mxu0 0.0
    %214 = vmatprep.subr.mxu0 0.0
    %215 = vmatpush1.msra.mxu0 0.0
    %216 = vmatprep.subr.mxu0 0.0
    %217 = vmatpush1.msra.mxu0 0.0
    %218 = vmatprep.subr.mxu0 0.0
    %219 = vmatpush1.msra.mxu0 0.0
    %220 = vmatprep.subr.mxu0 0.0
    %221 = vmatpush1.msra.mxu0 0.0
    %222 = vmatprep.subr.mxu0 0.0
    %223 = vmatpush1.msra.mxu0 0.0
    %224 = vmatprep.subr.mxu0 0.0
    %225 = vmatpush1.msra.mxu0 0.0
    %226 = vmatprep.subr.mxu0 0.0
    %227 = vmatpush1.msra.mxu0 0.0
    %228 = vmatprep.subr.mxu0 0.0
    %229 = vmatpush1.msra.mxu0 0.0
    %230 = vmatprep.subr.mxu0 0.0
    %231 = vmatpush1.msra.mxu0 0.0
    %232 = vmatprep.subr.mxu0 0.0
    %233 = vmatpush1.msra.mxu0 0.0
    %234 = vmatprep.subr.mxu0 0.0
    %235 = vmatpush1.msra.mxu0 0.0
    %236 = vmatprep.subr.mxu0 0.0
    %237 = vmatpush1.msra.mxu0 0.0
    %238 = vmatprep.subr.mxu0 0.0
    %239 = vmatpush1.msra.mxu0 0.0
    %240 = vmatprep.subr.mxu0 0.0
    %241 = vmatpush1.msra.mxu0 0.0
    %242 = vmatprep.subr.mxu0 0.0
    %243 = vmatpush1.msra.mxu0 0.0
    %244 = vmatprep.subr.mxu0 0.0
    %245 = vmatpush1.msra.mxu0 0.0
    %246 = vmatprep.subr.mxu0 0.0
    %247 = vmatpush1.msra.mxu0 0.0
    %248 = vmatprep.subr.mxu0 0.0
    %249 = vmatpush1.msra.mxu0 0.0
    %250 = vmatprep.subr.mxu0 0.0
    %251 = vmatpush1.msra.mxu0 0.0
    %252 = vmatprep.subr.mxu0 0.0
    %253 = vmatpush1.msra.mxu0 0.0
    %254 = vmatprep.subr.mxu0 0.0
    %255 = vmatpush1.msra.mxu0 0.0
    %256 = vmatprep.mubr.f32.mxu0 0.0
    %257 = vmatmul.mubr.f32.gmra.mrb[0].mxu0 %v177
    %v258 = vpop.f32.mrb[0].mxu0
    %v259 = vadd.f32 0.0, %v258
    %v260 = vpop.f32.mrb[0].mxu0
    %v261 = vadd.f32 0.0, %v260
    %262 = vmatprep.mubr.f32.mxu0 0.0
    %263 = vmatmul.mubr.f32.gmra.mrb[0].mxu0 %v180
    %v264 = vpop.f32.mrb[0].mxu0
    %v265 = vadd.f32 0.0, %v264
    %v266 = vpop.f32.mrb[0].mxu0
    %v267 = vadd.f32 0.0, %v266
    %268 = vmatprep.mubr.f32.mxu0 0.0
    %269 = vmatmul.mubr.f32.gmra.mrb[0].mxu0 %v183
    %v270 = vpop.f32.mrb[0].mxu0
    %v271 = vadd.f32 0.0, %v270
    %v272 = vpop.f32.mrb[0].mxu0
    %v273 = vadd.f32 0.0, %v272
    %274 = vdwg.mxu0
    %v276 = vlaneseq
    %v277 = vshrl.u32 %v276, 7
    %v278 = vsub.s32 0, %v277
    %v279 = vrot.slane %v73, %v278
    %v280 = vlaneseq
    %v281 = vshrl.u32 %v280, 7
    %v282 = vsub.s32 1, %v281
    %v283 = vrot.slane %v73, %v282
    %v286 = vadd.f32 %v279, %v259
    %v287 = vadd.f32 %v283, %v261
    %v288 = vadd.f32 %v279, %v265
    %v289 = vadd.f32 %v283, %v267
    %v290 = vadd.f32 %v279, %v271
    %v291 = vadd.f32 %v283, %v273
    %s292 = scalar_lea.vmem %s1, 24
    %v293 = vld [vmem:[%s292] sm:$0xff]
    %v294 = vld [vmem:[%s292 + $0x8] sm:$0xff]
    %v295 = vld [vmem:[%s292 + $0x10] sm:$0xf]
    %v297 = vsel %vm77, %v293, 0
    %v300 = vsel %vm77, %v294, 0
    %v303 = vsel %vm77, %v295, 0
    %305 = vmatprep.subr.mxu0 0.0
    %306 = vmatpush1.msra.mxu0 %v66
    %307 = vmatprep.subr.mxu0 0.0
    %308 = vmatpush1.msra.mxu0 %v67
    %309 = vmatprep.subr.mxu0 0.0
    %310 = vmatpush1.msra.mxu0 %v68
    %311 = vmatprep.subr.mxu0 0.0
    %312 = vmatpush1.msra.mxu0 %v69
    %313 = vmatprep.subr.mxu0 0.0
    %314 = vmatpush1.msra.mxu0 %v70
    %315 = vmatprep.subr.mxu0 0.0
    %316 = vmatpush1.msra.mxu0 %v71
    %317 = vmatprep.subr.mxu0 0.0
    %318 = vmatpush1.msra.mxu0 %v72
    %319 = vmatprep.subr.mxu0 0.0
    %320 = vmatpush1.msra.mxu0 0.0
    %321 = vmatprep.subr.mxu0 0.0
    %322 = vmatpush1.msra.mxu0 0.0
    %323 = vmatprep.subr.mxu0 0.0
    %324 = vmatpush1.msra.mxu0 0.0
    %325 = vmatprep.subr.mxu0 0.0
    %326 = vmatpush1.msra.mxu0 0.0
    %327 = vmatprep.subr.mxu0 0.0
    %328 = vmatpush1.msra.mxu0 0.0
    %329 = vmatprep.subr.mxu0 0.0
    %330 = vmatpush1.msra.mxu0 0.0
    %331 = vmatprep.subr.mxu0 0.0
    %332 = vmatpush1.msra.mxu0 0.0
    %333 = vmatprep.subr.mxu0 0.0
    %334 = vmatpush1.msra.mxu0 0.0
    %335 = vmatprep.subr.mxu0 0.0
    %336 = vmatpush1.msra.mxu0 0.0
    %337 = vmatprep.subr.mxu0 0.0
    %338 = vmatpush1.msra.mxu0 0.0
    %339 = vmatprep.subr.mxu0 0.0
    %340 = vmatpush1.msra.mxu0 0.0
    %341 = vmatprep.subr.mxu0 0.0
    %342 = vmatpush1.msra.mxu0 0.0
    %343 = vmatprep.subr.mxu0 0.0
    %344 = vmatpush1.msra.mxu0 0.0
    %345 = vmatprep.subr.mxu0 0.0
    %346 = vmatpush1.msra.mxu0 0.0
    %347 = vmatprep.subr.mxu0 0.0
    %348 = vmatpush1.msra.mxu0 0.0
    %349 = vmatprep.subr.mxu0 0.0
    %350 = vmatpush1.msra.mxu0 0.0
    %351 = vmatprep.subr.mxu0 0.0
    %352 = vmatpush1.msra.mxu0 0.0
    %353 = vmatprep.subr.mxu0 0.0
    %354 = vmatpush1.msra.mxu0 0.0
    %355 = vmatprep.subr.mxu0 0.0
    %356 = vmatpush1.msra.mxu0 0.0
    %357 = vmatprep.subr.mxu0 0.0
    %358 = vmatpush1.msra.mxu0 0.0
    %359 = vmatprep.subr.mxu0 0.0
    %360 = vmatpush1.msra.mxu0 0.0
    %361 = vmatprep.subr.mxu0 0.0
    %362 = vmatpush1.msra.mxu0 0.0
    %363 = vmatprep.subr.mxu0 0.0
    %364 = vmatpush1.msra.mxu0 0.0
    %365 = vmatprep.subr.mxu0 0.0
    %366 = vmatpush1.msra.mxu0 0.0
    %367 = vmatprep.subr.mxu0 0.0
    %368 = vmatpush1.msra.mxu0 0.0
    %369 = vmatprep.mubr.f32.mxu0 0.0
    %370 = vmatmul.mubr.f32.gmra.mrb[0].mxu0 %v297
    %v371 = vpop.f32.mrb[0].mxu0
    %v372 = vadd.f32 0.0, %v371
    %v373 = vpop.f32.mrb[0].mxu0
    %374 = vmatprep.mubr.f32.mxu0 0.0
    %375 = vmatmul.mubr.f32.gmra.mrb[0].mxu0 %v300
    %v376 = vpop.f32.mrb[0].mxu0
    %v377 = vadd.f32 0.0, %v376
    %v378 = vpop.f32.mrb[0].mxu0
    %379 = vmatprep.mubr.f32.mxu0 0.0
    %380 = vmatmul.mubr.f32.gmra.mrb[0].mxu0 %v303
    %v381 = vpop.f32.mrb[0].mxu0
    %v382 = vadd.f32 0.0, %v381
    %v383 = vpop.f32.mrb[0].mxu0
    %384 = vdwg.mxu0
    %s385 = scalar_lea.vmem %s2, 64
    %v386 = vld [vmem:[%s385] sm:$0xff]
    %v387 = vld [vmem:[%s385 + $0x8] sm:$0xff]
    %v388 = vld [vmem:[%s385 + $0x10] sm:$0xff]
    %v389 = vld [vmem:[%s385 + $0x18] sm:$0xff]
    %v390 = vld [vmem:[%s385 + $0x20] sm:$0xff]
    %v391 = vld [vmem:[%s385 + $0x28] sm:$0xff]
    %v392 = vld [vmem:[%s385 + $0x30] sm:$0xf]
    %v393 = vld [vmem:[%s385 + $0x38] sm:$0xf]
    %v395 = vsel %vm175, %v372, 0
    %v398 = vsel %vm175, %v377, 0
    %v401 = vsel %vm175, %v382, 0
    %v404 = vsel %vm185, %v392, 0
    %v407 = vsel %vm185, %v393, 0
    %409 = vmatprep.subr.mxu0 %v387
    %410 = vmatpush1.msra.mxu0 %v386
    %411 = vmatprep.subr.mxu0 %v389
    %412 = vmatpush1.msra.mxu0 %v388
    %413 = vmatprep.subr.mxu0 %v391
    %414 = vmatpush1.msra.mxu0 %v390
    %415 = vmatprep.subr.mxu0 %v407
    %416 = vmatpush1.msra.mxu0 %v404
    %417 = vmatprep.subr.mxu0 0.0
    %418 = vmatpush1.msra.mxu0 0.0
    %419 = vmatprep.subr.mxu0 0.0
    %420 = vmatpush1.msra.mxu0 0.0
    %421 = vmatprep.subr.mxu0 0.0
    %422 = vmatpush1.msra.mxu0 0.0
    %423 = vmatprep.subr.mxu0 0.0
    %424 = vmatpush1.msra.mxu0 0.0
    %425 = vmatprep.subr.mxu0 0.0
    %426 = vmatpush1.msra.mxu0 0.0
    %427 = vmatprep.subr.mxu0 0.0
    %428 = vmatpush1.msra.mxu0 0.0
    %429 = vmatprep.subr.mxu0 0.0
    %430 = vmatpush1.msra.mxu0 0.0
    %431 = vmatprep.subr.mxu0 0.0
    %432 = vmatpush1.msra.mxu0 0.0
    %433 = vmatprep.subr.mxu0 0.0
    %434 = vmatpush1.msra.mxu0 0.0
    %435 = vmatprep.subr.mxu0 0.0
    %436 = vmatpush1.msra.mxu0 0.0
    %437 = vmatprep.subr.mxu0 0.0
    %438 = vmatpush1.msra.mxu0 0.0
    %439 = vmatprep.subr.mxu0 0.0
    %440 = vmatpush1.msra.mxu0 0.0
    %441 = vmatprep.subr.mxu0 0.0
    %442 = vmatpush1.msra.mxu0 0.0
    %443 = vmatprep.subr.mxu0 0.0
    %444 = vmatpush1.msra.mxu0 0.0
    %445 = vmatprep.subr.mxu0 0.0
    %446 = vmatpush1.msra.mxu0 0.0
    %447 = vmatprep.subr.mxu0 0.0
    %448 = vmatpush1.msra.mxu0 0.0
    %449 = vmatprep.subr.mxu0 0.0
    %450 = vmatpush1.msra.mxu0 0.0
    %451 = vmatprep.subr.mxu0 0.0
    %452 = vmatpush1.msra.mxu0 0.0
    %453 = vmatprep.subr.mxu0 0.0
    %454 = vmatpush1.msra.mxu0 0.0
    %455 = vmatprep.subr.mxu0 0.0
    %456 = vmatpush1.msra.mxu0 0.0
    %457 = vmatprep.subr.mxu0 0.0
    %458 = vmatpush1.msra.mxu0 0.0
    %459 = vmatprep.subr.mxu0 0.0
    %460 = vmatpush1.msra.mxu0 0.0
    %461 = vmatprep.subr.mxu0 0.0
    %462 = vmatpush1.msra.mxu0 0.0
    %463 = vmatprep.subr.mxu0 0.0
    %464 = vmatpush1.msra.mxu0 0.0
    %465 = vmatprep.subr.mxu0 0.0
    %466 = vmatpush1.msra.mxu0 0.0
    %467 = vmatprep.subr.mxu0 0.0
    %468 = vmatpush1.msra.mxu0 0.0
    %469 = vmatprep.subr.mxu0 0.0
    %470 = vmatpush1.msra.mxu0 0.0
    %471 = vmatprep.subr.mxu0 0.0
    %472 = vmatpush1.msra.mxu0 0.0
    %473 = vmatprep.mubr.f32.mxu0 0.0
    %474 = vmatmul.mubr.f32.gmra.mrb[0].mxu0 %v395
    %v475 = vpop.f32.mrb[0].mxu0
    %v476 = vadd.f32 0.0, %v475
    %v477 = vpop.f32.mrb[0].mxu0
    %v478 = vadd.f32 0.0, %v477
    %479 = vmatprep.mubr.f32.mxu0 0.0
    %480 = vmatmul.mubr.f32.gmra.mrb[0].mxu0 %v398
    %v481 = vpop.f32.mrb[0].mxu0
    %v482 = vadd.f32 0.0, %v481
    %v483 = vpop.f32.mrb[0].mxu0
    %v484 = vadd.f32 0.0, %v483
    %485 = vmatprep.mubr.f32.mxu0 0.0
    %486 = vmatmul.mubr.f32.gmra.mrb[0].mxu0 %v401
    %v487 = vpop.f32.mrb[0].mxu0
    %v488 = vadd.f32 0.0, %v487
    %v489 = vpop.f32.mrb[0].mxu0
    %v490 = vadd.f32 0.0, %v489
    %491 = vdwg.mxu0
    %v492 = vadd.f32 %v286, %v476
    %v493 = vadd.f32 %v287, %v478
    %v494 = vadd.f32 %v288, %v482
    %v495 = vadd.f32 %v289, %v484
    %v496 = vadd.f32 %v290, %v488
    %v497 = vadd.f32 %v291, %v490
    %s498 = scalar_lea.vmem %s1, 48
    %v499 = vld [vmem:[%s498] sm:$0xff]
    %v500 = vld [vmem:[%s498 + $0x8] sm:$0xff]
    %v501 = vld [vmem:[%s498 + $0x10] sm:$0xf]
    %v503 = vsel %vm77, %v499, 0
    %v506 = vsel %vm77, %v500, 0
    %v509 = vsel %vm77, %v501, 0
    %511 = vmatprep.subr.mxu0 0.0
    %512 = vmatpush1.msra.mxu0 %v66
    %513 = vmatprep.subr.mxu0 0.0
    %514 = vmatpush1.msra.mxu0 %v67
    %515 = vmatprep.subr.mxu0 0.0
    %516 = vmatpush1.msra.mxu0 %v68
    %517 = vmatprep.subr.mxu0 0.0
    %518 = vmatpush1.msra.mxu0 %v69
    %519 = vmatprep.subr.mxu0 0.0
    %520 = vmatpush1.msra.mxu0 %v70
    %521 = vmatprep.subr.mxu0 0.0
    %522 = vmatpush1.msra.mxu0 %v71
    %523 = vmatprep.subr.mxu0 0.0
    %524 = vmatpush1.msra.mxu0 %v72
    %525 = vmatprep.subr.mxu0 0.0
    %526 = vmatpush1.msra.mxu0 0.0
    %527 = vmatprep.subr.mxu0 0.0
    %528 = vmatpush1.msra.mxu0 0.0
    %529 = vmatprep.subr.mxu0 0.0
    %530 = vmatpush1.msra.mxu0 0.0
    %531 = vmatprep.subr.mxu0 0.0
    %532 = vmatpush1.msra.mxu0 0.0
    %533 = vmatprep.subr.mxu0 0.0
    %534 = vmatpush1.msra.mxu0 0.0
    %535 = vmatprep.subr.mxu0 0.0
    %536 = vmatpush1.msra.mxu0 0.0
    %537 = vmatprep.subr.mxu0 0.0
    %538 = vmatpush1.msra.mxu0 0.0
    %539 = vmatprep.subr.mxu0 0.0
    %540 = vmatpush1.msra.mxu0 0.0
    %541 = vmatprep.subr.mxu0 0.0
    %542 = vmatpush1.msra.mxu0 0.0
    %543 = vmatprep.subr.mxu0 0.0
    %544 = vmatpush1.msra.mxu0 0.0
    %545 = vmatprep.subr.mxu0 0.0
    %546 = vmatpush1.msra.mxu0 0.0
    %547 = vmatprep.subr.mxu0 0.0
    %548 = vmatpush1.msra.mxu0 0.0
    %549 = vmatprep.subr.mxu0 0.0
    %550 = vmatpush1.msra.mxu0 0.0
    %551 = vmatprep.subr.mxu0 0.0
    %552 = vmatpush1.msra.mxu0 0.0
    %553 = vmatprep.subr.mxu0 0.0
    %554 = vmatpush1.msra.mxu0 0.0
    %555 = vmatprep.subr.mxu0 0.0
    %556 = vmatpush1.msra.mxu0 0.0
    %557 = vmatprep.subr.mxu0 0.0
    %558 = vmatpush1.msra.mxu0 0.0
    %559 = vmatprep.subr.mxu0 0.0
    %560 = vmatpush1.msra.mxu0 0.0
    %561 = vmatprep.subr.mxu0 0.0
    %562 = vmatpush1.msra.mxu0 0.0
    %563 = vmatprep.subr.mxu0 0.0
    %564 = vmatpush1.msra.mxu0 0.0
    %565 = vmatprep.subr.mxu0 0.0
    %566 = vmatpush1.msra.mxu0 0.0
    %567 = vmatprep.subr.mxu0 0.0
    %568 = vmatpush1.msra.mxu0 0.0
    %569 = vmatprep.subr.mxu0 0.0
    %570 = vmatpush1.msra.mxu0 0.0
    %571 = vmatprep.subr.mxu0 0.0
    %572 = vmatpush1.msra.mxu0 0.0
    %573 = vmatprep.subr.mxu0 0.0
    %574 = vmatpush1.msra.mxu0 0.0
    %575 = vmatprep.mubr.f32.mxu0 0.0
    %576 = vmatmul.mubr.f32.gmra.mrb[0].mxu0 %v503
    %v577 = vpop.f32.mrb[0].mxu0
    %v578 = vadd.f32 0.0, %v577
    %v579 = vpop.f32.mrb[0].mxu0
    %580 = vmatprep.mubr.f32.mxu0 0.0
    %581 = vmatmul.mubr.f32.gmra.mrb[0].mxu0 %v506
    %v582 = vpop.f32.mrb[0].mxu0
    %v583 = vadd.f32 0.0, %v582
    %v584 = vpop.f32.mrb[0].mxu0
    %585 = vmatprep.mubr.f32.mxu0 0.0
    %586 = vmatmul.mubr.f32.gmra.mrb[0].mxu0 %v509
    %v587 = vpop.f32.mrb[0].mxu0
    %v588 = vadd.f32 0.0, %v587
    %v589 = vpop.f32.mrb[0].mxu0
    %590 = vdwg.mxu0
    %s591 = scalar_lea.vmem %s2, 128
    %v592 = vld [vmem:[%s591] sm:$0xff]
    %v593 = vld [vmem:[%s591 + $0x8] sm:$0xff]
    %v594 = vld [vmem:[%s591 + $0x10] sm:$0xff]
    %v595 = vld [vmem:[%s591 + $0x18] sm:$0xff]
    %v596 = vld [vmem:[%s591 + $0x20] sm:$0xff]
    %v597 = vld [vmem:[%s591 + $0x28] sm:$0xff]
    %v598 = vld [vmem:[%s591 + $0x30] sm:$0xf]
    %v599 = vld [vmem:[%s591 + $0x38] sm:$0xf]
    %v601 = vsel %vm175, %v578, 0
    %v604 = vsel %vm175, %v583, 0
    %v607 = vsel %vm175, %v588, 0
    %v610 = vsel %vm185, %v598, 0
    %v613 = vsel %vm185, %v599, 0
    %615 = vmatprep.subr.mxu0 %v593
    %616 = vmatpush1.msra.mxu0 %v592
    %617 = vmatprep.subr.mxu0 %v595
    %618 = vmatpush1.msra.mxu0 %v594
    %619 = vmatprep.subr.mxu0 %v597
    %620 = vmatpush1.msra.mxu0 %v596
    %621 = vmatprep.subr.mxu0 %v613
    %622 = vmatpush1.msra.mxu0 %v610
    %623 = vmatprep.subr.mxu0 0.0
    %624 = vmatpush1.msra.mxu0 0.0
    %625 = vmatprep.subr.mxu0 0.0
    %626 = vmatpush1.msra.mxu0 0.0
    %627 = vmatprep.subr.mxu0 0.0
    %628 = vmatpush1.msra.mxu0 0.0
    %629 = vmatprep.subr.mxu0 0.0
    %630 = vmatpush1.msra.mxu0 0.0
    %631 = vmatprep.subr.mxu0 0.0
    %632 = vmatpush1.msra.mxu0 0.0
    %633 = vmatprep.subr.mxu0 0.0
    %634 = vmatpush1.msra.mxu0 0.0
    %635 = vmatprep.subr.mxu0 0.0
    %636 = vmatpush1.msra.mxu0 0.0
    %637 = vmatprep.subr.mxu0 0.0
    %638 = vmatpush1.msra.mxu0 0.0
    %639 = vmatprep.subr.mxu0 0.0
    %640 = vmatpush1.msra.mxu0 0.0
    %641 = vmatprep.subr.mxu0 0.0
    %642 = vmatpush1.msra.mxu0 0.0
    %643 = vmatprep.subr.mxu0 0.0
    %644 = vmatpush1.msra.mxu0 0.0
    %645 = vmatprep.subr.mxu0 0.0
    %646 = vmatpush1.msra.mxu0 0.0
    %647 = vmatprep.subr.mxu0 0.0
    %648 = vmatpush1.msra.mxu0 0.0
    %649 = vmatprep.subr.mxu0 0.0
    %650 = vmatpush1.msra.mxu0 0.0
    %651 = vmatprep.subr.mxu0 0.0
    %652 = vmatpush1.msra.mxu0 0.0
    %653 = vmatprep.subr.mxu0 0.0
    %654 = vmatpush1.msra.mxu0 0.0
    %655 = vmatprep.subr.mxu0 0.0
    %656 = vmatpush1.msra.mxu0 0.0
    %657 = vmatprep.subr.mxu0 0.0
    %658 = vmatpush1.msra.mxu0 0.0
    %659 = vmatprep.subr.mxu0 0.0
    %660 = vmatpush1.msra.mxu0 0.0
    %661 = vmatprep.subr.mxu0 0.0
    %662 = vmatpush1.msra.mxu0 0.0
    %663 = vmatprep.subr.mxu0 0.0
    %664 = vmatpush1.msra.mxu0 0.0
    %665 = vmatprep.subr.mxu0 0.0
    %666 = vmatpush1.msra.mxu0 0.0
    %667 = vmatprep.subr.mxu0 0.0
    %668 = vmatpush1.msra.mxu0 0.0
    %669 = vmatprep.subr.mxu0 0.0
    %670 = vmatpush1.msra.mxu0 0.0
    %671 = vmatprep.subr.mxu0 0.0
    %672 = vmatpush1.msra.mxu0 0.0
    %673 = vmatprep.subr.mxu0 0.0
    %674 = vmatpush1.msra.mxu0 0.0
    %675 = vmatprep.subr.mxu0 0.0
    %676 = vmatpush1.msra.mxu0 0.0
    %677 = vmatprep.subr.mxu0 0.0
    %678 = vmatpush1.msra.mxu0 0.0
    %679 = vmatprep.mubr.f32.mxu0 0.0
    %680 = vmatmul.mubr.f32.gmra.mrb[0].mxu0 %v601
    %v681 = vpop.f32.mrb[0].mxu0
    %v682 = vadd.f32 0.0, %v681
    %v683 = vpop.f32.mrb[0].mxu0
    %v684 = vadd.f32 0.0, %v683
    %685 = vmatprep.mubr.f32.mxu0 0.0
    %686 = vmatmul.mubr.f32.gmra.mrb[0].mxu0 %v604
    %v687 = vpop.f32.mrb[0].mxu0
    %v688 = vadd.f32 0.0, %v687
    %v689 = vpop.f32.mrb[0].mxu0
    %v690 = vadd.f32 0.0, %v689
    %691 = vmatprep.mubr.f32.mxu0 0.0
    %692 = vmatmul.mubr.f32.gmra.mrb[0].mxu0 %v607
    %v693 = vpop.f32.mrb[0].mxu0
    %v694 = vadd.f32 0.0, %v693
    %v695 = vpop.f32.mrb[0].mxu0
    %v696 = vadd.f32 0.0, %v695
    %697 = vdwg.mxu0
    %v698 = vadd.f32 %v492, %v682
    %v699 = vadd.f32 %v493, %v684
    %v700 = vadd.f32 %v494, %v688
    %v701 = vadd.f32 %v495, %v690
    %v702 = vadd.f32 %v496, %v694
    %v703 = vadd.f32 %v497, %v696
    %v704 = vmax.f32 %v698, 0.0
    %v705 = vmax.f32 %v699, 0.0
    %v706 = vmax.f32 %v700, 0.0
    %v707 = vmax.f32 %v701, 0.0
    %v708 = vmax.f32 %v702, 0.0
    %v709 = vmax.f32 %v703, 0.0
    %v710 = vld [vmem:[%s4] sm:$0xff]
    %v711 = vld [vmem:[%s4 + $0x8] sm:$0x3]
    %vm712 = vcmask 162816
    %v714 = vsel %vm712, %v710, 0
    %v717 = vsel %vm712, %v711, 0
    %v720 = vsel %vm185, %v708, 0
    %v723 = vsel %vm185, %v709, 0
    %725 = vmatprep.subr.mxu0 %v705
    %726 = vmatpush1.msra.mxu0 %v704
    %727 = vmatprep.subr.mxu0 %v707
    %728 = vmatpush1.msra.mxu0 %v706
    %729 = vmatprep.subr.mxu0 %v723
    %730 = vmatpush1.msra.mxu0 %v720
    %731 = vmatprep.subr.mxu0 0.0
    %732 = vmatpush1.msra.mxu0 0.0
    %733 = vmatprep.subr.mxu0 0.0
    %734 = vmatpush1.msra.mxu0 0.0
    %735 = vmatprep.subr.mxu0 0.0
    %736 = vmatpush1.msra.mxu0 0.0
    %737 = vmatprep.subr.mxu0 0.0
    %738 = vmatpush1.msra.mxu0 0.0
    %739 = vmatprep.subr.mxu0 0.0
    %740 = vmatpush1.msra.mxu0 0.0
    %741 = vmatprep.subr.mxu0 0.0
    %742 = vmatpush1.msra.mxu0 0.0
    %743 = vmatprep.subr.mxu0 0.0
    %744 = vmatpush1.msra.mxu0 0.0
    %745 = vmatprep.subr.mxu0 0.0
    %746 = vmatpush1.msra.mxu0 0.0
    %747 = vmatprep.subr.mxu0 0.0
    %748 = vmatpush1.msra.mxu0 0.0
    %749 = vmatprep.subr.mxu0 0.0
    %750 = vmatpush1.msra.mxu0 0.0
    %751 = vmatprep.subr.mxu0 0.0
    %752 = vmatpush1.msra.mxu0 0.0
    %753 = vmatprep.subr.mxu0 0.0
    %754 = vmatpush1.msra.mxu0 0.0
    %755 = vmatprep.subr.mxu0 0.0
    %756 = vmatpush1.msra.mxu0 0.0
    %757 = vmatprep.subr.mxu0 0.0
    %758 = vmatpush1.msra.mxu0 0.0
    %759 = vmatprep.subr.mxu0 0.0
    %760 = vmatpush1.msra.mxu0 0.0
    %761 = vmatprep.subr.mxu0 0.0
    %762 = vmatpush1.msra.mxu0 0.0
    %763 = vmatprep.subr.mxu0 0.0
    %764 = vmatpush1.msra.mxu0 0.0
    %765 = vmatprep.subr.mxu0 0.0
    %766 = vmatpush1.msra.mxu0 0.0
    %767 = vmatprep.subr.mxu0 0.0
    %768 = vmatpush1.msra.mxu0 0.0
    %769 = vmatprep.subr.mxu0 0.0
    %770 = vmatpush1.msra.mxu0 0.0
    %771 = vmatprep.subr.mxu0 0.0
    %772 = vmatpush1.msra.mxu0 0.0
    %773 = vmatprep.subr.mxu0 0.0
    %774 = vmatpush1.msra.mxu0 0.0
    %775 = vmatprep.subr.mxu0 0.0
    %776 = vmatpush1.msra.mxu0 0.0
    %777 = vmatprep.subr.mxu0 0.0
    %778 = vmatpush1.msra.mxu0 0.0
    %779 = vmatprep.subr.mxu0 0.0
    %780 = vmatpush1.msra.mxu0 0.0
    %781 = vmatprep.subr.mxu0 0.0
    %782 = vmatpush1.msra.mxu0 0.0
    %783 = vmatprep.subr.mxu0 0.0
    %784 = vmatpush1.msra.mxu0 0.0
    %785 = vmatprep.subr.mxu0 0.0
    %786 = vmatpush1.msra.mxu0 0.0
    %787 = vmatprep.subr.mxu0 0.0
    %788 = vmatpush1.msra.mxu0 0.0
    %789 = vmatprep.mubr.f32.mxu0 0.0
    %790 = vmatmul.mubr.f32.gmra.mrb[0].mxu0 %v714
    %v791 = vpop.f32.mrb[0].mxu0
    %v792 = vadd.f32 0.0, %v791
    %v793 = vpop.f32.mrb[0].mxu0
    %v794 = vadd.f32 0.0, %v793
    %795 = vmatprep.mubr.f32.mxu0 0.0
    %796 = vmatmul.mubr.f32.gmra.mrb[0].mxu0 %v717
    %v797 = vpop.f32.mrb[0].mxu0
    %v798 = vadd.f32 0.0, %v797
    %v799 = vpop.f32.mrb[0].mxu0
    %v800 = vadd.f32 0.0, %v799
    %801 = vdwg.mxu0
    %s802 = scalar_lea.vmem %s4, 16
    %v803 = vld [vmem:[%s802] sm:$0xff]
    %v804 = vld [vmem:[%s802 + $0x8] sm:$0x3]
    %v806 = vsel %vm712, %v803, 0
    %v809 = vsel %vm712, %v804, 0
    %811 = vmatprep.subr.mxu0 %v705
    %812 = vmatpush1.msra.mxu0 %v704
    %813 = vmatprep.subr.mxu0 %v707
    %814 = vmatpush1.msra.mxu0 %v706
    %815 = vmatprep.subr.mxu0 %v723
    %816 = vmatpush1.msra.mxu0 %v720
    %817 = vmatprep.subr.mxu0 0.0
    %818 = vmatpush1.msra.mxu0 0.0
    %819 = vmatprep.subr.mxu0 0.0
    %820 = vmatpush1.msra.mxu0 0.0
    %821 = vmatprep.subr.mxu0 0.0
    %822 = vmatpush1.msra.mxu0 0.0
    %823 = vmatprep.subr.mxu0 0.0
    %824 = vmatpush1.msra.mxu0 0.0
    %825 = vmatprep.subr.mxu0 0.0
    %826 = vmatpush1.msra.mxu0 0.0
    %827 = vmatprep.subr.mxu0 0.0
    %828 = vmatpush1.msra.mxu0 0.0
    %829 = vmatprep.subr.mxu0 0.0
    %830 = vmatpush1.msra.mxu0 0.0
    %831 = vmatprep.subr.mxu0 0.0
    %832 = vmatpush1.msra.mxu0 0.0
    %833 = vmatprep.subr.mxu0 0.0
    %834 = vmatpush1.msra.mxu0 0.0
    %835 = vmatprep.subr.mxu0 0.0
    %836 = vmatpush1.msra.mxu0 0.0
    %837 = vmatprep.subr.mxu0 0.0
    %838 = vmatpush1.msra.mxu0 0.0
    %839 = vmatprep.subr.mxu0 0.0
    %840 = vmatpush1.msra.mxu0 0.0
    %841 = vmatprep.subr.mxu0 0.0
    %842 = vmatpush1.msra.mxu0 0.0
    %843 = vmatprep.subr.mxu0 0.0
    %844 = vmatpush1.msra.mxu0 0.0
    %845 = vmatprep.subr.mxu0 0.0
    %846 = vmatpush1.msra.mxu0 0.0
    %847 = vmatprep.subr.mxu0 0.0
    %848 = vmatpush1.msra.mxu0 0.0
    %849 = vmatprep.subr.mxu0 0.0
    %850 = vmatpush1.msra.mxu0 0.0
    %851 = vmatprep.subr.mxu0 0.0
    %852 = vmatpush1.msra.mxu0 0.0
    %853 = vmatprep.subr.mxu0 0.0
    %854 = vmatpush1.msra.mxu0 0.0
    %855 = vmatprep.subr.mxu0 0.0
    %856 = vmatpush1.msra.mxu0 0.0
    %857 = vmatprep.subr.mxu0 0.0
    %858 = vmatpush1.msra.mxu0 0.0
    %859 = vmatprep.subr.mxu0 0.0
    %860 = vmatpush1.msra.mxu0 0.0
    %861 = vmatprep.subr.mxu0 0.0
    %862 = vmatpush1.msra.mxu0 0.0
    %863 = vmatprep.subr.mxu0 0.0
    %864 = vmatpush1.msra.mxu0 0.0
    %865 = vmatprep.subr.mxu0 0.0
    %866 = vmatpush1.msra.mxu0 0.0
    %867 = vmatprep.subr.mxu0 0.0
    %868 = vmatpush1.msra.mxu0 0.0
    %869 = vmatprep.subr.mxu0 0.0
    %870 = vmatpush1.msra.mxu0 0.0
    %871 = vmatprep.subr.mxu0 0.0
    %872 = vmatpush1.msra.mxu0 0.0
    %873 = vmatprep.subr.mxu0 0.0
    %874 = vmatpush1.msra.mxu0 0.0
    %875 = vmatprep.mubr.f32.mxu0 0.0
    %876 = vmatmul.mubr.f32.gmra.mrb[0].mxu0 %v806
    %v877 = vpop.f32.mrb[0].mxu0
    %v878 = vadd.f32 0.0, %v877
    %v879 = vpop.f32.mrb[0].mxu0
    %v880 = vadd.f32 0.0, %v879
    %881 = vmatprep.mubr.f32.mxu0 0.0
    %882 = vmatmul.mubr.f32.gmra.mrb[0].mxu0 %v809
    %v883 = vpop.f32.mrb[0].mxu0
    %v884 = vadd.f32 0.0, %v883
    %v885 = vpop.f32.mrb[0].mxu0
    %v886 = vadd.f32 0.0, %v885
    %887 = vdwg.mxu0
    %v888 = vmax.f32 %v792, %v878
    %v889 = vmax.f32 %v794, %v880
    %v890 = vmax.f32 %v798, %v884
    %v891 = vmax.f32 %v800, %v886
    %v892 = vld [vmem:[%s5] sm:$0xff]
    %v893 = vld [vmem:[%s5 + $0x8] sm:$0xff]
    %v894 = vld [vmem:[%s5 + $0x10] sm:$0xff]
    %v895 = vld [vmem:[%s5 + $0x18] sm:$0xff]
    %v896 = vld [vmem:[%s5 + $0x20] sm:$0xff]
    %v897 = vld [vmem:[%s5 + $0x28] sm:$0xff]
    %v898 = vld [vmem:[%s5 + $0x30] sm:$0xff]
    %v899 = vld [vmem:[%s5 + $0x38] sm:$0xff]
    %v900 = vld [vmem:[%s5 + $0x40] sm:$0xff]
    %v901 = vld [vmem:[%s5 + $0x48] sm:$0xff]
    %v902 = vld [vmem:[%s5 + $0x50] sm:$0xff]
    %v903 = vld [vmem:[%s5 + $0x58] sm:$0xff]
    %v904 = vld [vmem:[%s5 + $0x60] sm:$0xff]
    %v905 = vld [vmem:[%s5 + $0x68] sm:$0xff]
    %v906 = vld [vmem:[%s5 + $0x70] sm:$0xff]
    %v907 = vld [vmem:[%s5 + $0x78] sm:$0xff]
    %v908 = vld [vmem:[%s5 + $0x80] sm:$0xff]
    %v909 = vld [vmem:[%s5 + $0x88] sm:$0xff]
    %v910 = vld [vmem:[%s5 + $0x90] sm:$0xff]
    %v911 = vld [vmem:[%s5 + $0x98] sm:$0xff]
    %vm912 = vcmask 261120
    %v914 = vsel %vm912, %v889, 0
    %v917 = vsel %vm912, %v891, 0
    %919 = vmatprep.subr.mxu0 0.0
    %920 = vmatpush1.msra.mxu0 %v892
    %921 = vmatprep.subr.mxu0 0.0
    %922 = vmatpush1.msra.mxu0 %v893
    %923 = vmatprep.subr.mxu0 0.0
    %924 = vmatpush1.msra.mxu0 %v894
    %925 = vmatprep.subr.mxu0 0.0
    %926 = vmatpush1.msra.mxu0 %v895
    %927 = vmatprep.subr.mxu0 0.0
    %928 = vmatpush1.msra.mxu0 %v896
    %929 = vmatprep.subr.mxu0 0.0
    %930 = vmatpush1.msra.mxu0 %v897
    %931 = vmatprep.subr.mxu0 0.0
    %932 = vmatpush1.msra.mxu0 %v898
    %933 = vmatprep.subr.mxu0 0.0
    %934 = vmatpush1.msra.mxu0 %v899
    %935 = vmatprep.subr.mxu0 0.0
    %936 = vmatpush1.msra.mxu0 %v900
    %937 = vmatprep.subr.mxu0 0.0
    %938 = vmatpush1.msra.mxu0 %v901
    %939 = vmatprep.subr.mxu0 0.0
    %940 = vmatpush1.msra.mxu0 %v902
    %941 = vmatprep.subr.mxu0 0.0
    %942 = vmatpush1.msra.mxu0 %v903
    %943 = vmatprep.subr.mxu0 0.0
    %944 = vmatpush1.msra.mxu0 %v904
    %945 = vmatprep.subr.mxu0 0.0
    %946 = vmatpush1.msra.mxu0 %v905
    %947 = vmatprep.subr.mxu0 0.0
    %948 = vmatpush1.msra.mxu0 %v906
    %949 = vmatprep.subr.mxu0 0.0
    %950 = vmatpush1.msra.mxu0 %v907
    %951 = vmatprep.subr.mxu0 0.0
    %952 = vmatpush1.msra.mxu0 %v908
    %953 = vmatprep.subr.mxu0 0.0
    %954 = vmatpush1.msra.mxu0 %v909
    %955 = vmatprep.subr.mxu0 0.0
    %956 = vmatpush1.msra.mxu0 %v910
    %957 = vmatprep.subr.mxu0 0.0
    %958 = vmatpush1.msra.mxu0 %v911
    %959 = vmatprep.subr.mxu0 0.0
    %960 = vmatpush1.msra.mxu0 0.0
    %961 = vmatprep.subr.mxu0 0.0
    %962 = vmatpush1.msra.mxu0 0.0
    %963 = vmatprep.subr.mxu0 0.0
    %964 = vmatpush1.msra.mxu0 0.0
    %965 = vmatprep.subr.mxu0 0.0
    %966 = vmatpush1.msra.mxu0 0.0
    %967 = vmatprep.subr.mxu0 0.0
    %968 = vmatpush1.msra.mxu0 0.0
    %969 = vmatprep.subr.mxu0 0.0
    %970 = vmatpush1.msra.mxu0 0.0
    %971 = vmatprep.subr.mxu0 0.0
    %972 = vmatpush1.msra.mxu0 0.0
    %973 = vmatprep.subr.mxu0 0.0
    %974 = vmatpush1.msra.mxu0 0.0
    %975 = vmatprep.subr.mxu0 0.0
    %976 = vmatpush1.msra.mxu0 0.0
    %977 = vmatprep.subr.mxu0 0.0
    %978 = vmatpush1.msra.mxu0 0.0
    %979 = vmatprep.subr.mxu0 0.0
    %980 = vmatpush1.msra.mxu0 0.0
    %981 = vmatprep.subr.mxu0 0.0
    %982 = vmatpush1.msra.mxu0 0.0
    %983 = vmatprep.mubr.f32.mxu0 %v914
    %984 = vmatmul.mubr.f32.gmra.mrb[0].mxu0 %v888
    %v985 = vpop.f32.mrb[0].mxu0
    %v986 = vadd.f32 0.0, %v985
    %v987 = vpop.f32.mrb[0].mxu0
    %988 = vmatprep.mubr.f32.mxu0 %v917
    %989 = vmatmul.mubr.f32.gmra.mrb[0].mxu0 %v890
    %v990 = vpop.f32.mrb[0].mxu0
    %v991 = vadd.f32 0.0, %v990
    %v992 = vpop.f32.mrb[0].mxu0
    %993 = vdwg.mxu0
    %s994 = scalar_lea.vmem %s5, 160
    %v995 = vld [vmem:[%s994] sm:$0xff]
    %v996 = vld [vmem:[%s994 + $0x8] sm:$0xff]
    %v997 = vld [vmem:[%s994 + $0x10] sm:$0xff]
    %v998 = vld [vmem:[%s994 + $0x18] sm:$0xff]
    %v999 = vld [vmem:[%s994 + $0x20] sm:$0xff]
    %v1000 = vld [vmem:[%s994 + $0x28] sm:$0xff]
    %v1001 = vld [vmem:[%s994 + $0x30] sm:$0xff]
    %v1002 = vld [vmem:[%s994 + $0x38] sm:$0xff]
    %v1003 = vld [vmem:[%s994 + $0x40] sm:$0xff]
    %v1004 = vld [vmem:[%s994 + $0x48] sm:$0xff]
    %v1005 = vld [vmem:[%s994 + $0x50] sm:$0xff]
    %v1006 = vld [vmem:[%s994 + $0x58] sm:$0xff]
    %v1007 = vld [vmem:[%s994 + $0x60] sm:$0xff]
    %v1008 = vld [vmem:[%s994 + $0x68] sm:$0xff]
    %v1009 = vld [vmem:[%s994 + $0x70] sm:$0xff]
    %v1010 = vld [vmem:[%s994 + $0x78] sm:$0xff]
    %v1011 = vld [vmem:[%s994 + $0x80] sm:$0xff]
    %v1012 = vld [vmem:[%s994 + $0x88] sm:$0xff]
    %v1013 = vld [vmem:[%s994 + $0x90] sm:$0xff]
    %v1014 = vld [vmem:[%s994 + $0x98] sm:$0xff]
    %1015 = vmatprep.subr.mxu0 0.0
    %1016 = vmatpush1.msra.mxu0 %v995
    %1017 = vmatprep.subr.mxu0 0.0
    %1018 = vmatpush1.msra.mxu0 %v996
    %1019 = vmatprep.subr.mxu0 0.0
    %1020 = vmatpush1.msra.mxu0 %v997
    %1021 = vmatprep.subr.mxu0 0.0
    %1022 = vmatpush1.msra.mxu0 %v998
    %1023 = vmatprep.subr.mxu0 0.0
    %1024 = vmatpush1.msra.mxu0 %v999
    %1025 = vmatprep.subr.mxu0 0.0
    %1026 = vmatpush1.msra.mxu0 %v1000
    %1027 = vmatprep.subr.mxu0 0.0
    %1028 = vmatpush1.msra.mxu0 %v1001
    %1029 = vmatprep.subr.mxu0 0.0
    %1030 = vmatpush1.msra.mxu0 %v1002
    %1031 = vmatprep.subr.mxu0 0.0
    %1032 = vmatpush1.msra.mxu0 %v1003
    %1033 = vmatprep.subr.mxu0 0.0
    %1034 = vmatpush1.msra.mxu0 %v1004
    %1035 = vmatprep.subr.mxu0 0.0
    %1036 = vmatpush1.msra.mxu0 %v1005
    %1037 = vmatprep.subr.mxu0 0.0
    %1038 = vmatpush1.msra.mxu0 %v1006
    %1039 = vmatprep.subr.mxu0 0.0
    %1040 = vmatpush1.msra.mxu0 %v1007
    %1041 = vmatprep.subr.mxu0 0.0
    %1042 = vmatpush1.msra.mxu0 %v1008
    %1043 = vmatprep.subr.mxu0 0.0
    %1044 = vmatpush1.msra.mxu0 %v1009
    %1045 = vmatprep.subr.mxu0 0.0
    %1046 = vmatpush1.msra.mxu0 %v1010
    %1047 = vmatprep.subr.mxu0 0.0
    %1048 = vmatpush1.msra.mxu0 %v1011
    %1049 = vmatprep.subr.mxu0 0.0
    %1050 = vmatpush1.msra.mxu0 %v1012
    %1051 = vmatprep.subr.mxu0 0.0
    %1052 = vmatpush1.msra.mxu0 %v1013
    %1053 = vmatprep.subr.mxu0 0.0
    %1054 = vmatpush1.msra.mxu0 %v1014
    %1055 = vmatprep.subr.mxu0 0.0
    %1056 = vmatpush1.msra.mxu0 0.0
    %1057 = vmatprep.subr.mxu0 0.0
    %1058 = vmatpush1.msra.mxu0 0.0
    %1059 = vmatprep.subr.mxu0 0.0
    %1060 = vmatpush1.msra.mxu0 0.0
    %1061 = vmatprep.subr.mxu0 0.0
    %1062 = vmatpush1.msra.mxu0 0.0
    %1063 = vmatprep.subr.mxu0 0.0
    %1064 = vmatpush1.msra.mxu0 0.0
    %1065 = vmatprep.subr.mxu0 0.0
    %1066 = vmatpush1.msra.mxu0 0.0
    %1067 = vmatprep.subr.mxu0 0.0
    %1068 = vmatpush1.msra.mxu0 0.0
    %1069 = vmatprep.subr.mxu0 0.0
    %1070 = vmatpush1.msra.mxu0 0.0
    %1071 = vmatprep.subr.mxu0 0.0
    %1072 = vmatpush1.msra.mxu0 0.0
    %1073 = vmatprep.subr.mxu0 0.0
    %1074 = vmatpush1.msra.mxu0 0.0
    %1075 = vmatprep.subr.mxu0 0.0
    %1076 = vmatpush1.msra.mxu0 0.0
    %1077 = vmatprep.subr.mxu0 0.0
    %1078 = vmatpush1.msra.mxu0 0.0
    %1079 = vmatprep.mubr.f32.mxu0 %v914
    %1080 = vmatmul.mubr.f32.gmra.mrb[0].mxu0 %v888
    %v1081 = vpop.f32.mrb[0].mxu0
    %v1082 = vadd.f32 0.0, %v1081
    %v1083 = vpop.f32.mrb[0].mxu0
    %1084 = vmatprep.mubr.f32.mxu0 %v917
    %1085 = vmatmul.mubr.f32.gmra.mrb[0].mxu0 %v890
    %v1086 = vpop.f32.mrb[0].mxu0
    %v1087 = vadd.f32 0.0, %v1086
    %v1088 = vpop.f32.mrb[0].mxu0
    %1089 = vdwg.mxu0
    %v1090 = vmax.f32 %v986, %v1082
    %v1091 = vmax.f32 %v991, %v1087
    %v1092 = vld [vmem:[%s8] sm:$0x1]
    %v1093 = vld [vmem:[%s6] sm:$0x3f]
    %vm1094 = vcmask 80896
    %v1096 = vsel %vm1094, %v1093, 0
    %vm1098 = vcmask 1041408
    %v1100 = vsel %vm1098, %v1091, 0
    %1102 = vmatprep.subr.mxu0 0.0
    %1103 = vmatpush1.msra.mxu0 %v1090
    %1104 = vmatprep.subr.mxu0 0.0
    %1105 = vmatpush1.msra.mxu0 %v1100
    %1106 = vmatprep.subr.mxu0 0.0
    %1107 = vmatpush1.msra.mxu0 0.0
    %1108 = vmatprep.subr.mxu0 0.0
    %1109 = vmatpush1.msra.mxu0 0.0
    %1110 = vmatprep.subr.mxu0 0.0
    %1111 = vmatpush1.msra.mxu0 0.0
    %1112 = vmatprep.subr.mxu0 0.0
    %1113 = vmatpush1.msra.mxu0 0.0
    %1114 = vmatprep.subr.mxu0 0.0
    %1115 = vmatpush1.msra.mxu0 0.0
    %1116 = vmatprep.subr.mxu0 0.0
    %1117 = vmatpush1.msra.mxu0 0.0
    %1118 = vmatprep.subr.mxu0 0.0
    %1119 = vmatpush1.msra.mxu0 0.0
    %1120 = vmatprep.subr.mxu0 0.0
    %1121 = vmatpush1.msra.mxu0 0.0
    %1122 = vmatprep.subr.mxu0 0.0
    %1123 = vmatpush1.msra.mxu0 0.0
    %1124 = vmatprep.subr.mxu0 0.0
    %1125 = vmatpush1.msra.mxu0 0.0
    %1126 = vmatprep.subr.mxu0 0.0
    %1127 = vmatpush1.msra.mxu0 0.0
    %1128 = vmatprep.subr.mxu0 0.0
    %1129 = vmatpush1.msra.mxu0 0.0
    %1130 = vmatprep.subr.mxu0 0.0
    %1131 = vmatpush1.msra.mxu0 0.0
    %1132 = vmatprep.subr.mxu0 0.0
    %1133 = vmatpush1.msra.mxu0 0.0
    %1134 = vmatprep.subr.mxu0 0.0
    %1135 = vmatpush1.msra.mxu0 0.0
    %1136 = vmatprep.subr.mxu0 0.0
    %1137 = vmatpush1.msra.mxu0 0.0
    %1138 = vmatprep.subr.mxu0 0.0
    %1139 = vmatpush1.msra.mxu0 0.0
    %1140 = vmatprep.subr.mxu0 0.0
    %1141 = vmatpush1.msra.mxu0 0.0
    %1142 = vmatprep.subr.mxu0 0.0
    %1143 = vmatpush1.msra.mxu0 0.0
    %1144 = vmatprep.subr.mxu0 0.0
    %1145 = vmatpush1.msra.mxu0 0.0
    %1146 = vmatprep.subr.mxu0 0.0
    %1147 = vmatpush1.msra.mxu0 0.0
    %1148 = vmatprep.subr.mxu0 0.0
    %1149 = vmatpush1.msra.mxu0 0.0
    %1150 = vmatprep.subr.mxu0 0.0
    %1151 = vmatpush1.msra.mxu0 0.0
    %1152 = vmatprep.subr.mxu0 0.0
    %1153 = vmatpush1.msra.mxu0 0.0
    %1154 = vmatprep.subr.mxu0 0.0
    %1155 = vmatpush1.msra.mxu0 0.0
    %1156 = vmatprep.subr.mxu0 0.0
    %1157 = vmatpush1.msra.mxu0 0.0
    %1158 = vmatprep.subr.mxu0 0.0
    %1159 = vmatpush1.msra.mxu0 0.0
    %1160 = vmatprep.subr.mxu0 0.0
    %1161 = vmatpush1.msra.mxu0 0.0
    %1162 = vmatprep.subr.mxu0 0.0
    %1163 = vmatpush1.msra.mxu0 0.0
    %1164 = vmatprep.subr.mxu0 0.0
    %1165 = vmatpush1.msra.mxu0 0.0
    %1166 = vmatprep.mubr.f32.mxu0 0.0
    %1167 = vmatmul.mubr.f32.gmra.mrb[0].mxu0 %v1096
    %v1168 = vpop.f32.mrb[0].mxu0
    %v1169 = vadd.f32 0.0, %v1168
    %v1170 = vpop.f32.mrb[0].mxu0
    %1171 = vdwg.mxu0
    %v1172 = vld [vmem:[%s7] sm:$0xff]
    %v1173 = vld [vmem:[%s7 + $0x8] sm:$0xff]
    %v1174 = vld [vmem:[%s7 + $0x10] sm:$0xff]
    %v1175 = vld [vmem:[%s7 + $0x18] sm:$0xff]
    %v1176 = vld [vmem:[%s7 + $0x20] sm:$0xff]
    %v1177 = vld [vmem:[%s7 + $0x28] sm:$0xff]
    %v1178 = vld [vmem:[%s7 + $0x30] sm:$0xff]
    %v1179 = vld [vmem:[%s7 + $0x38] sm:$0xff]
    %v1180 = vld [vmem:[%s7 + $0x40] sm:$0xff]
    %v1181 = vld [vmem:[%s7 + $0x48] sm:$0xff]
    %vm1182 = vcmask 654336
    %v1184 = vsel %vm1182, %v1169, 0
    %1186 = vmatprep.subr.mxu0 0.0
    %1187 = vmatpush1.msra.mxu0 %v1172
    %1188 = vmatprep.subr.mxu0 0.0
    %1189 = vmatpush1.msra.mxu0 %v1173
    %1190 = vmatprep.subr.mxu0 0.0
    %1191 = vmatpush1.msra.mxu0 %v1174
    %1192 = vmatprep.subr.mxu0 0.0
    %1193 = vmatpush1.msra.mxu0 %v1175
    %1194 = vmatprep.subr.mxu0 0.0
    %1195 = vmatpush1.msra.mxu0 %v1176
    %1196 = vmatprep.subr.mxu0 0.0
    %1197 = vmatpush1.msra.mxu0 %v1177
    %1198 = vmatprep.subr.mxu0 0.0
    %1199 = vmatpush1.msra.mxu0 %v1178
    %1200 = vmatprep.subr.mxu0 0.0
    %1201 = vmatpush1.msra.mxu0 %v1179
    %1202 = vmatprep.subr.mxu0 0.0
    %1203 = vmatpush1.msra.mxu0 %v1180
    %1204 = vmatprep.subr.mxu0 0.0
    %1205 = vmatpush1.msra.mxu0 %v1181
    %1206 = vmatprep.subr.mxu0 0.0
    %1207 = vmatpush1.msra.mxu0 0.0
    %1208 = vmatprep.subr.mxu0 0.0
    %1209 = vmatpush1.msra.mxu0 0.0
    %1210 = vmatprep.subr.mxu0 0.0
    %1211 = vmatpush1.msra.mxu0 0.0
    %1212 = vmatprep.subr.mxu0 0.0
    %1213 = vmatpush1.msra.mxu0 0.0
    %1214 = vmatprep.subr.mxu0 0.0
    %1215 = vmatpush1.msra.mxu0 0.0
    %1216 = vmatprep.subr.mxu0 0.0
    %1217 = vmatpush1.msra.mxu0 0.0
    %1218 = vmatprep.subr.mxu0 0.0
    %1219 = vmatpush1.msra.mxu0 0.0
    %1220 = vmatprep.subr.mxu0 0.0
    %1221 = vmatpush1.msra.mxu0 0.0
    %1222 = vmatprep.subr.mxu0 0.0
    %1223 = vmatpush1.msra.mxu0 0.0
    %1224 = vmatprep.subr.mxu0 0.0
    %1225 = vmatpush1.msra.mxu0 0.0
    %1226 = vmatprep.subr.mxu0 0.0
    %1227 = vmatpush1.msra.mxu0 0.0
    %1228 = vmatprep.subr.mxu0 0.0
    %1229 = vmatpush1.msra.mxu0 0.0
    %1230 = vmatprep.subr.mxu0 0.0
    %1231 = vmatpush1.msra.mxu0 0.0
    %1232 = vmatprep.subr.mxu0 0.0
    %1233 = vmatpush1.msra.mxu0 0.0
    %1234 = vmatprep.subr.mxu0 0.0
    %1235 = vmatpush1.msra.mxu0 0.0
    %1236 = vmatprep.subr.mxu0 0.0
    %1237 = vmatpush1.msra.mxu0 0.0
    %1238 = vmatprep.subr.mxu0 0.0
    %1239 = vmatpush1.msra.mxu0 0.0
    %1240 = vmatprep.subr.mxu0 0.0
    %1241 = vmatpush1.msra.mxu0 0.0
    %1242 = vmatprep.subr.mxu0 0.0
    %1243 = vmatpush1.msra.mxu0 0.0
    %1244 = vmatprep.subr.mxu0 0.0
    %1245 = vmatpush1.msra.mxu0 0.0
    %1246 = vmatprep.subr.mxu0 0.0
    %1247 = vmatpush1.msra.mxu0 0.0
    %1248 = vmatprep.subr.mxu0 0.0
    %1249 = vmatpush1.msra.mxu0 0.0
    %1250 = vmatprep.mubr.f32.mxu0 0.0
    %1251 = vmatmul.mubr.f32.gmra.mrb[0].mxu0 %v1184
    %v1252 = vpop.f32.mrb[0].mxu0
    %v1253 = vadd.f32 0.0, %v1252
    %v1254 = vpop.f32.mrb[0].mxu0
    %1255 = vdwg.mxu0
    %v1257 = vlaneseq
    %v1258 = vshrl.u32 %v1257, 7
    %v1259 = vsub.s32 0, %v1258
    %v1260 = vrot.slane %v1092, %v1259
    %v1262 = vadd.f32 %v1260, %v1253
    %s1263 = scalar_lea.vmem %s6, 8
    %v1264 = vld [vmem:[%s1263] sm:$0x3f]
    %v1266 = vsel %vm1094, %v1264, 0
    %1268 = vmatprep.subr.mxu0 0.0
    %1269 = vmatpush1.msra.mxu0 %v1090
    %1270 = vmatprep.subr.mxu0 0.0
    %1271 = vmatpush1.msra.mxu0 %v1100
    %1272 = vmatprep.subr.mxu0 0.0
    %1273 = vmatpush1.msra.mxu0 0.0
    %1274 = vmatprep.subr.mxu0 0.0
    %1275 = vmatpush1.msra.mxu0 0.0
    %1276 = vmatprep.subr.mxu0 0.0
    %1277 = vmatpush1.msra.mxu0 0.0
    %1278 = vmatprep.subr.mxu0 0.0
    %1279 = vmatpush1.msra.mxu0 0.0
    %1280 = vmatprep.subr.mxu0 0.0
    %1281 = vmatpush1.msra.mxu0 0.0
    %1282 = vmatprep.subr.mxu0 0.0
    %1283 = vmatpush1.msra.mxu0 0.0
    %1284 = vmatprep.subr.mxu0 0.0
    %1285 = vmatpush1.msra.mxu0 0.0
    %1286 = vmatprep.subr.mxu0 0.0
    %1287 = vmatpush1.msra.mxu0 0.0
    %1288 = vmatprep.subr.mxu0 0.0
    %1289 = vmatpush1.msra.mxu0 0.0
    %1290 = vmatprep.subr.mxu0 0.0
    %1291 = vmatpush1.msra.mxu0 0.0
    %1292 = vmatprep.subr.mxu0 0.0
    %1293 = vmatpush1.msra.mxu0 0.0
    %1294 = vmatprep.subr.mxu0 0.0
    %1295 = vmatpush1.msra.mxu0 0.0
    %1296 = vmatprep.subr.mxu0 0.0
    %1297 = vmatpush1.msra.mxu0 0.0
    %1298 = vmatprep.subr.mxu0 0.0
    %1299 = vmatpush1.msra.mxu0 0.0
    %1300 = vmatprep.subr.mxu0 0.0
    %1301 = vmatpush1.msra.mxu0 0.0
    %1302 = vmatprep.subr.mxu0 0.0
    %1303 = vmatpush1.msra.mxu0 0.0
    %1304 = vmatprep.subr.mxu0 0.0
    %1305 = vmatpush1.msra.mxu0 0.0
    %1306 = vmatprep.subr.mxu0 0.0
    %1307 = vmatpush1.msra.mxu0 0.0
    %1308 = vmatprep.subr.mxu0 0.0
    %1309 = vmatpush1.msra.mxu0 0.0
    %1310 = vmatprep.subr.mxu0 0.0
    %1311 = vmatpush1.msra.mxu0 0.0
    %1312 = vmatprep.subr.mxu0 0.0
    %1313 = vmatpush1.msra.mxu0 0.0
    %1314 = vmatprep.subr.mxu0 0.0
    %1315 = vmatpush1.msra.mxu0 0.0
    %1316 = vmatprep.subr.mxu0 0.0
    %1317 = vmatpush1.msra.mxu0 0.0
    %1318 = vmatprep.subr.mxu0 0.0
    %1319 = vmatpush1.msra.mxu0 0.0
    %1320 = vmatprep.subr.mxu0 0.0
    %1321 = vmatpush1.msra.mxu0 0.0
    %1322 = vmatprep.subr.mxu0 0.0
    %1323 = vmatpush1.msra.mxu0 0.0
    %1324 = vmatprep.subr.mxu0 0.0
    %1325 = vmatpush1.msra.mxu0 0.0
    %1326 = vmatprep.subr.mxu0 0.0
    %1327 = vmatpush1.msra.mxu0 0.0
    %1328 = vmatprep.subr.mxu0 0.0
    %1329 = vmatpush1.msra.mxu0 0.0
    %1330 = vmatprep.subr.mxu0 0.0
    %1331 = vmatpush1.msra.mxu0 0.0
    %1332 = vmatprep.mubr.f32.mxu0 0.0
    %1333 = vmatmul.mubr.f32.gmra.mrb[0].mxu0 %v1266
    %v1334 = vpop.f32.mrb[0].mxu0
    %v1335 = vadd.f32 0.0, %v1334
    %v1336 = vpop.f32.mrb[0].mxu0
    %1337 = vdwg.mxu0
    %s1338 = scalar_lea.vmem %s7, 80
    %v1339 = vld [vmem:[%s1338] sm:$0xff]
    %v1340 = vld [vmem:[%s1338 + $0x8] sm:$0xff]
    %v1341 = vld [vmem:[%s1338 + $0x10] sm:$0xff]
    %v1342 = vld [vmem:[%s1338 + $0x18] sm:$0xff]
    %v1343 = vld [vmem:[%s1338 + $0x20] sm:$0xff]
    %v1344 = vld [vmem:[%s1338 + $0x28] sm:$0xff]
    %v1345 = vld [vmem:[%s1338 + $0x30] sm:$0xff]
    %v1346 = vld [vmem:[%s1338 + $0x38] sm:$0xff]
    %v1347 = vld [vmem:[%s1338 + $0x40] sm:$0xff]
    %v1348 = vld [vmem:[%s1338 + $0x48] sm:$0xff]
    %v1350 = vsel %vm1182, %v1335, 0
    %1352 = vmatprep.subr.mxu0 0.0
    %1353 = vmatpush1.msra.mxu0 %v1339
    %1354 = vmatprep.subr.mxu0 0.0
    %1355 = vmatpush1.msra.mxu0 %v1340
    %1356 = vmatprep.subr.mxu0 0.0
    %1357 = vmatpush1.msra.mxu0 %v1341
    %1358 = vmatprep.subr.mxu0 0.0
    %1359 = vmatpush1.msra.mxu0 %v1342
    %1360 = vmatprep.subr.mxu0 0.0
    %1361 = vmatpush1.msra.mxu0 %v1343
    %1362 = vmatprep.subr.mxu0 0.0
    %1363 = vmatpush1.msra.mxu0 %v1344
    %1364 = vmatprep.subr.mxu0 0.0
    %1365 = vmatpush1.msra.mxu0 %v1345
    %1366 = vmatprep.subr.mxu0 0.0
    %1367 = vmatpush1.msra.mxu0 %v1346
    %1368 = vmatprep.subr.mxu0 0.0
    %1369 = vmatpush1.msra.mxu0 %v1347
    %1370 = vmatprep.subr.mxu0 0.0
    %1371 = vmatpush1.msra.mxu0 %v1348
    %1372 = vmatprep.subr.mxu0 0.0
    %1373 = vmatpush1.msra.mxu0 0.0
    %1374 = vmatprep.subr.mxu0 0.0
    %1375 = vmatpush1.msra.mxu0 0.0
    %1376 = vmatprep.subr.mxu0 0.0
    %1377 = vmatpush1.msra.mxu0 0.0
    %1378 = vmatprep.subr.mxu0 0.0
    %1379 = vmatpush1.msra.mxu0 0.0
    %1380 = vmatprep.subr.mxu0 0.0
    %1381 = vmatpush1.msra.mxu0 0.0
    %1382 = vmatprep.subr.mxu0 0.0
    %1383 = vmatpush1.msra.mxu0 0.0
    %1384 = vmatprep.subr.mxu0 0.0
    %1385 = vmatpush1.msra.mxu0 0.0
    %1386 = vmatprep.subr.mxu0 0.0
    %1387 = vmatpush1.msra.mxu0 0.0
    %1388 = vmatprep.subr.mxu0 0.0
    %1389 = vmatpush1.msra.mxu0 0.0
    %1390 = vmatprep.subr.mxu0 0.0
    %1391 = vmatpush1.msra.mxu0 0.0
    %1392 = vmatprep.subr.mxu0 0.0
    %1393 = vmatpush1.msra.mxu0 0.0
    %1394 = vmatprep.subr.mxu0 0.0
    %1395 = vmatpush1.msra.mxu0 0.0
    %1396 = vmatprep.subr.mxu0 0.0
    %1397 = vmatpush1.msra.mxu0 0.0
    %1398 = vmatprep.subr.mxu0 0.0
    %1399 = vmatpush1.msra.mxu0 0.0
    %1400 = vmatprep.subr.mxu0 0.0
    %1401 = vmatpush1.msra.mxu0 0.0
    %1402 = vmatprep.subr.mxu0 0.0
    %1403 = vmatpush1.msra.mxu0 0.0
    %1404 = vmatprep.subr.mxu0 0.0
    %1405 = vmatpush1.msra.mxu0 0.0
    %1406 = vmatprep.subr.mxu0 0.0
    %1407 = vmatpush1.msra.mxu0 0.0
    %1408 = vmatprep.subr.mxu0 0.0
    %1409 = vmatpush1.msra.mxu0 0.0
    %1410 = vmatprep.subr.mxu0 0.0
    %1411 = vmatpush1.msra.mxu0 0.0
    %1412 = vmatprep.subr.mxu0 0.0
    %1413 = vmatpush1.msra.mxu0 0.0
    %1414 = vmatprep.subr.mxu0 0.0
    %1415 = vmatpush1.msra.mxu0 0.0
    %1416 = vmatprep.mubr.f32.mxu0 0.0
    %1417 = vmatmul.mubr.f32.gmra.mrb[0].mxu0 %v1350
    %v1418 = vpop.f32.mrb[0].mxu0
    %v1419 = vadd.f32 0.0, %v1418
    %v1420 = vpop.f32.mrb[0].mxu0
    %1421 = vdwg.mxu0
    %v1422 = vadd.f32 %v1262, %v1419
    %s1423 = scalar_lea.vmem %s6, 16
    %v1424 = vld [vmem:[%s1423] sm:$0x3f]
    %v1426 = vsel %vm1094, %v1424, 0
    %1428 = vmatprep.subr.mxu0 0.0
    %1429 = vmatpush1.msra.mxu0 %v1090
    %1430 = vmatprep.subr.mxu0 0.0
    %1431 = vmatpush1.msra.mxu0 %v1100
    %1432 = vmatprep.subr.mxu0 0.0
    %1433 = vmatpush1.msra.mxu0 0.0
    %1434 = vmatprep.subr.mxu0 0.0
    %1435 = vmatpush1.msra.mxu0 0.0
    %1436 = vmatprep.subr.mxu0 0.0
    %1437 = vmatpush1.msra.mxu0 0.0
    %1438 = vmatprep.subr.mxu0 0.0
    %1439 = vmatpush1.msra.mxu0 0.0
    %1440 = vmatprep.subr.mxu0 0.0
    %1441 = vmatpush1.msra.mxu0 0.0
    %1442 = vmatprep.subr.mxu0 0.0
    %1443 = vmatpush1.msra.mxu0 0.0
    %1444 = vmatprep.subr.mxu0 0.0
    %1445 = vmatpush1.msra.mxu0 0.0
    %1446 = vmatprep.subr.mxu0 0.0
    %1447 = vmatpush1.msra.mxu0 0.0
    %1448 = vmatprep.subr.mxu0 0.0
    %1449 = vmatpush1.msra.mxu0 0.0
    %1450 = vmatprep.subr.mxu0 0.0
    %1451 = vmatpush1.msra.mxu0 0.0
    %1452 = vmatprep.subr.mxu0 0.0
    %1453 = vmatpush1.msra.mxu0 0.0
    %1454 = vmatprep.subr.mxu0 0.0
    %1455 = vmatpush1.msra.mxu0 0.0
    %1456 = vmatprep.subr.mxu0 0.0
    %1457 = vmatpush1.msra.mxu0 0.0
    %1458 = vmatprep.subr.mxu0 0.0
    %1459 = vmatpush1.msra.mxu0 0.0
    %1460 = vmatprep.subr.mxu0 0.0
    %1461 = vmatpush1.msra.mxu0 0.0
    %1462 = vmatprep.subr.mxu0 0.0
    %1463 = vmatpush1.msra.mxu0 0.0
    %1464 = vmatprep.subr.mxu0 0.0
    %1465 = vmatpush1.msra.mxu0 0.0
    %1466 = vmatprep.subr.mxu0 0.0
    %1467 = vmatpush1.msra.mxu0 0.0
    %1468 = vmatprep.subr.mxu0 0.0
    %1469 = vmatpush1.msra.mxu0 0.0
    %1470 = vmatprep.subr.mxu0 0.0
    %1471 = vmatpush1.msra.mxu0 0.0
    %1472 = vmatprep.subr.mxu0 0.0
    %1473 = vmatpush1.msra.mxu0 0.0
    %1474 = vmatprep.subr.mxu0 0.0
    %1475 = vmatpush1.msra.mxu0 0.0
    %1476 = vmatprep.subr.mxu0 0.0
    %1477 = vmatpush1.msra.mxu0 0.0
    %1478 = vmatprep.subr.mxu0 0.0
    %1479 = vmatpush1.msra.mxu0 0.0
    %1480 = vmatprep.subr.mxu0 0.0
    %1481 = vmatpush1.msra.mxu0 0.0
    %1482 = vmatprep.subr.mxu0 0.0
    %1483 = vmatpush1.msra.mxu0 0.0
    %1484 = vmatprep.subr.mxu0 0.0
    %1485 = vmatpush1.msra.mxu0 0.0
    %1486 = vmatprep.subr.mxu0 0.0
    %1487 = vmatpush1.msra.mxu0 0.0
    %1488 = vmatprep.subr.mxu0 0.0
    %1489 = vmatpush1.msra.mxu0 0.0
    %1490 = vmatprep.subr.mxu0 0.0
    %1491 = vmatpush1.msra.mxu0 0.0
    %1492 = vmatprep.mubr.f32.mxu0 0.0
    %1493 = vmatmul.mubr.f32.gmra.mrb[0].mxu0 %v1426
    %v1494 = vpop.f32.mrb[0].mxu0
    %v1495 = vadd.f32 0.0, %v1494
    %v1496 = vpop.f32.mrb[0].mxu0
    %1497 = vdwg.mxu0
    %s1498 = scalar_lea.vmem %s7, 160
    %v1499 = vld [vmem:[%s1498] sm:$0xff]
    %v1500 = vld [vmem:[%s1498 + $0x8] sm:$0xff]
    %v1501 = vld [vmem:[%s1498 + $0x10] sm:$0xff]
    %v1502 = vld [vmem:[%s1498 + $0x18] sm:$0xff]
    %v1503 = vld [vmem:[%s1498 + $0x20] sm:$0xff]
    %v1504 = vld [vmem:[%s1498 + $0x28] sm:$0xff]
    %v1505 = vld [vmem:[%s1498 + $0x30] sm:$0xff]
    %v1506 = vld [vmem:[%s1498 + $0x38] sm:$0xff]
    %v1507 = vld [vmem:[%s1498 + $0x40] sm:$0xff]
    %v1508 = vld [vmem:[%s1498 + $0x48] sm:$0xff]
    %v1510 = vsel %vm1182, %v1495, 0
    %1512 = vmatprep.subr.mxu0 0.0
    %1513 = vmatpush1.msra.mxu0 %v1499
    %1514 = vmatprep.subr.mxu0 0.0
    %1515 = vmatpush1.msra.mxu0 %v1500
    %1516 = vmatprep.subr.mxu0 0.0
    %1517 = vmatpush1.msra.mxu0 %v1501
    %1518 = vmatprep.subr.mxu0 0.0
    %1519 = vmatpush1.msra.mxu0 %v1502
    %1520 = vmatprep.subr.mxu0 0.0
    %1521 = vmatpush1.msra.mxu0 %v1503
    %1522 = vmatprep.subr.mxu0 0.0
    %1523 = vmatpush1.msra.mxu0 %v1504
    %1524 = vmatprep.subr.mxu0 0.0
    %1525 = vmatpush1.msra.mxu0 %v1505
    %1526 = vmatprep.subr.mxu0 0.0
    %1527 = vmatpush1.msra.mxu0 %v1506
    %1528 = vmatprep.subr.mxu0 0.0
    %1529 = vmatpush1.msra.mxu0 %v1507
    %1530 = vmatprep.subr.mxu0 0.0
    %1531 = vmatpush1.msra.mxu0 %v1508
    %1532 = vmatprep.subr.mxu0 0.0
    %1533 = vmatpush1.msra.mxu0 0.0
    %1534 = vmatprep.subr.mxu0 0.0
    %1535 = vmatpush1.msra.mxu0 0.0
    %1536 = vmatprep.subr.mxu0 0.0
    %1537 = vmatpush1.msra.mxu0 0.0
    %1538 = vmatprep.subr.mxu0 0.0
    %1539 = vmatpush1.msra.mxu0 0.0
    %1540 = vmatprep.subr.mxu0 0.0
    %1541 = vmatpush1.msra.mxu0 0.0
    %1542 = vmatprep.subr.mxu0 0.0
    %1543 = vmatpush1.msra.mxu0 0.0
    %1544 = vmatprep.subr.mxu0 0.0
    %1545 = vmatpush1.msra.mxu0 0.0
    %1546 = vmatprep.subr.mxu0 0.0
    %1547 = vmatpush1.msra.mxu0 0.0
    %1548 = vmatprep.subr.mxu0 0.0
    %1549 = vmatpush1.msra.mxu0 0.0
    %1550 = vmatprep.subr.mxu0 0.0
    %1551 = vmatpush1.msra.mxu0 0.0
    %1552 = vmatprep.subr.mxu0 0.0
    %1553 = vmatpush1.msra.mxu0 0.0
    %1554 = vmatprep.subr.mxu0 0.0
    %1555 = vmatpush1.msra.mxu0 0.0
    %1556 = vmatprep.subr.mxu0 0.0
    %1557 = vmatpush1.msra.mxu0 0.0
    %1558 = vmatprep.subr.mxu0 0.0
    %1559 = vmatpush1.msra.mxu0 0.0
    %1560 = vmatprep.subr.mxu0 0.0
    %1561 = vmatpush1.msra.mxu0 0.0
    %1562 = vmatprep.subr.mxu0 0.0
    %1563 = vmatpush1.msra.mxu0 0.0
    %1564 = vmatprep.subr.mxu0 0.0
    %1565 = vmatpush1.msra.mxu0 0.0
    %1566 = vmatprep.subr.mxu0 0.0
    %1567 = vmatpush1.msra.mxu0 0.0
    %1568 = vmatprep.subr.mxu0 0.0
    %1569 = vmatpush1.msra.mxu0 0.0
    %1570 = vmatprep.subr.mxu0 0.0
    %1571 = vmatpush1.msra.mxu0 0.0
    %1572 = vmatprep.subr.mxu0 0.0
    %1573 = vmatpush1.msra.mxu0 0.0
    %1574 = vmatprep.subr.mxu0 0.0
    %1575 = vmatpush1.msra.mxu0 0.0
    %1576 = vmatprep.mubr.f32.mxu0 0.0
    %1577 = vmatmul.mubr.f32.gmra.mrb[0].mxu0 %v1510
    %v1578 = vpop.f32.mrb[0].mxu0
    %v1579 = vadd.f32 0.0, %v1578
    %v1580 = vpop.f32.mrb[0].mxu0
    %1581 = vdwg.mxu0
    %v1582 = vadd.f32 %v1422, %v1579
    %v1583 = vmax.f32 %v1582, 0.0
    %v1584 = vld [vmem:[%s9] sm:$0xf]
    %vm1585 = vcmask 48128
    %v1587 = vsel %vm1585, %v1584, 0
    %vm1589 = vcmask 1045504
    %v1591 = vsel %vm1589, %v1583, 0
    %1593 = vmatprep.subr.mxu0 0.0
    %1594 = vmatpush1.msra.mxu0 %v1591
    %1595 = vmatprep.subr.mxu0 0.0
    %1596 = vmatpush1.msra.mxu0 0.0
    %1597 = vmatprep.subr.mxu0 0.0
    %1598 = vmatpush1.msra.mxu0 0.0
    %1599 = vmatprep.subr.mxu0 0.0
    %1600 = vmatpush1.msra.mxu0 0.0
    %1601 = vmatprep.subr.mxu0 0.0
    %1602 = vmatpush1.msra.mxu0 0.0
    %1603 = vmatprep.subr.mxu0 0.0
    %1604 = vmatpush1.msra.mxu0 0.0
    %1605 = vmatprep.subr.mxu0 0.0
    %1606 = vmatpush1.msra.mxu0 0.0
    %1607 = vmatprep.subr.mxu0 0.0
    %1608 = vmatpush1.msra.mxu0 0.0
    %1609 = vmatprep.subr.mxu0 0.0
    %1610 = vmatpush1.msra.mxu0 0.0
    %1611 = vmatprep.subr.mxu0 0.0
    %1612 = vmatpush1.msra.mxu0 0.0
    %1613 = vmatprep.subr.mxu0 0.0
    %1614 = vmatpush1.msra.mxu0 0.0
    %1615 = vmatprep.subr.mxu0 0.0
    %1616 = vmatpush1.msra.mxu0 0.0
    %1617 = vmatprep.subr.mxu0 0.0
    %1618 = vmatpush1.msra.mxu0 0.0
    %1619 = vmatprep.subr.mxu0 0.0
    %1620 = vmatpush1.msra.mxu0 0.0
    %1621 = vmatprep.subr.mxu0 0.0
    %1622 = vmatpush1.msra.mxu0 0.0
    %1623 = vmatprep.subr.mxu0 0.0
    %1624 = vmatpush1.msra.mxu0 0.0
    %1625 = vmatprep.subr.mxu0 0.0
    %1626 = vmatpush1.msra.mxu0 0.0
    %1627 = vmatprep.subr.mxu0 0.0
    %1628 = vmatpush1.msra.mxu0 0.0
    %1629 = vmatprep.subr.mxu0 0.0
    %1630 = vmatpush1.msra.mxu0 0.0
    %1631 = vmatprep.subr.mxu0 0.0
    %1632 = vmatpush1.msra.mxu0 0.0
    %1633 = vmatprep.subr.mxu0 0.0
    %1634 = vmatpush1.msra.mxu0 0.0
    %1635 = vmatprep.subr.mxu0 0.0
    %1636 = vmatpush1.msra.mxu0 0.0
    %1637 = vmatprep.subr.mxu0 0.0
    %1638 = vmatpush1.msra.mxu0 0.0
    %1639 = vmatprep.subr.mxu0 0.0
    %1640 = vmatpush1.msra.mxu0 0.0
    %1641 = vmatprep.subr.mxu0 0.0
    %1642 = vmatpush1.msra.mxu0 0.0
    %1643 = vmatprep.subr.mxu0 0.0
    %1644 = vmatpush1.msra.mxu0 0.0
    %1645 = vmatprep.subr.mxu0 0.0
    %1646 = vmatpush1.msra.mxu0 0.0
    %1647 = vmatprep.subr.mxu0 0.0
    %1648 = vmatpush1.msra.mxu0 0.0
    %1649 = vmatprep.subr.mxu0 0.0
    %1650 = vmatpush1.msra.mxu0 0.0
    %1651 = vmatprep.subr.mxu0 0.0
    %1652 = vmatpush1.msra.mxu0 0.0
    %1653 = vmatprep.subr.mxu0 0.0
    %1654 = vmatpush1.msra.mxu0 0.0
    %1655 = vmatprep.subr.mxu0 0.0
    %1656 = vmatpush1.msra.mxu0 0.0
    %1657 = vmatprep.mubr.f32.mxu0 0.0
    %1658 = vmatmul.mubr.f32.gmra.mrb[0].mxu0 %v1587
    %v1659 = vpop.f32.mrb[0].mxu0
    %v1660 = vadd.f32 0.0, %v1659
    %v1661 = vpop.f32.mrb[0].mxu0
    %1662 = vdwg.mxu0
    %s1663 = scalar_lea.vmem %s9, 4
    %v1664 = vld [vmem:[%s1663] sm:$0xf]
    %v1666 = vsel %vm1585, %v1664, 0
    %1668 = vmatprep.subr.mxu0 0.0
    %1669 = vmatpush1.msra.mxu0 %v1591
    %1670 = vmatprep.subr.mxu0 0.0
    %1671 = vmatpush1.msra.mxu0 0.0
    %1672 = vmatprep.subr.mxu0 0.0
    %1673 = vmatpush1.msra.mxu0 0.0
    %1674 = vmatprep.subr.mxu0 0.0
    %1675 = vmatpush1.msra.mxu0 0.0
    %1676 = vmatprep.subr.mxu0 0.0
    %1677 = vmatpush1.msra.mxu0 0.0
    %1678 = vmatprep.subr.mxu0 0.0
    %1679 = vmatpush1.msra.mxu0 0.0
    %1680 = vmatprep.subr.mxu0 0.0
    %1681 = vmatpush1.msra.mxu0 0.0
    %1682 = vmatprep.subr.mxu0 0.0
    %1683 = vmatpush1.msra.mxu0 0.0
    %1684 = vmatprep.subr.mxu0 0.0
    %1685 = vmatpush1.msra.mxu0 0.0
    %1686 = vmatprep.subr.mxu0 0.0
    %1687 = vmatpush1.msra.mxu0 0.0
    %1688 = vmatprep.subr.mxu0 0.0
    %1689 = vmatpush1.msra.mxu0 0.0
    %1690 = vmatprep.subr.mxu0 0.0
    %1691 = vmatpush1.msra.mxu0 0.0
    %1692 = vmatprep.subr.mxu0 0.0
    %1693 = vmatpush1.msra.mxu0 0.0
    %1694 = vmatprep.subr.mxu0 0.0
    %1695 = vmatpush1.msra.mxu0 0.0
    %1696 = vmatprep.subr.mxu0 0.0
    %1697 = vmatpush1.msra.mxu0 0.0
    %1698 = vmatprep.subr.mxu0 0.0
    %1699 = vmatpush1.msra.mxu0 0.0
    %1700 = vmatprep.subr.mxu0 0.0
    %1701 = vmatpush1.msra.mxu0 0.0
    %1702 = vmatprep.subr.mxu0 0.0
    %1703 = vmatpush1.msra.mxu0 0.0
    %1704 = vmatprep.subr.mxu0 0.0
    %1705 = vmatpush1.msra.mxu0 0.0
    %1706 = vmatprep.subr.mxu0 0.0
    %1707 = vmatpush1.msra.mxu0 0.0
    %1708 = vmatprep.subr.mxu0 0.0
    %1709 = vmatpush1.msra.mxu0 0.0
    %1710 = vmatprep.subr.mxu0 0.0
    %1711 = vmatpush1.msra.mxu0 0.0
    %1712 = vmatprep.subr.mxu0 0.0
    %1713 = vmatpush1.msra.mxu0 0.0
    %1714 = vmatprep.subr.mxu0 0.0
    %1715 = vmatpush1.msra.mxu0 0.0
    %1716 = vmatprep.subr.mxu0 0.0
    %1717 = vmatpush1.msra.mxu0 0.0
    %1718 = vmatprep.subr.mxu0 0.0
    %1719 = vmatpush1.msra.mxu0 0.0
    %1720 = vmatprep.subr.mxu0 0.0
    %1721 = vmatpush1.msra.mxu0 0.0
    %1722 = vmatprep.subr.mxu0 0.0
    %1723 = vmatpush1.msra.mxu0 0.0
    %1724 = vmatprep.subr.mxu0 0.0
    %1725 = vmatpush1.msra.mxu0 0.0
    %1726 = vmatprep.subr.mxu0 0.0
    %1727 = vmatpush1.msra.mxu0 0.0
    %1728 = vmatprep.subr.mxu0 0.0
    %1729 = vmatpush1.msra.mxu0 0.0
    %1730 = vmatprep.subr.mxu0 0.0
    %1731 = vmatpush1.msra.mxu0 0.0
    %1732 = vmatprep.mubr.f32.mxu0 0.0
    %1733 = vmatmul.mubr.f32.gmra.mrb[0].mxu0 %v1666
    %v1734 = vpop.f32.mrb[0].mxu0
    %v1735 = vadd.f32 0.0, %v1734
    %v1736 = vpop.f32.mrb[0].mxu0
    %1737 = vdwg.mxu0
    %v1738 = vmax.f32 %v1660, %v1735
    %v1739 = vld [vmem:[%s10] sm:$0xff]
    %v1740 = vld [vmem:[%s10 + $0x8] sm:$0xff]
    %v1741 = vld [vmem:[%s10 + $0x10] sm:$0xff]
    %vm1742 = vcmask 195584
    %v1744 = vsel %vm1742, %v1738, 0
    %1746 = vmatprep.subr.mxu0 0.0
    %1747 = vmatpush1.msra.mxu0 %v1739
    %1748 = vmatprep.subr.mxu0 0.0
    %1749 = vmatpush1.msra.mxu0 %v1740
    %1750 = vmatprep.subr.mxu0 0.0
    %1751 = vmatpush1.msra.mxu0 %v1741
    %1752 = vmatprep.subr.mxu0 0.0
    %1753 = vmatpush1.msra.mxu0 0.0
    %1754 = vmatprep.subr.mxu0 0.0
    %1755 = vmatpush1.msra.mxu0 0.0
    %1756 = vmatprep.subr.mxu0 0.0
    %1757 = vmatpush1.msra.mxu0 0.0
    %1758 = vmatprep.subr.mxu0 0.0
    %1759 = vmatpush1.msra.mxu0 0.0
    %1760 = vmatprep.subr.mxu0 0.0
    %1761 = vmatpush1.msra.mxu0 0.0
    %1762 = vmatprep.subr.mxu0 0.0
    %1763 = vmatpush1.msra.mxu0 0.0
    %1764 = vmatprep.subr.mxu0 0.0
    %1765 = vmatpush1.msra.mxu0 0.0
    %1766 = vmatprep.subr.mxu0 0.0
    %1767 = vmatpush1.msra.mxu0 0.0
    %1768 = vmatprep.subr.mxu0 0.0
    %1769 = vmatpush1.msra.mxu0 0.0
    %1770 = vmatprep.subr.mxu0 0.0
    %1771 = vmatpush1.msra.mxu0 0.0
    %1772 = vmatprep.subr.mxu0 0.0
    %1773 = vmatpush1.msra.mxu0 0.0
    %1774 = vmatprep.subr.mxu0 0.0
    %1775 = vmatpush1.msra.mxu0 0.0
    %1776 = vmatprep.subr.mxu0 0.0
    %1777 = vmatpush1.msra.mxu0 0.0
    %1778 = vmatprep.subr.mxu0 0.0
    %1779 = vmatpush1.msra.mxu0 0.0
    %1780 = vmatprep.subr.mxu0 0.0
    %1781 = vmatpush1.msra.mxu0 0.0
    %1782 = vmatprep.subr.mxu0 0.0
    %1783 = vmatpush1.msra.mxu0 0.0
    %1784 = vmatprep.subr.mxu0 0.0
    %1785 = vmatpush1.msra.mxu0 0.0
    %1786 = vmatprep.subr.mxu0 0.0
    %1787 = vmatpush1.msra.mxu0 0.0
    %1788 = vmatprep.subr.mxu0 0.0
    %1789 = vmatpush1.msra.mxu0 0.0
    %1790 = vmatprep.subr.mxu0 0.0
    %1791 = vmatpush1.msra.mxu0 0.0
    %1792 = vmatprep.subr.mxu0 0.0
    %1793 = vmatpush1.msra.mxu0 0.0
    %1794 = vmatprep.subr.mxu0 0.0
    %1795 = vmatpush1.msra.mxu0 0.0
    %1796 = vmatprep.subr.mxu0 0.0
    %1797 = vmatpush1.msra.mxu0 0.0
    %1798 = vmatprep.subr.mxu0 0.0
    %1799 = vmatpush1.msra.mxu0 0.0
    %1800 = vmatprep.subr.mxu0 0.0
    %1801 = vmatpush1.msra.mxu0 0.0
    %1802 = vmatprep.subr.mxu0 0.0
    %1803 = vmatpush1.msra.mxu0 0.0
    %1804 = vmatprep.subr.mxu0 0.0
    %1805 = vmatpush1.msra.mxu0 0.0
    %1806 = vmatprep.subr.mxu0 0.0
    %1807 = vmatpush1.msra.mxu0 0.0
    %1808 = vmatprep.subr.mxu0 0.0
    %1809 = vmatpush1.msra.mxu0 0.0
    %1810 = vmatprep.mubr.f32.mxu0 0.0
    %1811 = vmatmul.mubr.f32.gmra.mrb[0].mxu0 %v1744
    %v1812 = vpop.f32.mrb[0].mxu0
    %v1813 = vadd.f32 0.0, %v1812
    %v1814 = vpop.f32.mrb[0].mxu0
    %1815 = vdwg.mxu0
    %s1816 = scalar_lea.vmem %s10, 24
    %v1817 = vld [vmem:[%s1816] sm:$0xff]
    %v1818 = vld [vmem:[%s1816 + $0x8] sm:$0xff]
    %v1819 = vld [vmem:[%s1816 + $0x10] sm:$0xff]
    %1820 = vmatprep.subr.mxu0 0.0
    %1821 = vmatpush1.msra.mxu0 %v1817
    %1822 = vmatprep.subr.mxu0 0.0
    %1823 = vmatpush1.msra.mxu0 %v1818
    %1824 = vmatprep.subr.mxu0 0.0
    %1825 = vmatpush1.msra.mxu0 %v1819
    %1826 = vmatprep.subr.mxu0 0.0
    %1827 = vmatpush1.msra.mxu0 0.0
    %1828 = vmatprep.subr.mxu0 0.0
    %1829 = vmatpush1.msra.mxu0 0.0
    %1830 = vmatprep.subr.mxu0 0.0
    %1831 = vmatpush1.msra.mxu0 0.0
    %1832 = vmatprep.subr.mxu0 0.0
    %1833 = vmatpush1.msra.mxu0 0.0
    %1834 = vmatprep.subr.mxu0 0.0
    %1835 = vmatpush1.msra.mxu0 0.0
    %1836 = vmatprep.subr.mxu0 0.0
    %1837 = vmatpush1.msra.mxu0 0.0
    %1838 = vmatprep.subr.mxu0 0.0
    %1839 = vmatpush1.msra.mxu0 0.0
    %1840 = vmatprep.subr.mxu0 0.0
    %1841 = vmatpush1.msra.mxu0 0.0
    %1842 = vmatprep.subr.mxu0 0.0
    %1843 = vmatpush1.msra.mxu0 0.0
    %1844 = vmatprep.subr.mxu0 0.0
    %1845 = vmatpush1.msra.mxu0 0.0
    %1846 = vmatprep.subr.mxu0 0.0
    %1847 = vmatpush1.msra.mxu0 0.0
    %1848 = vmatprep.subr.mxu0 0.0
    %1849 = vmatpush1.msra.mxu0 0.0
    %1850 = vmatprep.subr.mxu0 0.0
    %1851 = vmatpush1.msra.mxu0 0.0
    %1852 = vmatprep.subr.mxu0 0.0
    %1853 = vmatpush1.msra.mxu0 0.0
    %1854 = vmatprep.subr.mxu0 0.0
    %1855 = vmatpush1.msra.mxu0 0.0
    %1856 = vmatprep.subr.mxu0 0.0
    %1857 = vmatpush1.msra.mxu0 0.0
    %1858 = vmatprep.subr.mxu0 0.0
    %1859 = vmatpush1.msra.mxu0 0.0
    %1860 = vmatprep.subr.mxu0 0.0
    %1861 = vmatpush1.msra.mxu0 0.0
    %1862 = vmatprep.subr.mxu0 0.0
    %1863 = vmatpush1.msra.mxu0 0.0
    %1864 = vmatprep.subr.mxu0 0.0
    %1865 = vmatpush1.msra.mxu0 0.0
    %1866 = vmatprep.subr.mxu0 0.0
    %1867 = vmatpush1.msra.mxu0 0.0
    %1868 = vmatprep.subr.mxu0 0.0
    %1869 = vmatpush1.msra.mxu0 0.0
    %1870 = vmatprep.subr.mxu0 0.0
    %1871 = vmatpush1.msra.mxu0 0.0
    %1872 = vmatprep.subr.mxu0 0.0
    %1873 = vmatpush1.msra.mxu0 0.0
    %1874 = vmatprep.subr.mxu0 0.0
    %1875 = vmatpush1.msra.mxu0 0.0
    %1876 = vmatprep.subr.mxu0 0.0
    %1877 = vmatpush1.msra.mxu0 0.0
    %1878 = vmatprep.subr.mxu0 0.0
    %1879 = vmatpush1.msra.mxu0 0.0
    %1880 = vmatprep.subr.mxu0 0.0
    %1881 = vmatpush1.msra.mxu0 0.0
    %1882 = vmatprep.subr.mxu0 0.0
    %1883 = vmatpush1.msra.mxu0 0.0
    %1884 = vmatprep.mubr.f32.mxu0 0.0
    %1885 = vmatmul.mubr.f32.gmra.mrb[0].mxu0 %v1744
    %v1886 = vpop.f32.mrb[0].mxu0
    %v1887 = vadd.f32 0.0, %v1886
    %v1888 = vpop.f32.mrb[0].mxu0
    %1889 = vdwg.mxu0
    %v1890 = vmax.f32 %v1813, %v1887
    %v1891 = vld [vmem:[%s13] sm:$0x1]
    %v1892 = vld [vmem:[%s11] sm:$0xff]
    %v1893 = vld [vmem:[%s11 + $0x8] sm:$0x3]
    %vm1894 = vcmask 31744
    %v1896 = vsel %vm1894, %v1892, 0
    %v1899 = vsel %vm1894, %v1893, 0
    %v1902 = vsel %vm185, %v1890, 0
    %1904 = vmatprep.subr.mxu0 0.0
    %1905 = vmatpush1.msra.mxu0 %v1902
    %1906 = vmatprep.subr.mxu0 0.0
    %1907 = vmatpush1.msra.mxu0 0.0
    %1908 = vmatprep.subr.mxu0 0.0
    %1909 = vmatpush1.msra.mxu0 0.0
    %1910 = vmatprep.subr.mxu0 0.0
    %1911 = vmatpush1.msra.mxu0 0.0
    %1912 = vmatprep.subr.mxu0 0.0
    %1913 = vmatpush1.msra.mxu0 0.0
    %1914 = vmatprep.subr.mxu0 0.0
    %1915 = vmatpush1.msra.mxu0 0.0
    %1916 = vmatprep.subr.mxu0 0.0
    %1917 = vmatpush1.msra.mxu0 0.0
    %1918 = vmatprep.subr.mxu0 0.0
    %1919 = vmatpush1.msra.mxu0 0.0
    %1920 = vmatprep.subr.mxu0 0.0
    %1921 = vmatpush1.msra.mxu0 0.0
    %1922 = vmatprep.subr.mxu0 0.0
    %1923 = vmatpush1.msra.mxu0 0.0
    %1924 = vmatprep.subr.mxu0 0.0
    %1925 = vmatpush1.msra.mxu0 0.0
    %1926 = vmatprep.subr.mxu0 0.0
    %1927 = vmatpush1.msra.mxu0 0.0
    %1928 = vmatprep.subr.mxu0 0.0
    %1929 = vmatpush1.msra.mxu0 0.0
    %1930 = vmatprep.subr.mxu0 0.0
    %1931 = vmatpush1.msra.mxu0 0.0
    %1932 = vmatprep.subr.mxu0 0.0
    %1933 = vmatpush1.msra.mxu0 0.0
    %1934 = vmatprep.subr.mxu0 0.0
    %1935 = vmatpush1.msra.mxu0 0.0
    %1936 = vmatprep.subr.mxu0 0.0
    %1937 = vmatpush1.msra.mxu0 0.0
    %1938 = vmatprep.subr.mxu0 0.0
    %1939 = vmatpush1.msra.mxu0 0.0
    %1940 = vmatprep.subr.mxu0 0.0
    %1941 = vmatpush1.msra.mxu0 0.0
    %1942 = vmatprep.subr.mxu0 0.0
    %1943 = vmatpush1.msra.mxu0 0.0
    %1944 = vmatprep.subr.mxu0 0.0
    %1945 = vmatpush1.msra.mxu0 0.0
    %1946 = vmatprep.subr.mxu0 0.0
    %1947 = vmatpush1.msra.mxu0 0.0
    %1948 = vmatprep.subr.mxu0 0.0
    %1949 = vmatpush1.msra.mxu0 0.0
    %1950 = vmatprep.subr.mxu0 0.0
    %1951 = vmatpush1.msra.mxu0 0.0
    %1952 = vmatprep.subr.mxu0 0.0
    %1953 = vmatpush1.msra.mxu0 0.0
    %1954 = vmatprep.subr.mxu0 0.0
    %1955 = vmatpush1.msra.mxu0 0.0
    %1956 = vmatprep.subr.mxu0 0.0
    %1957 = vmatpush1.msra.mxu0 0.0
    %1958 = vmatprep.subr.mxu0 0.0
    %1959 = vmatpush1.msra.mxu0 0.0
    %1960 = vmatprep.subr.mxu0 0.0
    %1961 = vmatpush1.msra.mxu0 0.0
    %1962 = vmatprep.subr.mxu0 0.0
    %1963 = vmatpush1.msra.mxu0 0.0
    %1964 = vmatprep.subr.mxu0 0.0
    %1965 = vmatpush1.msra.mxu0 0.0
    %1966 = vmatprep.subr.mxu0 0.0
    %1967 = vmatpush1.msra.mxu0 0.0
    %1968 = vmatprep.mubr.f32.mxu0 0.0
    %1969 = vmatmul.mubr.f32.gmra.mrb[0].mxu0 %v1896
    %v1970 = vpop.f32.mrb[0].mxu0
    %v1971 = vadd.f32 0.0, %v1970
    %v1972 = vpop.f32.mrb[0].mxu0
    %1973 = vmatprep.mubr.f32.mxu0 0.0
    %1974 = vmatmul.mubr.f32.gmra.mrb[0].mxu0 %v1899
    %v1975 = vpop.f32.mrb[0].mxu0
    %v1976 = vadd.f32 0.0, %v1975
    %v1977 = vpop.f32.mrb[0].mxu0
    %1978 = vdwg.mxu0
    %v1979 = vld [vmem:[%s12] sm:$0xff]
    %v1980 = vld [vmem:[%s12 + $0x8] sm:$0xff]
    %vm1981 = vcmask 130048
    %v1983 = vsel %vm1981, %v1971, 0
    %v1986 = vsel %vm1981, %v1976, 0
    %1988 = vmatprep.subr.mxu0 0.0
    %1989 = vmatpush1.msra.mxu0 %v1979
    %1990 = vmatprep.subr.mxu0 0.0
    %1991 = vmatpush1.msra.mxu0 %v1980
    %1992 = vmatprep.subr.mxu0 0.0
    %1993 = vmatpush1.msra.mxu0 0.0
    %1994 = vmatprep.subr.mxu0 0.0
    %1995 = vmatpush1.msra.mxu0 0.0
    %1996 = vmatprep.subr.mxu0 0.0
    %1997 = vmatpush1.msra.mxu0 0.0
    %1998 = vmatprep.subr.mxu0 0.0
    %1999 = vmatpush1.msra.mxu0 0.0
    %2000 = vmatprep.subr.mxu0 0.0
    %2001 = vmatpush1.msra.mxu0 0.0
    %2002 = vmatprep.subr.mxu0 0.0
    %2003 = vmatpush1.msra.mxu0 0.0
    %2004 = vmatprep.subr.mxu0 0.0
    %2005 = vmatpush1.msra.mxu0 0.0
    %2006 = vmatprep.subr.mxu0 0.0
    %2007 = vmatpush1.msra.mxu0 0.0
    %2008 = vmatprep.subr.mxu0 0.0
    %2009 = vmatpush1.msra.mxu0 0.0
    %2010 = vmatprep.subr.mxu0 0.0
    %2011 = vmatpush1.msra.mxu0 0.0
    %2012 = vmatprep.subr.mxu0 0.0
    %2013 = vmatpush1.msra.mxu0 0.0
    %2014 = vmatprep.subr.mxu0 0.0
    %2015 = vmatpush1.msra.mxu0 0.0
    %2016 = vmatprep.subr.mxu0 0.0
    %2017 = vmatpush1.msra.mxu0 0.0
    %2018 = vmatprep.subr.mxu0 0.0
    %2019 = vmatpush1.msra.mxu0 0.0
    %2020 = vmatprep.subr.mxu0 0.0
    %2021 = vmatpush1.msra.mxu0 0.0
    %2022 = vmatprep.subr.mxu0 0.0
    %2023 = vmatpush1.msra.mxu0 0.0
    %2024 = vmatprep.subr.mxu0 0.0
    %2025 = vmatpush1.msra.mxu0 0.0
    %2026 = vmatprep.subr.mxu0 0.0
    %2027 = vmatpush1.msra.mxu0 0.0
    %2028 = vmatprep.subr.mxu0 0.0
    %2029 = vmatpush1.msra.mxu0 0.0
    %2030 = vmatprep.subr.mxu0 0.0
    %2031 = vmatpush1.msra.mxu0 0.0
    %2032 = vmatprep.subr.mxu0 0.0
    %2033 = vmatpush1.msra.mxu0 0.0
    %2034 = vmatprep.subr.mxu0 0.0
    %2035 = vmatpush1.msra.mxu0 0.0
    %2036 = vmatprep.subr.mxu0 0.0
    %2037 = vmatpush1.msra.mxu0 0.0
    %2038 = vmatprep.subr.mxu0 0.0
    %2039 = vmatpush1.msra.mxu0 0.0
    %2040 = vmatprep.subr.mxu0 0.0
    %2041 = vmatpush1.msra.mxu0 0.0
    %2042 = vmatprep.subr.mxu0 0.0
    %2043 = vmatpush1.msra.mxu0 0.0
    %2044 = vmatprep.subr.mxu0 0.0
    %2045 = vmatpush1.msra.mxu0 0.0
    %2046 = vmatprep.subr.mxu0 0.0
    %2047 = vmatpush1.msra.mxu0 0.0
    %2048 = vmatprep.subr.mxu0 0.0
    %2049 = vmatpush1.msra.mxu0 0.0
    %2050 = vmatprep.subr.mxu0 0.0
    %2051 = vmatpush1.msra.mxu0 0.0
    %2052 = vmatprep.mubr.f32.mxu0 0.0
    %2053 = vmatmul.mubr.f32.gmra.mrb[0].mxu0 %v1983
    %v2054 = vpop.f32.mrb[0].mxu0
    %v2055 = vadd.f32 0.0, %v2054
    %v2056 = vpop.f32.mrb[0].mxu0
    %2057 = vmatprep.mubr.f32.mxu0 0.0
    %2058 = vmatmul.mubr.f32.gmra.mrb[0].mxu0 %v1986
    %v2059 = vpop.f32.mrb[0].mxu0
    %v2060 = vadd.f32 0.0, %v2059
    %v2061 = vpop.f32.mrb[0].mxu0
    %2062 = vdwg.mxu0
    %v2064 = vlaneseq
    %v2065 = vshrl.u32 %v2064, 7
    %v2066 = vsub.s32 0, %v2065
    %v2067 = vrot.slane %v1891, %v2066
    %v2069 = vadd.f32 %v2067, %v2055
    %v2070 = vadd.f32 %v2067, %v2060
    %s2071 = scalar_lea.vmem %s11, 16
    %v2072 = vld [vmem:[%s2071] sm:$0xff]
    %v2073 = vld [vmem:[%s2071 + $0x8] sm:$0x3]
    %v2075 = vsel %vm1894, %v2072, 0
    %v2078 = vsel %vm1894, %v2073, 0
    %2080 = vmatprep.subr.mxu0 0.0
    %2081 = vmatpush1.msra.mxu0 %v1902
    %2082 = vmatprep.subr.mxu0 0.0
    %2083 = vmatpush1.msra.mxu0 0.0
    %2084 = vmatprep.subr.mxu0 0.0
    %2085 = vmatpush1.msra.mxu0 0.0
    %2086 = vmatprep.subr.mxu0 0.0
    %2087 = vmatpush1.msra.mxu0 0.0
    %2088 = vmatprep.subr.mxu0 0.0
    %2089 = vmatpush1.msra.mxu0 0.0
    %2090 = vmatprep.subr.mxu0 0.0
    %2091 = vmatpush1.msra.mxu0 0.0
    %2092 = vmatprep.subr.mxu0 0.0
    %2093 = vmatpush1.msra.mxu0 0.0
    %2094 = vmatprep.subr.mxu0 0.0
    %2095 = vmatpush1.msra.mxu0 0.0
    %2096 = vmatprep.subr.mxu0 0.0
    %2097 = vmatpush1.msra.mxu0 0.0
    %2098 = vmatprep.subr.mxu0 0.0
    %2099 = vmatpush1.msra.mxu0 0.0
    %2100 = vmatprep.subr.mxu0 0.0
    %2101 = vmatpush1.msra.mxu0 0.0
    %2102 = vmatprep.subr.mxu0 0.0
    %2103 = vmatpush1.msra.mxu0 0.0
    %2104 = vmatprep.subr.mxu0 0.0
    %2105 = vmatpush1.msra.mxu0 0.0
    %2106 = vmatprep.subr.mxu0 0.0
    %2107 = vmatpush1.msra.mxu0 0.0
    %2108 = vmatprep.subr.mxu0 0.0
    %2109 = vmatpush1.msra.mxu0 0.0
    %2110 = vmatprep.subr.mxu0 0.0
    %2111 = vmatpush1.msra.mxu0 0.0
    %2112 = vmatprep.subr.mxu0 0.0
    %2113 = vmatpush1.msra.mxu0 0.0
    %2114 = vmatprep.subr.mxu0 0.0
    %2115 = vmatpush1.msra.mxu0 0.0
    %2116 = vmatprep.subr.mxu0 0.0
    %2117 = vmatpush1.msra.mxu0 0.0
    %2118 = vmatprep.subr.mxu0 0.0
    %2119 = vmatpush1.msra.mxu0 0.0
    %2120 = vmatprep.subr.mxu0 0.0
    %2121 = vmatpush1.msra.mxu0 0.0
    %2122 = vmatprep.subr.mxu0 0.0
    %2123 = vmatpush1.msra.mxu0 0.0
    %2124 = vmatprep.subr.mxu0 0.0
    %2125 = vmatpush1.msra.mxu0 0.0
    %2126 = vmatprep.subr.mxu0 0.0
    %2127 = vmatpush1.msra.mxu0 0.0
    %2128 = vmatprep.subr.mxu0 0.0
    %2129 = vmatpush1.msra.mxu0 0.0
    %2130 = vmatprep.subr.mxu0 0.0
    %2131 = vmatpush1.msra.mxu0 0.0
    %2132 = vmatprep.subr.mxu0 0.0
    %2133 = vmatpush1.msra.mxu0 0.0
    %2134 = vmatprep.subr.mxu0 0.0
    %2135 = vmatpush1.msra.mxu0 0.0
    %2136 = vmatprep.subr.mxu0 0.0
    %2137 = vmatpush1.msra.mxu0 0.0
    %2138 = vmatprep.subr.mxu0 0.0
    %2139 = vmatpush1.msra.mxu0 0.0
    %2140 = vmatprep.subr.mxu0 0.0
    %2141 = vmatpush1.msra.mxu0 0.0
    %2142 = vmatprep.subr.mxu0 0.0
    %2143 = vmatpush1.msra.mxu0 0.0
    %2144 = vmatprep.mubr.f32.mxu0 0.0
    %2145 = vmatmul.mubr.f32.gmra.mrb[0].mxu0 %v2075
    %v2146 = vpop.f32.mrb[0].mxu0
    %v2147 = vadd.f32 0.0, %v2146
    %v2148 = vpop.f32.mrb[0].mxu0
    %2149 = vmatprep.mubr.f32.mxu0 0.0
    %2150 = vmatmul.mubr.f32.gmra.mrb[0].mxu0 %v2078
    %v2151 = vpop.f32.mrb[0].mxu0
    %v2152 = vadd.f32 0.0, %v2151
    %v2153 = vpop.f32.mrb[0].mxu0
    %2154 = vdwg.mxu0
    %s2155 = scalar_lea.vmem %s12, 16
    %v2156 = vld [vmem:[%s2155] sm:$0xff]
    %v2157 = vld [vmem:[%s2155 + $0x8] sm:$0xff]
    %v2159 = vsel %vm1981, %v2147, 0
    %v2162 = vsel %vm1981, %v2152, 0
    %2164 = vmatprep.subr.mxu0 0.0
    %2165 = vmatpush1.msra.mxu0 %v2156
    %2166 = vmatprep.subr.mxu0 0.0
    %2167 = vmatpush1.msra.mxu0 %v2157
    %2168 = vmatprep.subr.mxu0 0.0
    %2169 = vmatpush1.msra.mxu0 0.0
    %2170 = vmatprep.subr.mxu0 0.0
    %2171 = vmatpush1.msra.mxu0 0.0
    %2172 = vmatprep.subr.mxu0 0.0
    %2173 = vmatpush1.msra.mxu0 0.0
    %2174 = vmatprep.subr.mxu0 0.0
    %2175 = vmatpush1.msra.mxu0 0.0
    %2176 = vmatprep.subr.mxu0 0.0
    %2177 = vmatpush1.msra.mxu0 0.0
    %2178 = vmatprep.subr.mxu0 0.0
    %2179 = vmatpush1.msra.mxu0 0.0
    %2180 = vmatprep.subr.mxu0 0.0
    %2181 = vmatpush1.msra.mxu0 0.0
    %2182 = vmatprep.subr.mxu0 0.0
    %2183 = vmatpush1.msra.mxu0 0.0
    %2184 = vmatprep.subr.mxu0 0.0
    %2185 = vmatpush1.msra.mxu0 0.0
    %2186 = vmatprep.subr.mxu0 0.0
    %2187 = vmatpush1.msra.mxu0 0.0
    %2188 = vmatprep.subr.mxu0 0.0
    %2189 = vmatpush1.msra.mxu0 0.0
    %2190 = vmatprep.subr.mxu0 0.0
    %2191 = vmatpush1.msra.mxu0 0.0
    %2192 = vmatprep.subr.mxu0 0.0
    %2193 = vmatpush1.msra.mxu0 0.0
    %2194 = vmatprep.subr.mxu0 0.0
    %2195 = vmatpush1.msra.mxu0 0.0
    %2196 = vmatprep.subr.mxu0 0.0
    %2197 = vmatpush1.msra.mxu0 0.0
    %2198 = vmatprep.subr.mxu0 0.0
    %2199 = vmatpush1.msra.mxu0 0.0
    %2200 = vmatprep.subr.mxu0 0.0
    %2201 = vmatpush1.msra.mxu0 0.0
    %2202 = vmatprep.subr.mxu0 0.0
    %2203 = vmatpush1.msra.mxu0 0.0
    %2204 = vmatprep.subr.mxu0 0.0
    %2205 = vmatpush1.msra.mxu0 0.0
    %2206 = vmatprep.subr.mxu0 0.0
    %2207 = vmatpush1.msra.mxu0 0.0
    %2208 = vmatprep.subr.mxu0 0.0
    %2209 = vmatpush1.msra.mxu0 0.0
    %2210 = vmatprep.subr.mxu0 0.0
    %2211 = vmatpush1.msra.mxu0 0.0
    %2212 = vmatprep.subr.mxu0 0.0
    %2213 = vmatpush1.msra.mxu0 0.0
    %2214 = vmatprep.subr.mxu0 0.0
    %2215 = vmatpush1.msra.mxu0 0.0
    %2216 = vmatprep.subr.mxu0 0.0
    %2217 = vmatpush1.msra.mxu0 0.0
    %2218 = vmatprep.subr.mxu0 0.0
    %2219 = vmatpush1.msra.mxu0 0.0
    %2220 = vmatprep.subr.mxu0 0.0
    %2221 = vmatpush1.msra.mxu0 0.0
    %2222 = vmatprep.subr.mxu0 0.0
    %2223 = vmatpush1.msra.mxu0 0.0
    %2224 = vmatprep.subr.mxu0 0.0
    %2225 = vmatpush1.msra.mxu0 0.0
    %2226 = vmatprep.subr.mxu0 0.0
    %2227 = vmatpush1.msra.mxu0 0.0
    %2228 = vmatprep.mubr.f32.mxu0 0.0
    %2229 = vmatmul.mubr.f32.gmra.mrb[0].mxu0 %v2159
    %v2230 = vpop.f32.mrb[0].mxu0
    %v2231 = vadd.f32 0.0, %v2230
    %v2232 = vpop.f32.mrb[0].mxu0
    %2233 = vmatprep.mubr.f32.mxu0 0.0
    %2234 = vmatmul.mubr.f32.gmra.mrb[0].mxu0 %v2162
    %v2235 = vpop.f32.mrb[0].mxu0
    %v2236 = vadd.f32 0.0, %v2235
    %v2237 = vpop.f32.mrb[0].mxu0
    %2238 = vdwg.mxu0
    %v2239 = vadd.f32 %v2069, %v2231
    %v2240 = vadd.f32 %v2070, %v2236
    %s2241 = scalar_lea.vmem %s11, 32
    %v2242 = vld [vmem:[%s2241] sm:$0xff]
    %v2243 = vld [vmem:[%s2241 + $0x8] sm:$0x3]
    %v2245 = vsel %vm1894, %v2242, 0
    %v2248 = vsel %vm1894, %v2243, 0
    %2250 = vmatprep.subr.mxu0 0.0
    %2251 = vmatpush1.msra.mxu0 %v1902
    %2252 = vmatprep.subr.mxu0 0.0
    %2253 = vmatpush1.msra.mxu0 0.0
    %2254 = vmatprep.subr.mxu0 0.0
    %2255 = vmatpush1.msra.mxu0 0.0
    %2256 = vmatprep.subr.mxu0 0.0
    %2257 = vmatpush1.msra.mxu0 0.0
    %2258 = vmatprep.subr.mxu0 0.0
    %2259 = vmatpush1.msra.mxu0 0.0
    %2260 = vmatprep.subr.mxu0 0.0
    %2261 = vmatpush1.msra.mxu0 0.0
    %2262 = vmatprep.subr.mxu0 0.0
    %2263 = vmatpush1.msra.mxu0 0.0
    %2264 = vmatprep.subr.mxu0 0.0
    %2265 = vmatpush1.msra.mxu0 0.0
    %2266 = vmatprep.subr.mxu0 0.0
    %2267 = vmatpush1.msra.mxu0 0.0
    %2268 = vmatprep.subr.mxu0 0.0
    %2269 = vmatpush1.msra.mxu0 0.0
    %2270 = vmatprep.subr.mxu0 0.0
    %2271 = vmatpush1.msra.mxu0 0.0
    %2272 = vmatprep.subr.mxu0 0.0
    %2273 = vmatpush1.msra.mxu0 0.0
    %2274 = vmatprep.subr.mxu0 0.0
    %2275 = vmatpush1.msra.mxu0 0.0
    %2276 = vmatprep.subr.mxu0 0.0
    %2277 = vmatpush1.msra.mxu0 0.0
    %2278 = vmatprep.subr.mxu0 0.0
    %2279 = vmatpush1.msra.mxu0 0.0
    %2280 = vmatprep.subr.mxu0 0.0
    %2281 = vmatpush1.msra.mxu0 0.0
    %2282 = vmatprep.subr.mxu0 0.0
    %2283 = vmatpush1.msra.mxu0 0.0
    %2284 = vmatprep.subr.mxu0 0.0
    %2285 = vmatpush1.msra.mxu0 0.0
    %2286 = vmatprep.subr.mxu0 0.0
    %2287 = vmatpush1.msra.mxu0 0.0
    %2288 = vmatprep.subr.mxu0 0.0
    %2289 = vmatpush1.msra.mxu0 0.0
    %2290 = vmatprep.subr.mxu0 0.0
    %2291 = vmatpush1.msra.mxu0 0.0
    %2292 = vmatprep.subr.mxu0 0.0
    %2293 = vmatpush1.msra.mxu0 0.0
    %2294 = vmatprep.subr.mxu0 0.0
    %2295 = vmatpush1.msra.mxu0 0.0
    %2296 = vmatprep.subr.mxu0 0.0
    %2297 = vmatpush1.msra.mxu0 0.0
    %2298 = vmatprep.subr.mxu0 0.0
    %2299 = vmatpush1.msra.mxu0 0.0
    %2300 = vmatprep.subr.mxu0 0.0
    %2301 = vmatpush1.msra.mxu0 0.0
    %2302 = vmatprep.subr.mxu0 0.0
    %2303 = vmatpush1.msra.mxu0 0.0
    %2304 = vmatprep.subr.mxu0 0.0
    %2305 = vmatpush1.msra.mxu0 0.0
    %2306 = vmatprep.subr.mxu0 0.0
    %2307 = vmatpush1.msra.mxu0 0.0
    %2308 = vmatprep.subr.mxu0 0.0
    %2309 = vmatpush1.msra.mxu0 0.0
    %2310 = vmatprep.subr.mxu0 0.0
    %2311 = vmatpush1.msra.mxu0 0.0
    %2312 = vmatprep.subr.mxu0 0.0
    %2313 = vmatpush1.msra.mxu0 0.0
    %2314 = vmatprep.mubr.f32.mxu0 0.0
    %2315 = vmatmul.mubr.f32.gmra.mrb[0].mxu0 %v2245
    %v2316 = vpop.f32.mrb[0].mxu0
    %v2317 = vadd.f32 0.0, %v2316
    %v2318 = vpop.f32.mrb[0].mxu0
    %2319 = vmatprep.mubr.f32.mxu0 0.0
    %2320 = vmatmul.mubr.f32.gmra.mrb[0].mxu0 %v2248
    %v2321 = vpop.f32.mrb[0].mxu0
    %v2322 = vadd.f32 0.0, %v2321
    %v2323 = vpop.f32.mrb[0].mxu0
    %2324 = vdwg.mxu0
    %s2325 = scalar_lea.vmem %s12, 32
    %v2326 = vld [vmem:[%s2325] sm:$0xff]
    %v2327 = vld [vmem:[%s2325 + $0x8] sm:$0xff]
    %v2329 = vsel %vm1981, %v2317, 0
    %v2332 = vsel %vm1981, %v2322, 0
    %2334 = vmatprep.subr.mxu0 0.0
    %2335 = vmatpush1.msra.mxu0 %v2326
    %2336 = vmatprep.subr.mxu0 0.0
    %2337 = vmatpush1.msra.mxu0 %v2327
    %2338 = vmatprep.subr.mxu0 0.0
    %2339 = vmatpush1.msra.mxu0 0.0
    %2340 = vmatprep.subr.mxu0 0.0
    %2341 = vmatpush1.msra.mxu0 0.0
    %2342 = vmatprep.subr.mxu0 0.0
    %2343 = vmatpush1.msra.mxu0 0.0
    %2344 = vmatprep.subr.mxu0 0.0
    %2345 = vmatpush1.msra.mxu0 0.0
    %2346 = vmatprep.subr.mxu0 0.0
    %2347 = vmatpush1.msra.mxu0 0.0
    %2348 = vmatprep.subr.mxu0 0.0
    %2349 = vmatpush1.msra.mxu0 0.0
    %2350 = vmatprep.subr.mxu0 0.0
    %2351 = vmatpush1.msra.mxu0 0.0
    %2352 = vmatprep.subr.mxu0 0.0
    %2353 = vmatpush1.msra.mxu0 0.0
    %2354 = vmatprep.subr.mxu0 0.0
    %2355 = vmatpush1.msra.mxu0 0.0
    %2356 = vmatprep.subr.mxu0 0.0
    %2357 = vmatpush1.msra.mxu0 0.0
    %2358 = vmatprep.subr.mxu0 0.0
    %2359 = vmatpush1.msra.mxu0 0.0
    %2360 = vmatprep.subr.mxu0 0.0
    %2361 = vmatpush1.msra.mxu0 0.0
    %2362 = vmatprep.subr.mxu0 0.0
    %2363 = vmatpush1.msra.mxu0 0.0
    %2364 = vmatprep.subr.mxu0 0.0
    %2365 = vmatpush1.msra.mxu0 0.0
    %2366 = vmatprep.subr.mxu0 0.0
    %2367 = vmatpush1.msra.mxu0 0.0
    %2368 = vmatprep.subr.mxu0 0.0
    %2369 = vmatpush1.msra.mxu0 0.0
    %2370 = vmatprep.subr.mxu0 0.0
    %2371 = vmatpush1.msra.mxu0 0.0
    %2372 = vmatprep.subr.mxu0 0.0
    %2373 = vmatpush1.msra.mxu0 0.0
    %2374 = vmatprep.subr.mxu0 0.0
    %2375 = vmatpush1.msra.mxu0 0.0
    %2376 = vmatprep.subr.mxu0 0.0
    %2377 = vmatpush1.msra.mxu0 0.0
    %2378 = vmatprep.subr.mxu0 0.0
    %2379 = vmatpush1.msra.mxu0 0.0
    %2380 = vmatprep.subr.mxu0 0.0
    %2381 = vmatpush1.msra.mxu0 0.0
    %2382 = vmatprep.subr.mxu0 0.0
    %2383 = vmatpush1.msra.mxu0 0.0
    %2384 = vmatprep.subr.mxu0 0.0
    %2385 = vmatpush1.msra.mxu0 0.0
    %2386 = vmatprep.subr.mxu0 0.0
    %2387 = vmatpush1.msra.mxu0 0.0
    %2388 = vmatprep.subr.mxu0 0.0
    %2389 = vmatpush1.msra.mxu0 0.0
    %2390 = vmatprep.subr.mxu0 0.0
    %2391 = vmatpush1.msra.mxu0 0.0
    %2392 = vmatprep.subr.mxu0 0.0
    %2393 = vmatpush1.msra.mxu0 0.0
    %2394 = vmatprep.subr.mxu0 0.0
    %2395 = vmatpush1.msra.mxu0 0.0
    %2396 = vmatprep.subr.mxu0 0.0
    %2397 = vmatpush1.msra.mxu0 0.0
    %2398 = vmatprep.mubr.f32.mxu0 0.0
    %2399 = vmatmul.mubr.f32.gmra.mrb[0].mxu0 %v2329
    %v2400 = vpop.f32.mrb[0].mxu0
    %v2401 = vadd.f32 0.0, %v2400
    %v2402 = vpop.f32.mrb[0].mxu0
    %2403 = vmatprep.mubr.f32.mxu0 0.0
    %2404 = vmatmul.mubr.f32.gmra.mrb[0].mxu0 %v2332
    %v2405 = vpop.f32.mrb[0].mxu0
    %v2406 = vadd.f32 0.0, %v2405
    %v2407 = vpop.f32.mrb[0].mxu0
    %2408 = vdwg.mxu0
    %v2409 = vadd.f32 %v2239, %v2401
    %v2410 = vadd.f32 %v2240, %v2406
    %v2411 = vmax.f32 %v2409, 0.0
    %v2412 = vmax.f32 %v2410, 0.0
    %v2413 = vld [vmem:[%s16] sm:$0x3]
    %v2414 = vld [vmem:[%s14] sm:$0xff]
    %v2415 = vld [vmem:[%s14 + $0x8] sm:$0xff]
    %v2416 = vld [vmem:[%s14 + $0x10] sm:$0xff]
    %v2417 = vld [vmem:[%s14 + $0x18] sm:$0xff]
    %v2418 = vld [vmem:[%s14 + $0x20] sm:$0x3]
    %v2420 = vsel %vm1094, %v2414, 0
    %v2423 = vsel %vm1094, %v2415, 0
    %v2426 = vsel %vm1094, %v2416, 0
    %v2429 = vsel %vm1094, %v2417, 0
    %v2432 = vsel %vm1094, %v2418, 0
    %v2435 = vsel %vm1098, %v2412, 0
    %2437 = vmatprep.subr.mxu0 0.0
    %2438 = vmatpush1.msra.mxu0 %v2411
    %2439 = vmatprep.subr.mxu0 0.0
    %2440 = vmatpush1.msra.mxu0 %v2435
    %2441 = vmatprep.subr.mxu0 0.0
    %2442 = vmatpush1.msra.mxu0 0.0
    %2443 = vmatprep.subr.mxu0 0.0
    %2444 = vmatpush1.msra.mxu0 0.0
    %2445 = vmatprep.subr.mxu0 0.0
    %2446 = vmatpush1.msra.mxu0 0.0
    %2447 = vmatprep.subr.mxu0 0.0
    %2448 = vmatpush1.msra.mxu0 0.0
    %2449 = vmatprep.subr.mxu0 0.0
    %2450 = vmatpush1.msra.mxu0 0.0
    %2451 = vmatprep.subr.mxu0 0.0
    %2452 = vmatpush1.msra.mxu0 0.0
    %2453 = vmatprep.subr.mxu0 0.0
    %2454 = vmatpush1.msra.mxu0 0.0
    %2455 = vmatprep.subr.mxu0 0.0
    %2456 = vmatpush1.msra.mxu0 0.0
    %2457 = vmatprep.subr.mxu0 0.0
    %2458 = vmatpush1.msra.mxu0 0.0
    %2459 = vmatprep.subr.mxu0 0.0
    %2460 = vmatpush1.msra.mxu0 0.0
    %2461 = vmatprep.subr.mxu0 0.0
    %2462 = vmatpush1.msra.mxu0 0.0
    %2463 = vmatprep.subr.mxu0 0.0
    %2464 = vmatpush1.msra.mxu0 0.0
    %2465 = vmatprep.subr.mxu0 0.0
    %2466 = vmatpush1.msra.mxu0 0.0
    %2467 = vmatprep.subr.mxu0 0.0
    %2468 = vmatpush1.msra.mxu0 0.0
    %2469 = vmatprep.subr.mxu0 0.0
    %2470 = vmatpush1.msra.mxu0 0.0
    %2471 = vmatprep.subr.mxu0 0.0
    %2472 = vmatpush1.msra.mxu0 0.0
    %2473 = vmatprep.subr.mxu0 0.0
    %2474 = vmatpush1.msra.mxu0 0.0
    %2475 = vmatprep.subr.mxu0 0.0
    %2476 = vmatpush1.msra.mxu0 0.0
    %2477 = vmatprep.subr.mxu0 0.0
    %2478 = vmatpush1.msra.mxu0 0.0
    %2479 = vmatprep.subr.mxu0 0.0
    %2480 = vmatpush1.msra.mxu0 0.0
    %2481 = vmatprep.subr.mxu0 0.0
    %2482 = vmatpush1.msra.mxu0 0.0
    %2483 = vmatprep.subr.mxu0 0.0
    %2484 = vmatpush1.msra.mxu0 0.0
    %2485 = vmatprep.subr.mxu0 0.0
    %2486 = vmatpush1.msra.mxu0 0.0
    %2487 = vmatprep.subr.mxu0 0.0
    %2488 = vmatpush1.msra.mxu0 0.0
    %2489 = vmatprep.subr.mxu0 0.0
    %2490 = vmatpush1.msra.mxu0 0.0
    %2491 = vmatprep.subr.mxu0 0.0
    %2492 = vmatpush1.msra.mxu0 0.0
    %2493 = vmatprep.subr.mxu0 0.0
    %2494 = vmatpush1.msra.mxu0 0.0
    %2495 = vmatprep.subr.mxu0 0.0
    %2496 = vmatpush1.msra.mxu0 0.0
    %2497 = vmatprep.subr.mxu0 0.0
    %2498 = vmatpush1.msra.mxu0 0.0
    %2499 = vmatprep.subr.mxu0 0.0
    %2500 = vmatpush1.msra.mxu0 0.0
    %2501 = vmatprep.mubr.f32.mxu0 0.0
    %2502 = vmatmul.mubr.f32.gmra.mrb[0].mxu0 %v2420
    %v2503 = vpop.f32.mrb[0].mxu0
    %v2504 = vadd.f32 0.0, %v2503
    %v2505 = vpop.f32.mrb[0].mxu0
    %2506 = vmatprep.mubr.f32.mxu0 0.0
    %2507 = vmatmul.mubr.f32.gmra.mrb[0].mxu0 %v2423
    %v2508 = vpop.f32.mrb[0].mxu0
    %v2509 = vadd.f32 0.0, %v2508
    %v2510 = vpop.f32.mrb[0].mxu0
    %2511 = vmatprep.mubr.f32.mxu0 0.0
    %2512 = vmatmul.mubr.f32.gmra.mrb[0].mxu0 %v2426
    %v2513 = vpop.f32.mrb[0].mxu0
    %v2514 = vadd.f32 0.0, %v2513
    %v2515 = vpop.f32.mrb[0].mxu0
    %2516 = vmatprep.mubr.f32.mxu0 0.0
    %2517 = vmatmul.mubr.f32.gmra.mrb[0].mxu0 %v2429
    %v2518 = vpop.f32.mrb[0].mxu0
    %v2519 = vadd.f32 0.0, %v2518
    %v2520 = vpop.f32.mrb[0].mxu0
    %2521 = vmatprep.mubr.f32.mxu0 0.0
    %2522 = vmatmul.mubr.f32.gmra.mrb[0].mxu0 %v2432
    %v2523 = vpop.f32.mrb[0].mxu0
    %v2524 = vadd.f32 0.0, %v2523
    %v2525 = vpop.f32.mrb[0].mxu0
    %2526 = vdwg.mxu0
    %v2527 = vld [vmem:[%s15] sm:$0xff]
    %v2528 = vld [vmem:[%s15 + $0x8] sm:$0xff]
    %v2529 = vld [vmem:[%s15 + $0x10] sm:$0xff]
    %v2530 = vld [vmem:[%s15 + $0x18] sm:$0xff]
    %v2531 = vld [vmem:[%s15 + $0x20] sm:$0xff]
    %v2532 = vld [vmem:[%s15 + $0x28] sm:$0xff]
    %v2533 = vld [vmem:[%s15 + $0x30] sm:$0xff]
    %v2534 = vld [vmem:[%s15 + $0x38] sm:$0xff]
    %v2535 = vld [vmem:[%s15 + $0x40] sm:$0xff]
    %v2536 = vld [vmem:[%s15 + $0x48] sm:$0xff]
    %v2537 = vld [vmem:[%s15 + $0x50] sm:$0xff]
    %v2538 = vld [vmem:[%s15 + $0x58] sm:$0xff]
    %v2539 = vld [vmem:[%s15 + $0x60] sm:$0xff]
    %v2540 = vld [vmem:[%s15 + $0x68] sm:$0xff]
    %v2541 = vld [vmem:[%s15 + $0x70] sm:$0xff]
    %v2542 = vld [vmem:[%s15 + $0x78] sm:$0xff]
    %v2543 = vld [vmem:[%s15 + $0x80] sm:$0xff]
    %v2544 = vld [vmem:[%s15 + $0x88] sm:$0xff]
    %v2545 = vld [vmem:[%s15 + $0x90] sm:$0xff]
    %v2546 = vld [vmem:[%s15 + $0x98] sm:$0xff]
    %v2548 = vsel %vm1182, %v2504, 0
    %v2551 = vsel %vm1182, %v2509, 0
    %v2554 = vsel %vm1182, %v2514, 0
    %v2557 = vsel %vm1182, %v2519, 0
    %v2560 = vsel %vm1182, %v2524, 0
    %2562 = vmatprep.subr.mxu0 %v2528
    %2563 = vmatpush1.msra.mxu0 %v2527
    %2564 = vmatprep.subr.mxu0 %v2530
    %2565 = vmatpush1.msra.mxu0 %v2529
    %2566 = vmatprep.subr.mxu0 %v2532
    %2567 = vmatpush1.msra.mxu0 %v2531
    %2568 = vmatprep.subr.mxu0 %v2534
    %2569 = vmatpush1.msra.mxu0 %v2533
    %2570 = vmatprep.subr.mxu0 %v2536
    %2571 = vmatpush1.msra.mxu0 %v2535
    %2572 = vmatprep.subr.mxu0 %v2538
    %2573 = vmatpush1.msra.mxu0 %v2537
    %2574 = vmatprep.subr.mxu0 %v2540
    %2575 = vmatpush1.msra.mxu0 %v2539
    %2576 = vmatprep.subr.mxu0 %v2542
    %2577 = vmatpush1.msra.mxu0 %v2541
    %2578 = vmatprep.subr.mxu0 %v2544
    %2579 = vmatpush1.msra.mxu0 %v2543
    %2580 = vmatprep.subr.mxu0 %v2546
    %2581 = vmatpush1.msra.mxu0 %v2545
    %2582 = vmatprep.subr.mxu0 0.0
    %2583 = vmatpush1.msra.mxu0 0.0
    %2584 = vmatprep.subr.mxu0 0.0
    %2585 = vmatpush1.msra.mxu0 0.0
    %2586 = vmatprep.subr.mxu0 0.0
    %2587 = vmatpush1.msra.mxu0 0.0
    %2588 = vmatprep.subr.mxu0 0.0
    %2589 = vmatpush1.msra.mxu0 0.0
    %2590 = vmatprep.subr.mxu0 0.0
    %2591 = vmatpush1.msra.mxu0 0.0
    %2592 = vmatprep.subr.mxu0 0.0
    %2593 = vmatpush1.msra.mxu0 0.0
    %2594 = vmatprep.subr.mxu0 0.0
    %2595 = vmatpush1.msra.mxu0 0.0
    %2596 = vmatprep.subr.mxu0 0.0
    %2597 = vmatpush1.msra.mxu0 0.0
    %2598 = vmatprep.subr.mxu0 0.0
    %2599 = vmatpush1.msra.mxu0 0.0
    %2600 = vmatprep.subr.mxu0 0.0
    %2601 = vmatpush1.msra.mxu0 0.0
    %2602 = vmatprep.subr.mxu0 0.0
    %2603 = vmatpush1.msra.mxu0 0.0
    %2604 = vmatprep.subr.mxu0 0.0
    %2605 = vmatpush1.msra.mxu0 0.0
    %2606 = vmatprep.subr.mxu0 0.0
    %2607 = vmatpush1.msra.mxu0 0.0
    %2608 = vmatprep.subr.mxu0 0.0
    %2609 = vmatpush1.msra.mxu0 0.0
    %2610 = vmatprep.subr.mxu0 0.0
    %2611 = vmatpush1.msra.mxu0 0.0
    %2612 = vmatprep.subr.mxu0 0.0
    %2613 = vmatpush1.msra.mxu0 0.0
    %2614 = vmatprep.subr.mxu0 0.0
    %2615 = vmatpush1.msra.mxu0 0.0
    %2616 = vmatprep.subr.mxu0 0.0
    %2617 = vmatpush1.msra.mxu0 0.0
    %2618 = vmatprep.subr.mxu0 0.0
    %2619 = vmatpush1.msra.mxu0 0.0
    %2620 = vmatprep.subr.mxu0 0.0
    %2621 = vmatpush1.msra.mxu0 0.0
    %2622 = vmatprep.subr.mxu0 0.0
    %2623 = vmatpush1.msra.mxu0 0.0
    %2624 = vmatprep.subr.mxu0 0.0
    %2625 = vmatpush1.msra.mxu0 0.0
    %2626 = vmatprep.mubr.f32.mxu0 0.0
    %2627 = vmatmul.mubr.f32.gmra.mrb[0].mxu0 %v2548
    %v2628 = vpop.f32.mrb[0].mxu0
    %v2629 = vadd.f32 0.0, %v2628
    %v2630 = vpop.f32.mrb[0].mxu0
    %v2631 = vadd.f32 0.0, %v2630
    %2632 = vmatprep.mubr.f32.mxu0 0.0
    %2633 = vmatmul.mubr.f32.gmra.mrb[0].mxu0 %v2551
    %v2634 = vpop.f32.mrb[0].mxu0
    %v2635 = vadd.f32 0.0, %v2634
    %v2636 = vpop.f32.mrb[0].mxu0
    %v2637 = vadd.f32 0.0, %v2636
    %2638 = vmatprep.mubr.f32.mxu0 0.0
    %2639 = vmatmul.mubr.f32.gmra.mrb[0].mxu0 %v2554
    %v2640 = vpop.f32.mrb[0].mxu0
    %v2641 = vadd.f32 0.0, %v2640
    %v2642 = vpop.f32.mrb[0].mxu0
    %v2643 = vadd.f32 0.0, %v2642
    %2644 = vmatprep.mubr.f32.mxu0 0.0
    %2645 = vmatmul.mubr.f32.gmra.mrb[0].mxu0 %v2557
    %v2646 = vpop.f32.mrb[0].mxu0
    %v2647 = vadd.f32 0.0, %v2646
    %v2648 = vpop.f32.mrb[0].mxu0
    %v2649 = vadd.f32 0.0, %v2648
    %2650 = vmatprep.mubr.f32.mxu0 0.0
    %2651 = vmatmul.mubr.f32.gmra.mrb[0].mxu0 %v2560
    %v2652 = vpop.f32.mrb[0].mxu0
    %v2653 = vadd.f32 0.0, %v2652
    %v2654 = vpop.f32.mrb[0].mxu0
    %v2655 = vadd.f32 0.0, %v2654
    %2656 = vdwg.mxu0
    %v2658 = vlaneseq
    %v2659 = vshrl.u32 %v2658, 7
    %v2660 = vsub.s32 0, %v2659
    %v2661 = vrot.slane %v2413, %v2660
    %v2662 = vlaneseq
    %v2663 = vshrl.u32 %v2662, 7
    %v2664 = vsub.s32 1, %v2663
    %v2665 = vrot.slane %v2413, %v2664
    %v2668 = vadd.f32 %v2661, %v2629
    %v2669 = vadd.f32 %v2665, %v2631
    %v2670 = vadd.f32 %v2661, %v2635
    %v2671 = vadd.f32 %v2665, %v2637
    %v2672 = vadd.f32 %v2661, %v2641
    %v2673 = vadd.f32 %v2665, %v2643
    %v2674 = vadd.f32 %v2661, %v2647
    %v2675 = vadd.f32 %v2665, %v2649
    %v2676 = vadd.f32 %v2661, %v2653
    %v2677 = vadd.f32 %v2665, %v2655
    %s2678 = scalar_lea.vmem %s14, 40
    %v2679 = vld [vmem:[%s2678] sm:$0xff]
    %v2680 = vld [vmem:[%s2678 + $0x8] sm:$0xff]
    %v2681 = vld [vmem:[%s2678 + $0x10] sm:$0xff]
    %v2682 = vld [vmem:[%s2678 + $0x18] sm:$0xff]
    %v2683 = vld [vmem:[%s2678 + $0x20] sm:$0x3]
    %v2685 = vsel %vm1094, %v2679, 0
    %v2688 = vsel %vm1094, %v2680, 0
    %v2691 = vsel %vm1094, %v2681, 0
    %v2694 = vsel %vm1094, %v2682, 0
    %v2697 = vsel %vm1094, %v2683, 0
    %2699 = vmatprep.subr.mxu0 0.0
    %2700 = vmatpush1.msra.mxu0 %v2411
    %2701 = vmatprep.subr.mxu0 0.0
    %2702 = vmatpush1.msra.mxu0 %v2435
    %2703 = vmatprep.subr.mxu0 0.0
    %2704 = vmatpush1.msra.mxu0 0.0
    %2705 = vmatprep.subr.mxu0 0.0
    %2706 = vmatpush1.msra.mxu0 0.0
    %2707 = vmatprep.subr.mxu0 0.0
    %2708 = vmatpush1.msra.mxu0 0.0
    %2709 = vmatprep.subr.mxu0 0.0
    %2710 = vmatpush1.msra.mxu0 0.0
    %2711 = vmatprep.subr.mxu0 0.0
    %2712 = vmatpush1.msra.mxu0 0.0
    %2713 = vmatprep.subr.mxu0 0.0
    %2714 = vmatpush1.msra.mxu0 0.0
    %2715 = vmatprep.subr.mxu0 0.0
    %2716 = vmatpush1.msra.mxu0 0.0
    %2717 = vmatprep.subr.mxu0 0.0
    %2718 = vmatpush1.msra.mxu0 0.0
    %2719 = vmatprep.subr.mxu0 0.0
    %2720 = vmatpush1.msra.mxu0 0.0
    %2721 = vmatprep.subr.mxu0 0.0
    %2722 = vmatpush1.msra.mxu0 0.0
    %2723 = vmatprep.subr.mxu0 0.0
    %2724 = vmatpush1.msra.mxu0 0.0
    %2725 = vmatprep.subr.mxu0 0.0
    %2726 = vmatpush1.msra.mxu0 0.0
    %2727 = vmatprep.subr.mxu0 0.0
    %2728 = vmatpush1.msra.mxu0 0.0
    %2729 = vmatprep.subr.mxu0 0.0
    %2730 = vmatpush1.msra.mxu0 0.0
    %2731 = vmatprep.subr.mxu0 0.0
    %2732 = vmatpush1.msra.mxu0 0.0
    %2733 = vmatprep.subr.mxu0 0.0
    %2734 = vmatpush1.msra.mxu0 0.0
    %2735 = vmatprep.subr.mxu0 0.0
    %2736 = vmatpush1.msra.mxu0 0.0
    %2737 = vmatprep.subr.mxu0 0.0
    %2738 = vmatpush1.msra.mxu0 0.0
    %2739 = vmatprep.subr.mxu0 0.0
    %2740 = vmatpush1.msra.mxu0 0.0
    %2741 = vmatprep.subr.mxu0 0.0
    %2742 = vmatpush1.msra.mxu0 0.0
    %2743 = vmatprep.subr.mxu0 0.0
    %2744 = vmatpush1.msra.mxu0 0.0
    %2745 = vmatprep.subr.mxu0 0.0
    %2746 = vmatpush1.msra.mxu0 0.0
    %2747 = vmatprep.subr.mxu0 0.0
    %2748 = vmatpush1.msra.mxu0 0.0
    %2749 = vmatprep.subr.mxu0 0.0
    %2750 = vmatpush1.msra.mxu0 0.0
    %2751 = vmatprep.subr.mxu0 0.0
    %2752 = vmatpush1.msra.mxu0 0.0
    %2753 = vmatprep.subr.mxu0 0.0
    %2754 = vmatpush1.msra.mxu0 0.0
    %2755 = vmatprep.subr.mxu0 0.0
    %2756 = vmatpush1.msra.mxu0 0.0
    %2757 = vmatprep.subr.mxu0 0.0
    %2758 = vmatpush1.msra.mxu0 0.0
    %2759 = vmatprep.subr.mxu0 0.0
    %2760 = vmatpush1.msra.mxu0 0.0
    %2761 = vmatprep.subr.mxu0 0.0
    %2762 = vmatpush1.msra.mxu0 0.0
    %2763 = vmatprep.mubr.f32.mxu0 0.0
    %2764 = vmatmul.mubr.f32.gmra.mrb[0].mxu0 %v2685
    %v2765 = vpop.f32.mrb[0].mxu0
    %v2766 = vadd.f32 0.0, %v2765
    %v2767 = vpop.f32.mrb[0].mxu0
    %2768 = vmatprep.mubr.f32.mxu0 0.0
    %2769 = vmatmul.mubr.f32.gmra.mrb[0].mxu0 %v2688
    %v2770 = vpop.f32.mrb[0].mxu0
    %v2771 = vadd.f32 0.0, %v2770
    %v2772 = vpop.f32.mrb[0].mxu0
    %2773 = vmatprep.mubr.f32.mxu0 0.0
    %2774 = vmatmul.mubr.f32.gmra.mrb[0].mxu0 %v2691
    %v2775 = vpop.f32.mrb[0].mxu0
    %v2776 = vadd.f32 0.0, %v2775
    %v2777 = vpop.f32.mrb[0].mxu0
    %2778 = vmatprep.mubr.f32.mxu0 0.0
    %2779 = vmatmul.mubr.f32.gmra.mrb[0].mxu0 %v2694
    %v2780 = vpop.f32.mrb[0].mxu0
    %v2781 = vadd.f32 0.0, %v2780
    %v2782 = vpop.f32.mrb[0].mxu0
    %2783 = vmatprep.mubr.f32.mxu0 0.0
    %2784 = vmatmul.mubr.f32.gmra.mrb[0].mxu0 %v2697
    %v2785 = vpop.f32.mrb[0].mxu0
    %v2786 = vadd.f32 0.0, %v2785
    %v2787 = vpop.f32.mrb[0].mxu0
    %2788 = vdwg.mxu0
    %s2789 = scalar_lea.vmem %s15, 160
    %v2790 = vld [vmem:[%s2789] sm:$0xff]
    %v2791 = vld [vmem:[%s2789 + $0x8] sm:$0xff]
    %v2792 = vld [vmem:[%s2789 + $0x10] sm:$0xff]
    %v2793 = vld [vmem:[%s2789 + $0x18] sm:$0xff]
    %v2794 = vld [vmem:[%s2789 + $0x20] sm:$0xff]
    %v2795 = vld [vmem:[%s2789 + $0x28] sm:$0xff]
    %v2796 = vld [vmem:[%s2789 + $0x30] sm:$0xff]
    %v2797 = vld [vmem:[%s2789 + $0x38] sm:$0xff]
    %v2798 = vld [vmem:[%s2789 + $0x40] sm:$0xff]
    %v2799 = vld [vmem:[%s2789 + $0x48] sm:$0xff]
    %v2800 = vld [vmem:[%s2789 + $0x50] sm:$0xff]
    %v2801 = vld [vmem:[%s2789 + $0x58] sm:$0xff]
    %v2802 = vld [vmem:[%s2789 + $0x60] sm:$0xff]
    %v2803 = vld [vmem:[%s2789 + $0x68] sm:$0xff]
    %v2804 = vld [vmem:[%s2789 + $0x70] sm:$0xff]
    %v2805 = vld [vmem:[%s2789 + $0x78] sm:$0xff]
    %v2806 = vld [vmem:[%s2789 + $0x80] sm:$0xff]
    %v2807 = vld [vmem:[%s2789 + $0x88] sm:$0xff]
    %v2808 = vld [vmem:[%s2789 + $0x90] sm:$0xff]
    %v2809 = vld [vmem:[%s2789 + $0x98] sm:$0xff]
    %v2811 = vsel %vm1182, %v2766, 0
    %v2814 = vsel %vm1182, %v2771, 0
    %v2817 = vsel %vm1182, %v2776, 0
    %v2820 = vsel %vm1182, %v2781, 0
    %v2823 = vsel %vm1182, %v2786, 0
    %2825 = vmatprep.subr.mxu0 %v2791
    %2826 = vmatpush1.msra.mxu0 %v2790
    %2827 = vmatprep.subr.mxu0 %v2793
    %2828 = vmatpush1.msra.mxu0 %v2792
    %2829 = vmatprep.subr.mxu0 %v2795
    %2830 = vmatpush1.msra.mxu0 %v2794
    %2831 = vmatprep.subr.mxu0 %v2797
    %2832 = vmatpush1.msra.mxu0 %v2796
    %2833 = vmatprep.subr.mxu0 %v2799
    %2834 = vmatpush1.msra.mxu0 %v2798
    %2835 = vmatprep.subr.mxu0 %v2801
    %2836 = vmatpush1.msra.mxu0 %v2800
    %2837 = vmatprep.subr.mxu0 %v2803
    %2838 = vmatpush1.msra.mxu0 %v2802
    %2839 = vmatprep.subr.mxu0 %v2805
    %2840 = vmatpush1.msra.mxu0 %v2804
    %2841 = vmatprep.subr.mxu0 %v2807
    %2842 = vmatpush1.msra.mxu0 %v2806
    %2843 = vmatprep.subr.mxu0 %v2809
    %2844 = vmatpush1.msra.mxu0 %v2808
    %2845 = vmatprep.subr.mxu0 0.0
    %2846 = vmatpush1.msra.mxu0 0.0
    %2847 = vmatprep.subr.mxu0 0.0
    %2848 = vmatpush1.msra.mxu0 0.0
    %2849 = vmatprep.subr.mxu0 0.0
    %2850 = vmatpush1.msra.mxu0 0.0
    %2851 = vmatprep.subr.mxu0 0.0
    %2852 = vmatpush1.msra.mxu0 0.0
    %2853 = vmatprep.subr.mxu0 0.0
    %2854 = vmatpush1.msra.mxu0 0.0
    %2855 = vmatprep.subr.mxu0 0.0
    %2856 = vmatpush1.msra.mxu0 0.0
    %2857 = vmatprep.subr.mxu0 0.0
    %2858 = vmatpush1.msra.mxu0 0.0
    %2859 = vmatprep.subr.mxu0 0.0
    %2860 = vmatpush1.msra.mxu0 0.0
    %2861 = vmatprep.subr.mxu0 0.0
    %2862 = vmatpush1.msra.mxu0 0.0
    %2863 = vmatprep.subr.mxu0 0.0
    %2864 = vmatpush1.msra.mxu0 0.0
    %2865 = vmatprep.subr.mxu0 0.0
    %2866 = vmatpush1.msra.mxu0 0.0
    %2867 = vmatprep.subr.mxu0 0.0
    %2868 = vmatpush1.msra.mxu0 0.0
    %2869 = vmatprep.subr.mxu0 0.0
    %2870 = vmatpush1.msra.mxu0 0.0
    %2871 = vmatprep.subr.mxu0 0.0
    %2872 = vmatpush1.msra.mxu0 0.0
    %2873 = vmatprep.subr.mxu0 0.0
    %2874 = vmatpush1.msra.mxu0 0.0
    %2875 = vmatprep.subr.mxu0 0.0
    %2876 = vmatpush1.msra.mxu0 0.0
    %2877 = vmatprep.subr.mxu0 0.0
    %2878 = vmatpush1.msra.mxu0 0.0
    %2879 = vmatprep.subr.mxu0 0.0
    %2880 = vmatpush1.msra.mxu0 0.0
    %2881 = vmatprep.subr.mxu0 0.0
    %2882 = vmatpush1.msra.mxu0 0.0
    %2883 = vmatprep.subr.mxu0 0.0
    %2884 = vmatpush1.msra.mxu0 0.0
    %2885 = vmatprep.subr.mxu0 0.0
    %2886 = vmatpush1.msra.mxu0 0.0
    %2887 = vmatprep.subr.mxu0 0.0
    %2888 = vmatpush1.msra.mxu0 0.0
    %2889 = vmatprep.mubr.f32.mxu0 0.0
    %2890 = vmatmul.mubr.f32.gmra.mrb[0].mxu0 %v2811
    %v2891 = vpop.f32.mrb[0].mxu0
    %v2892 = vadd.f32 0.0, %v2891
    %v2893 = vpop.f32.mrb[0].mxu0
    %v2894 = vadd.f32 0.0, %v2893
    %2895 = vmatprep.mubr.f32.mxu0 0.0
    %2896 = vmatmul.mubr.f32.gmra.mrb[0].mxu0 %v2814
    %v2897 = vpop.f32.mrb[0].mxu0
    %v2898 = vadd.f32 0.0, %v2897
    %v2899 = vpop.f32.mrb[0].mxu0
    %v2900 = vadd.f32 0.0, %v2899
    %2901 = vmatprep.mubr.f32.mxu0 0.0
    %2902 = vmatmul.mubr.f32.gmra.mrb[0].mxu0 %v2817
    %v2903 = vpop.f32.mrb[0].mxu0
    %v2904 = vadd.f32 0.0, %v2903
    %v2905 = vpop.f32.mrb[0].mxu0
    %v2906 = vadd.f32 0.0, %v2905
    %2907 = vmatprep.mubr.f32.mxu0 0.0
    %2908 = vmatmul.mubr.f32.gmra.mrb[0].mxu0 %v2820
    %v2909 = vpop.f32.mrb[0].mxu0
    %v2910 = vadd.f32 0.0, %v2909
    %v2911 = vpop.f32.mrb[0].mxu0
    %v2912 = vadd.f32 0.0, %v2911
    %2913 = vmatprep.mubr.f32.mxu0 0.0
    %2914 = vmatmul.mubr.f32.gmra.mrb[0].mxu0 %v2823
    %v2915 = vpop.f32.mrb[0].mxu0
    %v2916 = vadd.f32 0.0, %v2915
    %v2917 = vpop.f32.mrb[0].mxu0
    %v2918 = vadd.f32 0.0, %v2917
    %2919 = vdwg.mxu0
    %v2920 = vadd.f32 %v2668, %v2892
    %v2921 = vadd.f32 %v2669, %v2894
    %v2922 = vadd.f32 %v2670, %v2898
    %v2923 = vadd.f32 %v2671, %v2900
    %v2924 = vadd.f32 %v2672, %v2904
    %v2925 = vadd.f32 %v2673, %v2906
    %v2926 = vadd.f32 %v2674, %v2910
    %v2927 = vadd.f32 %v2675, %v2912
    %v2928 = vadd.f32 %v2676, %v2916
    %v2929 = vadd.f32 %v2677, %v2918
    %s2930 = scalar_lea.vmem %s14, 80
    %v2931 = vld [vmem:[%s2930] sm:$0xff]
    %v2932 = vld [vmem:[%s2930 + $0x8] sm:$0xff]
    %v2933 = vld [vmem:[%s2930 + $0x10] sm:$0xff]
    %v2934 = vld [vmem:[%s2930 + $0x18] sm:$0xff]
    %v2935 = vld [vmem:[%s2930 + $0x20] sm:$0x3]
    %v2937 = vsel %vm1094, %v2931, 0
    %v2940 = vsel %vm1094, %v2932, 0
    %v2943 = vsel %vm1094, %v2933, 0
    %v2946 = vsel %vm1094, %v2934, 0
    %v2949 = vsel %vm1094, %v2935, 0
    %2951 = vmatprep.subr.mxu0 0.0
    %2952 = vmatpush1.msra.mxu0 %v2411
    %2953 = vmatprep.subr.mxu0 0.0
    %2954 = vmatpush1.msra.mxu0 %v2435
    %2955 = vmatprep.subr.mxu0 0.0
    %2956 = vmatpush1.msra.mxu0 0.0
    %2957 = vmatprep.subr.mxu0 0.0
    %2958 = vmatpush1.msra.mxu0 0.0
    %2959 = vmatprep.subr.mxu0 0.0
    %2960 = vmatpush1.msra.mxu0 0.0
    %2961 = vmatprep.subr.mxu0 0.0
    %2962 = vmatpush1.msra.mxu0 0.0
    %2963 = vmatprep.subr.mxu0 0.0
    %2964 = vmatpush1.msra.mxu0 0.0
    %2965 = vmatprep.subr.mxu0 0.0
    %2966 = vmatpush1.msra.mxu0 0.0
    %2967 = vmatprep.subr.mxu0 0.0
    %2968 = vmatpush1.msra.mxu0 0.0
    %2969 = vmatprep.subr.mxu0 0.0
    %2970 = vmatpush1.msra.mxu0 0.0
    %2971 = vmatprep.subr.mxu0 0.0
    %2972 = vmatpush1.msra.mxu0 0.0
    %2973 = vmatprep.subr.mxu0 0.0
    %2974 = vmatpush1.msra.mxu0 0.0
    %2975 = vmatprep.subr.mxu0 0.0
    %2976 = vmatpush1.msra.mxu0 0.0
    %2977 = vmatprep.subr.mxu0 0.0
    %2978 = vmatpush1.msra.mxu0 0.0
    %2979 = vmatprep.subr.mxu0 0.0
    %2980 = vmatpush1.msra.mxu0 0.0
    %2981 = vmatprep.subr.mxu0 0.0
    %2982 = vmatpush1.msra.mxu0 0.0
    %2983 = vmatprep.subr.mxu0 0.0
    %2984 = vmatpush1.msra.mxu0 0.0
    %2985 = vmatprep.subr.mxu0 0.0
    %2986 = vmatpush1.msra.mxu0 0.0
    %2987 = vmatprep.subr.mxu0 0.0
    %2988 = vmatpush1.msra.mxu0 0.0
    %2989 = vmatprep.subr.mxu0 0.0
    %2990 = vmatpush1.msra.mxu0 0.0
    %2991 = vmatprep.subr.mxu0 0.0
    %2992 = vmatpush1.msra.mxu0 0.0
    %2993 = vmatprep.subr.mxu0 0.0
    %2994 = vmatpush1.msra.mxu0 0.0
    %2995 = vmatprep.subr.mxu0 0.0
    %2996 = vmatpush1.msra.mxu0 0.0
    %2997 = vmatprep.subr.mxu0 0.0
    %2998 = vmatpush1.msra.mxu0 0.0
    %2999 = vmatprep.subr.mxu0 0.0
    %3000 = vmatpush1.msra.mxu0 0.0
    %3001 = vmatprep.subr.mxu0 0.0
    %3002 = vmatpush1.msra.mxu0 0.0
    %3003 = vmatprep.subr.mxu0 0.0
    %3004 = vmatpush1.msra.mxu0 0.0
    %3005 = vmatprep.subr.mxu0 0.0
    %3006 = vmatpush1.msra.mxu0 0.0
    %3007 = vmatprep.subr.mxu0 0.0
    %3008 = vmatpush1.msra.mxu0 0.0
    %3009 = vmatprep.subr.mxu0 0.0
    %3010 = vmatpush1.msra.mxu0 0.0
    %3011 = vmatprep.subr.mxu0 0.0
    %3012 = vmatpush1.msra.mxu0 0.0
    %3013 = vmatprep.subr.mxu0 0.0
    %3014 = vmatpush1.msra.mxu0 0.0
    %3015 = vmatprep.mubr.f32.mxu0 0.0
    %3016 = vmatmul.mubr.f32.gmra.mrb[0].mxu0 %v2937
    %v3017 = vpop.f32.mrb[0].mxu0
    %v3018 = vadd.f32 0.0, %v3017
    %v3019 = vpop.f32.mrb[0].mxu0
    %3020 = vmatprep.mubr.f32.mxu0 0.0
    %3021 = vmatmul.mubr.f32.gmra.mrb[0].mxu0 %v2940
    %v3022 = vpop.f32.mrb[0].mxu0
    %v3023 = vadd.f32 0.0, %v3022
    %v3024 = vpop.f32.mrb[0].mxu0
    %3025 = vmatprep.mubr.f32.mxu0 0.0
    %3026 = vmatmul.mubr.f32.gmra.mrb[0].mxu0 %v2943
    %v3027 = vpop.f32.mrb[0].mxu0
    %v3028 = vadd.f32 0.0, %v3027
    %v3029 = vpop.f32.mrb[0].mxu0
    %3030 = vmatprep.mubr.f32.mxu0 0.0
    %3031 = vmatmul.mubr.f32.gmra.mrb[0].mxu0 %v2946
    %v3032 = vpop.f32.mrb[0].mxu0
    %v3033 = vadd.f32 0.0, %v3032
    %v3034 = vpop.f32.mrb[0].mxu0
    %3035 = vmatprep.mubr.f32.mxu0 0.0
    %3036 = vmatmul.mubr.f32.gmra.mrb[0].mxu0 %v2949
    %v3037 = vpop.f32.mrb[0].mxu0
    %v3038 = vadd.f32 0.0, %v3037
    %v3039 = vpop.f32.mrb[0].mxu0
    %3040 = vdwg.mxu0
    %s3041 = scalar_lea.vmem %s15, 320
    %v3042 = vld [vmem:[%s3041] sm:$0xff]
    %v3043 = vld [vmem:[%s3041 + $0x8] sm:$0xff]
    %v3044 = vld [vmem:[%s3041 + $0x10] sm:$0xff]
    %v3045 = vld [vmem:[%s3041 + $0x18] sm:$0xff]
    %v3046 = vld [vmem:[%s3041 + $0x20] sm:$0xff]
    %v3047 = vld [vmem:[%s3041 + $0x28] sm:$0xff]
    %v3048 = vld [vmem:[%s3041 + $0x30] sm:$0xff]
    %v3049 = vld [vmem:[%s3041 + $0x38] sm:$0xff]
    %v3050 = vld [vmem:[%s3041 + $0x40] sm:$0xff]
    %v3051 = vld [vmem:[%s3041 + $0x48] sm:$0xff]
    %v3052 = vld [vmem:[%s3041 + $0x50] sm:$0xff]
    %v3053 = vld [vmem:[%s3041 + $0x58] sm:$0xff]
    %v3054 = vld [vmem:[%s3041 + $0x60] sm:$0xff]
    %v3055 = vld [vmem:[%s3041 + $0x68] sm:$0xff]
    %v3056 = vld [vmem:[%s3041 + $0x70] sm:$0xff]
    %v3057 = vld [vmem:[%s3041 + $0x78] sm:$0xff]
    %v3058 = vld [vmem:[%s3041 + $0x80] sm:$0xff]
    %v3059 = vld [vmem:[%s3041 + $0x88] sm:$0xff]
    %v3060 = vld [vmem:[%s3041 + $0x90] sm:$0xff]
    %v3061 = vld [vmem:[%s3041 + $0x98] sm:$0xff]
    %v3063 = vsel %vm1182, %v3018, 0
    %v3066 = vsel %vm1182, %v3023, 0
    %v3069 = vsel %vm1182, %v3028, 0
    %v3072 = vsel %vm1182, %v3033, 0
    %v3075 = vsel %vm1182, %v3038, 0
    %3077 = vmatprep.subr.mxu0 %v3043
    %3078 = vmatpush1.msra.mxu0 %v3042
    %3079 = vmatprep.subr.mxu0 %v3045
    %3080 = vmatpush1.msra.mxu0 %v3044
    %3081 = vmatprep.subr.mxu0 %v3047
    %3082 = vmatpush1.msra.mxu0 %v3046
    %3083 = vmatprep.subr.mxu0 %v3049
    %3084 = vmatpush1.msra.mxu0 %v3048
    %3085 = vmatprep.subr.mxu0 %v3051
    %3086 = vmatpush1.msra.mxu0 %v3050
    %3087 = vmatprep.subr.mxu0 %v3053
    %3088 = vmatpush1.msra.mxu0 %v3052
    %3089 = vmatprep.subr.mxu0 %v3055
    %3090 = vmatpush1.msra.mxu0 %v3054
    %3091 = vmatprep.subr.mxu0 %v3057
    %3092 = vmatpush1.msra.mxu0 %v3056
    %3093 = vmatprep.subr.mxu0 %v3059
    %3094 = vmatpush1.msra.mxu0 %v3058
    %3095 = vmatprep.subr.mxu0 %v3061
    %3096 = vmatpush1.msra.mxu0 %v3060
    %3097 = vmatprep.subr.mxu0 0.0
    %3098 = vmatpush1.msra.mxu0 0.0
    %3099 = vmatprep.subr.mxu0 0.0
    %3100 = vmatpush1.msra.mxu0 0.0
    %3101 = vmatprep.subr.mxu0 0.0
    %3102 = vmatpush1.msra.mxu0 0.0
    %3103 = vmatprep.subr.mxu0 0.0
    %3104 = vmatpush1.msra.mxu0 0.0
    %3105 = vmatprep.subr.mxu0 0.0
    %3106 = vmatpush1.msra.mxu0 0.0
    %3107 = vmatprep.subr.mxu0 0.0
    %3108 = vmatpush1.msra.mxu0 0.0
    %3109 = vmatprep.subr.mxu0 0.0
    %3110 = vmatpush1.msra.mxu0 0.0
    %3111 = vmatprep.subr.mxu0 0.0
    %3112 = vmatpush1.msra.mxu0 0.0
    %3113 = vmatprep.subr.mxu0 0.0
    %3114 = vmatpush1.msra.mxu0 0.0
    %3115 = vmatprep.subr.mxu0 0.0
    %3116 = vmatpush1.msra.mxu0 0.0
    %3117 = vmatprep.subr.mxu0 0.0
    %3118 = vmatpush1.msra.mxu0 0.0
    %3119 = vmatprep.subr.mxu0 0.0
    %3120 = vmatpush1.msra.mxu0 0.0
    %3121 = vmatprep.subr.mxu0 0.0
    %3122 = vmatpush1.msra.mxu0 0.0
    %3123 = vmatprep.subr.mxu0 0.0
    %3124 = vmatpush1.msra.mxu0 0.0
    %3125 = vmatprep.subr.mxu0 0.0
    %3126 = vmatpush1.msra.mxu0 0.0
    %3127 = vmatprep.subr.mxu0 0.0
    %3128 = vmatpush1.msra.mxu0 0.0
    %3129 = vmatprep.subr.mxu0 0.0
    %3130 = vmatpush1.msra.mxu0 0.0
    %3131 = vmatprep.subr.mxu0 0.0
    %3132 = vmatpush1.msra.mxu0 0.0
    %3133 = vmatprep.subr.mxu0 0.0
    %3134 = vmatpush1.msra.mxu0 0.0
    %3135 = vmatprep.subr.mxu0 0.0
    %3136 = vmatpush1.msra.mxu0 0.0
    %3137 = vmatprep.subr.mxu0 0.0
    %3138 = vmatpush1.msra.mxu0 0.0
    %3139 = vmatprep.subr.mxu0 0.0
    %3140 = vmatpush1.msra.mxu0 0.0
    %3141 = vmatprep.mubr.f32.mxu0 0.0
    %3142 = vmatmul.mubr.f32.gmra.mrb[0].mxu0 %v3063
    %v3143 = vpop.f32.mrb[0].mxu0
    %v3144 = vadd.f32 0.0, %v3143
    %v3145 = vpop.f32.mrb[0].mxu0
    %v3146 = vadd.f32 0.0, %v3145
    %3147 = vmatprep.mubr.f32.mxu0 0.0
    %3148 = vmatmul.mubr.f32.gmra.mrb[0].mxu0 %v3066
    %v3149 = vpop.f32.mrb[0].mxu0
    %v3150 = vadd.f32 0.0, %v3149
    %v3151 = vpop.f32.mrb[0].mxu0
    %v3152 = vadd.f32 0.0, %v3151
    %3153 = vmatprep.mubr.f32.mxu0 0.0
    %3154 = vmatmul.mubr.f32.gmra.mrb[0].mxu0 %v3069
    %v3155 = vpop.f32.mrb[0].mxu0
    %v3156 = vadd.f32 0.0, %v3155
    %v3157 = vpop.f32.mrb[0].mxu0
    %v3158 = vadd.f32 0.0, %v3157
    %3159 = vmatprep.mubr.f32.mxu0 0.0
    %3160 = vmatmul.mubr.f32.gmra.mrb[0].mxu0 %v3072
    %v3161 = vpop.f32.mrb[0].mxu0
    %v3162 = vadd.f32 0.0, %v3161
    %v3163 = vpop.f32.mrb[0].mxu0
    %v3164 = vadd.f32 0.0, %v3163
    %3165 = vmatprep.mubr.f32.mxu0 0.0
    %3166 = vmatmul.mubr.f32.gmra.mrb[0].mxu0 %v3075
    %v3167 = vpop.f32.mrb[0].mxu0
    %v3168 = vadd.f32 0.0, %v3167
    %v3169 = vpop.f32.mrb[0].mxu0
    %v3170 = vadd.f32 0.0, %v3169
    %3171 = vdwg.mxu0
    %v3172 = vadd.f32 %v2920, %v3144
    %v3173 = vadd.f32 %v2921, %v3146
    %v3174 = vadd.f32 %v2922, %v3150
    %v3175 = vadd.f32 %v2923, %v3152
    %v3176 = vadd.f32 %v2924, %v3156
    %v3177 = vadd.f32 %v2925, %v3158
    %v3178 = vadd.f32 %v2926, %v3162
    %v3179 = vadd.f32 %v2927, %v3164
    %v3180 = vadd.f32 %v2928, %v3168
    %v3181 = vadd.f32 %v2929, %v3170
    %s3182 = scalar_lea.vmem %s14, 120
    %v3183 = vld [vmem:[%s3182] sm:$0xff]
    %v3184 = vld [vmem:[%s3182 + $0x8] sm:$0xff]
    %v3185 = vld [vmem:[%s3182 + $0x10] sm:$0xff]
    %v3186 = vld [vmem:[%s3182 + $0x18] sm:$0xff]
    %v3187 = vld [vmem:[%s3182 + $0x20] sm:$0x3]
    %v3189 = vsel %vm1094, %v3183, 0
    %v3192 = vsel %vm1094, %v3184, 0
    %v3195 = vsel %vm1094, %v3185, 0
    %v3198 = vsel %vm1094, %v3186, 0
    %v3201 = vsel %vm1094, %v3187, 0
    %3203 = vmatprep.subr.mxu0 0.0
    %3204 = vmatpush1.msra.mxu0 %v2411
    %3205 = vmatprep.subr.mxu0 0.0
    %3206 = vmatpush1.msra.mxu0 %v2435
    %3207 = vmatprep.subr.mxu0 0.0
    %3208 = vmatpush1.msra.mxu0 0.0
    %3209 = vmatprep.subr.mxu0 0.0
    %3210 = vmatpush1.msra.mxu0 0.0
    %3211 = vmatprep.subr.mxu0 0.0
    %3212 = vmatpush1.msra.mxu0 0.0
    %3213 = vmatprep.subr.mxu0 0.0
    %3214 = vmatpush1.msra.mxu0 0.0
    %3215 = vmatprep.subr.mxu0 0.0
    %3216 = vmatpush1.msra.mxu0 0.0
    %3217 = vmatprep.subr.mxu0 0.0
    %3218 = vmatpush1.msra.mxu0 0.0
    %3219 = vmatprep.subr.mxu0 0.0
    %3220 = vmatpush1.msra.mxu0 0.0
    %3221 = vmatprep.subr.mxu0 0.0
    %3222 = vmatpush1.msra.mxu0 0.0
    %3223 = vmatprep.subr.mxu0 0.0
    %3224 = vmatpush1.msra.mxu0 0.0
    %3225 = vmatprep.subr.mxu0 0.0
    %3226 = vmatpush1.msra.mxu0 0.0
    %3227 = vmatprep.subr.mxu0 0.0
    %3228 = vmatpush1.msra.mxu0 0.0
    %3229 = vmatprep.subr.mxu0 0.0
    %3230 = vmatpush1.msra.mxu0 0.0
    %3231 = vmatprep.subr.mxu0 0.0
    %3232 = vmatpush1.msra.mxu0 0.0
    %3233 = vmatprep.subr.mxu0 0.0
    %3234 = vmatpush1.msra.mxu0 0.0
    %3235 = vmatprep.subr.mxu0 0.0
    %3236 = vmatpush1.msra.mxu0 0.0
    %3237 = vmatprep.subr.mxu0 0.0
    %3238 = vmatpush1.msra.mxu0 0.0
    %3239 = vmatprep.subr.mxu0 0.0
    %3240 = vmatpush1.msra.mxu0 0.0
    %3241 = vmatprep.subr.mxu0 0.0
    %3242 = vmatpush1.msra.mxu0 0.0
    %3243 = vmatprep.subr.mxu0 0.0
    %3244 = vmatpush1.msra.mxu0 0.0
    %3245 = vmatprep.subr.mxu0 0.0
    %3246 = vmatpush1.msra.mxu0 0.0
    %3247 = vmatprep.subr.mxu0 0.0
    %3248 = vmatpush1.msra.mxu0 0.0
    %3249 = vmatprep.subr.mxu0 0.0
    %3250 = vmatpush1.msra.mxu0 0.0
    %3251 = vmatprep.subr.mxu0 0.0
    %3252 = vmatpush1.msra.mxu0 0.0
    %3253 = vmatprep.subr.mxu0 0.0
    %3254 = vmatpush1.msra.mxu0 0.0
    %3255 = vmatprep.subr.mxu0 0.0
    %3256 = vmatpush1.msra.mxu0 0.0
    %3257 = vmatprep.subr.mxu0 0.0
    %3258 = vmatpush1.msra.mxu0 0.0
    %3259 = vmatprep.subr.mxu0 0.0
    %3260 = vmatpush1.msra.mxu0 0.0
    %3261 = vmatprep.subr.mxu0 0.0
    %3262 = vmatpush1.msra.mxu0 0.0
    %3263 = vmatprep.subr.mxu0 0.0
    %3264 = vmatpush1.msra.mxu0 0.0
    %3265 = vmatprep.subr.mxu0 0.0
    %3266 = vmatpush1.msra.mxu0 0.0
    %3267 = vmatprep.mubr.f32.mxu0 0.0
    %3268 = vmatmul.mubr.f32.gmra.mrb[0].mxu0 %v3189
    %v3269 = vpop.f32.mrb[0].mxu0
    %v3270 = vadd.f32 0.0, %v3269
    %v3271 = vpop.f32.mrb[0].mxu0
    %3272 = vmatprep.mubr.f32.mxu0 0.0
    %3273 = vmatmul.mubr.f32.gmra.mrb[0].mxu0 %v3192
    %v3274 = vpop.f32.mrb[0].mxu0
    %v3275 = vadd.f32 0.0, %v3274
    %v3276 = vpop.f32.mrb[0].mxu0
    %3277 = vmatprep.mubr.f32.mxu0 0.0
    %3278 = vmatmul.mubr.f32.gmra.mrb[0].mxu0 %v3195
    %v3279 = vpop.f32.mrb[0].mxu0
    %v3280 = vadd.f32 0.0, %v3279
    %v3281 = vpop.f32.mrb[0].mxu0
    %3282 = vmatprep.mubr.f32.mxu0 0.0
    %3283 = vmatmul.mubr.f32.gmra.mrb[0].mxu0 %v3198
    %v3284 = vpop.f32.mrb[0].mxu0
    %v3285 = vadd.f32 0.0, %v3284
    %v3286 = vpop.f32.mrb[0].mxu0
    %3287 = vmatprep.mubr.f32.mxu0 0.0
    %3288 = vmatmul.mubr.f32.gmra.mrb[0].mxu0 %v3201
    %v3289 = vpop.f32.mrb[0].mxu0
    %v3290 = vadd.f32 0.0, %v3289
    %v3291 = vpop.f32.mrb[0].mxu0
    %3292 = vdwg.mxu0
    %s3293 = scalar_lea.vmem %s15, 480
    %v3294 = vld [vmem:[%s3293] sm:$0xff]
    %v3295 = vld [vmem:[%s3293 + $0x8] sm:$0xff]
    %v3296 = vld [vmem:[%s3293 + $0x10] sm:$0xff]
    %v3297 = vld [vmem:[%s3293 + $0x18] sm:$0xff]
    %v3298 = vld [vmem:[%s3293 + $0x20] sm:$0xff]
    %v3299 = vld [vmem:[%s3293 + $0x28] sm:$0xff]
    %v3300 = vld [vmem:[%s3293 + $0x30] sm:$0xff]
    %v3301 = vld [vmem:[%s3293 + $0x38] sm:$0xff]
    %v3302 = vld [vmem:[%s3293 + $0x40] sm:$0xff]
    %v3303 = vld [vmem:[%s3293 + $0x48] sm:$0xff]
    %v3304 = vld [vmem:[%s3293 + $0x50] sm:$0xff]
    %v3305 = vld [vmem:[%s3293 + $0x58] sm:$0xff]
    %v3306 = vld [vmem:[%s3293 + $0x60] sm:$0xff]
    %v3307 = vld [vmem:[%s3293 + $0x68] sm:$0xff]
    %v3308 = vld [vmem:[%s3293 + $0x70] sm:$0xff]
    %v3309 = vld [vmem:[%s3293 + $0x78] sm:$0xff]
    %v3310 = vld [vmem:[%s3293 + $0x80] sm:$0xff]
    %v3311 = vld [vmem:[%s3293 + $0x88] sm:$0xff]
    %v3312 = vld [vmem:[%s3293 + $0x90] sm:$0xff]
    %v3313 = vld [vmem:[%s3293 + $0x98] sm:$0xff]
    %v3315 = vsel %vm1182, %v3270, 0
    %v3318 = vsel %vm1182, %v3275, 0
    %v3321 = vsel %vm1182, %v3280, 0
    %v3324 = vsel %vm1182, %v3285, 0
    %v3327 = vsel %vm1182, %v3290, 0
    %3329 = vmatprep.subr.mxu0 %v3295
    %3330 = vmatpush1.msra.mxu0 %v3294
    %3331 = vmatprep.subr.mxu0 %v3297
    %3332 = vmatpush1.msra.mxu0 %v3296
    %3333 = vmatprep.subr.mxu0 %v3299
    %3334 = vmatpush1.msra.mxu0 %v3298
    %3335 = vmatprep.subr.mxu0 %v3301
    %3336 = vmatpush1.msra.mxu0 %v3300
    %3337 = vmatprep.subr.mxu0 %v3303
    %3338 = vmatpush1.msra.mxu0 %v3302
    %3339 = vmatprep.subr.mxu0 %v3305
    %3340 = vmatpush1.msra.mxu0 %v3304
    %3341 = vmatprep.subr.mxu0 %v3307
    %3342 = vmatpush1.msra.mxu0 %v3306
    %3343 = vmatprep.subr.mxu0 %v3309
    %3344 = vmatpush1.msra.mxu0 %v3308
    %3345 = vmatprep.subr.mxu0 %v3311
    %3346 = vmatpush1.msra.mxu0 %v3310
    %3347 = vmatprep.subr.mxu0 %v3313
    %3348 = vmatpush1.msra.mxu0 %v3312
    %3349 = vmatprep.subr.mxu0 0.0
    %3350 = vmatpush1.msra.mxu0 0.0
    %3351 = vmatprep.subr.mxu0 0.0
    %3352 = vmatpush1.msra.mxu0 0.0
    %3353 = vmatprep.subr.mxu0 0.0
    %3354 = vmatpush1.msra.mxu0 0.0
    %3355 = vmatprep.subr.mxu0 0.0
    %3356 = vmatpush1.msra.mxu0 0.0
    %3357 = vmatprep.subr.mxu0 0.0
    %3358 = vmatpush1.msra.mxu0 0.0
    %3359 = vmatprep.subr.mxu0 0.0
    %3360 = vmatpush1.msra.mxu0 0.0
    %3361 = vmatprep.subr.mxu0 0.0
    %3362 = vmatpush1.msra.mxu0 0.0
    %3363 = vmatprep.subr.mxu0 0.0
    %3364 = vmatpush1.msra.mxu0 0.0
    %3365 = vmatprep.subr.mxu0 0.0
    %3366 = vmatpush1.msra.mxu0 0.0
    %3367 = vmatprep.subr.mxu0 0.0
    %3368 = vmatpush1.msra.mxu0 0.0
    %3369 = vmatprep.subr.mxu0 0.0
    %3370 = vmatpush1.msra.mxu0 0.0
    %3371 = vmatprep.subr.mxu0 0.0
    %3372 = vmatpush1.msra.mxu0 0.0
    %3373 = vmatprep.subr.mxu0 0.0
    %3374 = vmatpush1.msra.mxu0 0.0
    %3375 = vmatprep.subr.mxu0 0.0
    %3376 = vmatpush1.msra.mxu0 0.0
    %3377 = vmatprep.subr.mxu0 0.0
    %3378 = vmatpush1.msra.mxu0 0.0
    %3379 = vmatprep.subr.mxu0 0.0
    %3380 = vmatpush1.msra.mxu0 0.0
    %3381 = vmatprep.subr.mxu0 0.0
    %3382 = vmatpush1.msra.mxu0 0.0
    %3383 = vmatprep.subr.mxu0 0.0
    %3384 = vmatpush1.msra.mxu0 0.0
    %3385 = vmatprep.subr.mxu0 0.0
    %3386 = vmatpush1.msra.mxu0 0.0
    %3387 = vmatprep.subr.mxu0 0.0
    %3388 = vmatpush1.msra.mxu0 0.0
    %3389 = vmatprep.subr.mxu0 0.0
    %3390 = vmatpush1.msra.mxu0 0.0
    %3391 = vmatprep.subr.mxu0 0.0
    %3392 = vmatpush1.msra.mxu0 0.0
    %3393 = vmatprep.mubr.f32.mxu0 0.0
    %3394 = vmatmul.mubr.f32.gmra.mrb[0].mxu0 %v3315
    %v3395 = vpop.f32.mrb[0].mxu0
    %v3396 = vadd.f32 0.0, %v3395
    %v3397 = vpop.f32.mrb[0].mxu0
    %v3398 = vadd.f32 0.0, %v3397
    %3399 = vmatprep.mubr.f32.mxu0 0.0
    %3400 = vmatmul.mubr.f32.gmra.mrb[0].mxu0 %v3318
    %v3401 = vpop.f32.mrb[0].mxu0
    %v3402 = vadd.f32 0.0, %v3401
    %v3403 = vpop.f32.mrb[0].mxu0
    %v3404 = vadd.f32 0.0, %v3403
    %3405 = vmatprep.mubr.f32.mxu0 0.0
    %3406 = vmatmul.mubr.f32.gmra.mrb[0].mxu0 %v3321
    %v3407 = vpop.f32.mrb[0].mxu0
    %v3408 = vadd.f32 0.0, %v3407
    %v3409 = vpop.f32.mrb[0].mxu0
    %v3410 = vadd.f32 0.0, %v3409
    %3411 = vmatprep.mubr.f32.mxu0 0.0
    %3412 = vmatmul.mubr.f32.gmra.mrb[0].mxu0 %v3324
    %v3413 = vpop.f32.mrb[0].mxu0
    %v3414 = vadd.f32 0.0, %v3413
    %v3415 = vpop.f32.mrb[0].mxu0
    %v3416 = vadd.f32 0.0, %v3415
    %3417 = vmatprep.mubr.f32.mxu0 0.0
    %3418 = vmatmul.mubr.f32.gmra.mrb[0].mxu0 %v3327
    %v3419 = vpop.f32.mrb[0].mxu0
    %v3420 = vadd.f32 0.0, %v3419
    %v3421 = vpop.f32.mrb[0].mxu0
    %v3422 = vadd.f32 0.0, %v3421
    %3423 = vdwg.mxu0
    %v3424 = vadd.f32 %v3172, %v3396
    %v3425 = vadd.f32 %v3173, %v3398
    %v3426 = vadd.f32 %v3174, %v3402
    %v3427 = vadd.f32 %v3175, %v3404
    %v3428 = vadd.f32 %v3176, %v3408
    %v3429 = vadd.f32 %v3177, %v3410
    %v3430 = vadd.f32 %v3178, %v3414
    %v3431 = vadd.f32 %v3179, %v3416
    %v3432 = vadd.f32 %v3180, %v3420
    %v3433 = vadd.f32 %v3181, %v3422
    %s3434 = scalar_lea.vmem %s14, 160
    %v3435 = vld [vmem:[%s3434] sm:$0xff]
    %v3436 = vld [vmem:[%s3434 + $0x8] sm:$0xff]
    %v3437 = vld [vmem:[%s3434 + $0x10] sm:$0xff]
    %v3438 = vld [vmem:[%s3434 + $0x18] sm:$0xff]
    %v3439 = vld [vmem:[%s3434 + $0x20] sm:$0x3]
    %v3441 = vsel %vm1094, %v3435, 0
    %v3444 = vsel %vm1094, %v3436, 0
    %v3447 = vsel %vm1094, %v3437, 0
    %v3450 = vsel %vm1094, %v3438, 0
    %v3453 = vsel %vm1094, %v3439, 0
    %3455 = vmatprep.subr.mxu0 0.0
    %3456 = vmatpush1.msra.mxu0 %v2411
    %3457 = vmatprep.subr.mxu0 0.0
    %3458 = vmatpush1.msra.mxu0 %v2435
    %3459 = vmatprep.subr.mxu0 0.0
    %3460 = vmatpush1.msra.mxu0 0.0
    %3461 = vmatprep.subr.mxu0 0.0
    %3462 = vmatpush1.msra.mxu0 0.0
    %3463 = vmatprep.subr.mxu0 0.0
    %3464 = vmatpush1.msra.mxu0 0.0
    %3465 = vmatprep.subr.mxu0 0.0
    %3466 = vmatpush1.msra.mxu0 0.0
    %3467 = vmatprep.subr.mxu0 0.0
    %3468 = vmatpush1.msra.mxu0 0.0
    %3469 = vmatprep.subr.mxu0 0.0
    %3470 = vmatpush1.msra.mxu0 0.0
    %3471 = vmatprep.subr.mxu0 0.0
    %3472 = vmatpush1.msra.mxu0 0.0
    %3473 = vmatprep.subr.mxu0 0.0
    %3474 = vmatpush1.msra.mxu0 0.0
    %3475 = vmatprep.subr.mxu0 0.0
    %3476 = vmatpush1.msra.mxu0 0.0
    %3477 = vmatprep.subr.mxu0 0.0
    %3478 = vmatpush1.msra.mxu0 0.0
    %3479 = vmatprep.subr.mxu0 0.0
    %3480 = vmatpush1.msra.mxu0 0.0
    %3481 = vmatprep.subr.mxu0 0.0
    %3482 = vmatpush1.msra.mxu0 0.0
    %3483 = vmatprep.subr.mxu0 0.0
    %3484 = vmatpush1.msra.mxu0 0.0
    %3485 = vmatprep.subr.mxu0 0.0
    %3486 = vmatpush1.msra.mxu0 0.0
    %3487 = vmatprep.subr.mxu0 0.0
    %3488 = vmatpush1.msra.mxu0 0.0
    %3489 = vmatprep.subr.mxu0 0.0
    %3490 = vmatpush1.msra.mxu0 0.0
    %3491 = vmatprep.subr.mxu0 0.0
    %3492 = vmatpush1.msra.mxu0 0.0
    %3493 = vmatprep.subr.mxu0 0.0
    %3494 = vmatpush1.msra.mxu0 0.0
    %3495 = vmatprep.subr.mxu0 0.0
    %3496 = vmatpush1.msra.mxu0 0.0
    %3497 = vmatprep.subr.mxu0 0.0
    %3498 = vmatpush1.msra.mxu0 0.0
    %3499 = vmatprep.subr.mxu0 0.0
    %3500 = vmatpush1.msra.mxu0 0.0
    %3501 = vmatprep.subr.mxu0 0.0
    %3502 = vmatpush1.msra.mxu0 0.0
    %3503 = vmatprep.subr.mxu0 0.0
    %3504 = vmatpush1.msra.mxu0 0.0
    %3505 = vmatprep.subr.mxu0 0.0
    %3506 = vmatpush1.msra.mxu0 0.0
    %3507 = vmatprep.subr.mxu0 0.0
    %3508 = vmatpush1.msra.mxu0 0.0
    %3509 = vmatprep.subr.mxu0 0.0
    %3510 = vmatpush1.msra.mxu0 0.0
    %3511 = vmatprep.subr.mxu0 0.0
    %3512 = vmatpush1.msra.mxu0 0.0
    %3513 = vmatprep.subr.mxu0 0.0
    %3514 = vmatpush1.msra.mxu0 0.0
    %3515 = vmatprep.subr.mxu0 0.0
    %3516 = vmatpush1.msra.mxu0 0.0
    %3517 = vmatprep.subr.mxu0 0.0
    %3518 = vmatpush1.msra.mxu0 0.0
    %3519 = vmatprep.mubr.f32.mxu0 0.0
    %3520 = vmatmul.mubr.f32.gmra.mrb[0].mxu0 %v3441
    %v3521 = vpop.f32.mrb[0].mxu0
    %v3522 = vadd.f32 0.0, %v3521
    %v3523 = vpop.f32.mrb[0].mxu0
    %3524 = vmatprep.mubr.f32.mxu0 0.0
    %3525 = vmatmul.mubr.f32.gmra.mrb[0].mxu0 %v3444
    %v3526 = vpop.f32.mrb[0].mxu0
    %v3527 = vadd.f32 0.0, %v3526
    %v3528 = vpop.f32.mrb[0].mxu0
    %3529 = vmatprep.mubr.f32.mxu0 0.0
    %3530 = vmatmul.mubr.f32.gmra.mrb[0].mxu0 %v3447
    %v3531 = vpop.f32.mrb[0].mxu0
    %v3532 = vadd.f32 0.0, %v3531
    %v3533 = vpop.f32.mrb[0].mxu0
    %3534 = vmatprep.mubr.f32.mxu0 0.0
    %3535 = vmatmul.mubr.f32.gmra.mrb[0].mxu0 %v3450
    %v3536 = vpop.f32.mrb[0].mxu0
    %v3537 = vadd.f32 0.0, %v3536
    %v3538 = vpop.f32.mrb[0].mxu0
    %3539 = vmatprep.mubr.f32.mxu0 0.0
    %3540 = vmatmul.mubr.f32.gmra.mrb[0].mxu0 %v3453
    %v3541 = vpop.f32.mrb[0].mxu0
    %v3542 = vadd.f32 0.0, %v3541
    %v3543 = vpop.f32.mrb[0].mxu0
    %3544 = vdwg.mxu0
    %s3545 = scalar_lea.vmem %s15, 640
    %v3546 = vld [vmem:[%s3545] sm:$0xff]
    %v3547 = vld [vmem:[%s3545 + $0x8] sm:$0xff]
    %v3548 = vld [vmem:[%s3545 + $0x10] sm:$0xff]
    %v3549 = vld [vmem:[%s3545 + $0x18] sm:$0xff]
    %v3550 = vld [vmem:[%s3545 + $0x20] sm:$0xff]
    %v3551 = vld [vmem:[%s3545 + $0x28] sm:$0xff]
    %v3552 = vld [vmem:[%s3545 + $0x30] sm:$0xff]
    %v3553 = vld [vmem:[%s3545 + $0x38] sm:$0xff]
    %v3554 = vld [vmem:[%s3545 + $0x40] sm:$0xff]
    %v3555 = vld [vmem:[%s3545 + $0x48] sm:$0xff]
    %v3556 = vld [vmem:[%s3545 + $0x50] sm:$0xff]
    %v3557 = vld [vmem:[%s3545 + $0x58] sm:$0xff]
    %v3558 = vld [vmem:[%s3545 + $0x60] sm:$0xff]
    %v3559 = vld [vmem:[%s3545 + $0x68] sm:$0xff]
    %v3560 = vld [vmem:[%s3545 + $0x70] sm:$0xff]
    %v3561 = vld [vmem:[%s3545 + $0x78] sm:$0xff]
    %v3562 = vld [vmem:[%s3545 + $0x80] sm:$0xff]
    %v3563 = vld [vmem:[%s3545 + $0x88] sm:$0xff]
    %v3564 = vld [vmem:[%s3545 + $0x90] sm:$0xff]
    %v3565 = vld [vmem:[%s3545 + $0x98] sm:$0xff]
    %v3567 = vsel %vm1182, %v3522, 0
    %v3570 = vsel %vm1182, %v3527, 0
    %v3573 = vsel %vm1182, %v3532, 0
    %v3576 = vsel %vm1182, %v3537, 0
    %v3579 = vsel %vm1182, %v3542, 0
    %3581 = vmatprep.subr.mxu0 %v3547
    %3582 = vmatpush1.msra.mxu0 %v3546
    %3583 = vmatprep.subr.mxu0 %v3549
    %3584 = vmatpush1.msra.mxu0 %v3548
    %3585 = vmatprep.subr.mxu0 %v3551
    %3586 = vmatpush1.msra.mxu0 %v3550
    %3587 = vmatprep.subr.mxu0 %v3553
    %3588 = vmatpush1.msra.mxu0 %v3552
    %3589 = vmatprep.subr.mxu0 %v3555
    %3590 = vmatpush1.msra.mxu0 %v3554
    %3591 = vmatprep.subr.mxu0 %v3557
    %3592 = vmatpush1.msra.mxu0 %v3556
    %3593 = vmatprep.subr.mxu0 %v3559
    %3594 = vmatpush1.msra.mxu0 %v3558
    %3595 = vmatprep.subr.mxu0 %v3561
    %3596 = vmatpush1.msra.mxu0 %v3560
    %3597 = vmatprep.subr.mxu0 %v3563
    %3598 = vmatpush1.msra.mxu0 %v3562
    %3599 = vmatprep.subr.mxu0 %v3565
    %3600 = vmatpush1.msra.mxu0 %v3564
    %3601 = vmatprep.subr.mxu0 0.0
    %3602 = vmatpush1.msra.mxu0 0.0
    %3603 = vmatprep.subr.mxu0 0.0
    %3604 = vmatpush1.msra.mxu0 0.0
    %3605 = vmatprep.subr.mxu0 0.0
    %3606 = vmatpush1.msra.mxu0 0.0
    %3607 = vmatprep.subr.mxu0 0.0
    %3608 = vmatpush1.msra.mxu0 0.0
    %3609 = vmatprep.subr.mxu0 0.0
    %3610 = vmatpush1.msra.mxu0 0.0
    %3611 = vmatprep.subr.mxu0 0.0
    %3612 = vmatpush1.msra.mxu0 0.0
    %3613 = vmatprep.subr.mxu0 0.0
    %3614 = vmatpush1.msra.mxu0 0.0
    %3615 = vmatprep.subr.mxu0 0.0
    %3616 = vmatpush1.msra.mxu0 0.0
    %3617 = vmatprep.subr.mxu0 0.0
    %3618 = vmatpush1.msra.mxu0 0.0
    %3619 = vmatprep.subr.mxu0 0.0
    %3620 = vmatpush1.msra.mxu0 0.0
    %3621 = vmatprep.subr.mxu0 0.0
    %3622 = vmatpush1.msra.mxu0 0.0
    %3623 = vmatprep.subr.mxu0 0.0
    %3624 = vmatpush1.msra.mxu0 0.0
    %3625 = vmatprep.subr.mxu0 0.0
    %3626 = vmatpush1.msra.mxu0 0.0
    %3627 = vmatprep.subr.mxu0 0.0
    %3628 = vmatpush1.msra.mxu0 0.0
    %3629 = vmatprep.subr.mxu0 0.0
    %3630 = vmatpush1.msra.mxu0 0.0
    %3631 = vmatprep.subr.mxu0 0.0
    %3632 = vmatpush1.msra.mxu0 0.0
    %3633 = vmatprep.subr.mxu0 0.0
    %3634 = vmatpush1.msra.mxu0 0.0
    %3635 = vmatprep.subr.mxu0 0.0
    %3636 = vmatpush1.msra.mxu0 0.0
    %3637 = vmatprep.subr.mxu0 0.0
    %3638 = vmatpush1.msra.mxu0 0.0
    %3639 = vmatprep.subr.mxu0 0.0
    %3640 = vmatpush1.msra.mxu0 0.0
    %3641 = vmatprep.subr.mxu0 0.0
    %3642 = vmatpush1.msra.mxu0 0.0
    %3643 = vmatprep.subr.mxu0 0.0
    %3644 = vmatpush1.msra.mxu0 0.0
    %3645 = vmatprep.mubr.f32.mxu0 0.0
    %3646 = vmatmul.mubr.f32.gmra.mrb[0].mxu0 %v3567
    %v3647 = vpop.f32.mrb[0].mxu0
    %v3648 = vadd.f32 0.0, %v3647
    %v3649 = vpop.f32.mrb[0].mxu0
    %v3650 = vadd.f32 0.0, %v3649
    %3651 = vmatprep.mubr.f32.mxu0 0.0
    %3652 = vmatmul.mubr.f32.gmra.mrb[0].mxu0 %v3570
    %v3653 = vpop.f32.mrb[0].mxu0
    %v3654 = vadd.f32 0.0, %v3653
    %v3655 = vpop.f32.mrb[0].mxu0
    %v3656 = vadd.f32 0.0, %v3655
    %3657 = vmatprep.mubr.f32.mxu0 0.0
    %3658 = vmatmul.mubr.f32.gmra.mrb[0].mxu0 %v3573
    %v3659 = vpop.f32.mrb[0].mxu0
    %v3660 = vadd.f32 0.0, %v3659
    %v3661 = vpop.f32.mrb[0].mxu0
    %v3662 = vadd.f32 0.0, %v3661
    %3663 = vmatprep.mubr.f32.mxu0 0.0
    %3664 = vmatmul.mubr.f32.gmra.mrb[0].mxu0 %v3576
    %v3665 = vpop.f32.mrb[0].mxu0
    %v3666 = vadd.f32 0.0, %v3665
    %v3667 = vpop.f32.mrb[0].mxu0
    %v3668 = vadd.f32 0.0, %v3667
    %3669 = vmatprep.mubr.f32.mxu0 0.0
    %3670 = vmatmul.mubr.f32.gmra.mrb[0].mxu0 %v3579
    %v3671 = vpop.f32.mrb[0].mxu0
    %v3672 = vadd.f32 0.0, %v3671
    %v3673 = vpop.f32.mrb[0].mxu0
    %v3674 = vadd.f32 0.0, %v3673
    %3675 = vdwg.mxu0
    %v3676 = vadd.f32 %v3424, %v3648
    %v3677 = vadd.f32 %v3425, %v3650
    %v3678 = vadd.f32 %v3426, %v3654
    %v3679 = vadd.f32 %v3427, %v3656
    %v3680 = vadd.f32 %v3428, %v3660
    %v3681 = vadd.f32 %v3429, %v3662
    %v3682 = vadd.f32 %v3430, %v3666
    %v3683 = vadd.f32 %v3431, %v3668
    %v3684 = vadd.f32 %v3432, %v3672
    %v3685 = vadd.f32 %v3433, %v3674
    %v3686 = vmax.f32 %v3676, 0.0
    %v3687 = vmax.f32 %v3677, 0.0
    %v3688 = vmax.f32 %v3678, 0.0
    %v3689 = vmax.f32 %v3679, 0.0
    %v3690 = vmax.f32 %v3680, 0.0
    %v3691 = vmax.f32 %v3681, 0.0
    %v3692 = vmax.f32 %v3682, 0.0
    %v3693 = vmax.f32 %v3683, 0.0
    %v3694 = vmax.f32 %v3684, 0.0
    %v3695 = vmax.f32 %v3685, 0.0
    %v3696 = vld [vmem:[%s19] sm:$0x1]
    %v3697 = vld [vmem:[%s17] sm:$0xff]
    %v3698 = vld [vmem:[%s17 + $0x8] sm:$0xff]
    %v3699 = vld [vmem:[%s17 + $0x10] sm:$0xff]
    %v3700 = vld [vmem:[%s17 + $0x18] sm:$0xff]
    %v3701 = vld [vmem:[%s17 + $0x20] sm:$0xff]
    %v3702 = vld [vmem:[%s17 + $0x28] sm:$0xff]
    %v3703 = vld [vmem:[%s17 + $0x30] sm:$0xff]
    %v3704 = vld [vmem:[%s17 + $0x38] sm:$0xff]
    %vm3705 = vcmask 277504
    %v3707 = vsel %vm3705, %v3697, 0
    %v3710 = vsel %vm3705, %v3698, 0
    %v3713 = vsel %vm3705, %v3699, 0
    %v3716 = vsel %vm3705, %v3700, 0
    %v3719 = vsel %vm3705, %v3701, 0
    %v3722 = vsel %vm3705, %v3702, 0
    %v3725 = vsel %vm3705, %v3703, 0
    %v3728 = vsel %vm3705, %v3704, 0
    %v3731 = vsel %vm1098, %v3694, 0
    %v3734 = vsel %vm1098, %v3695, 0
    %3736 = vmatprep.subr.mxu0 %v3687
    %3737 = vmatpush1.msra.mxu0 %v3686
    %3738 = vmatprep.subr.mxu0 %v3689
    %3739 = vmatpush1.msra.mxu0 %v3688
    %3740 = vmatprep.subr.mxu0 %v3691
    %3741 = vmatpush1.msra.mxu0 %v3690
    %3742 = vmatprep.subr.mxu0 %v3693
    %3743 = vmatpush1.msra.mxu0 %v3692
    %3744 = vmatprep.subr.mxu0 %v3734
    %3745 = vmatpush1.msra.mxu0 %v3731
    %3746 = vmatprep.subr.mxu0 0.0
    %3747 = vmatpush1.msra.mxu0 0.0
    %3748 = vmatprep.subr.mxu0 0.0
    %3749 = vmatpush1.msra.mxu0 0.0
    %3750 = vmatprep.subr.mxu0 0.0
    %3751 = vmatpush1.msra.mxu0 0.0
    %3752 = vmatprep.subr.mxu0 0.0
    %3753 = vmatpush1.msra.mxu0 0.0
    %3754 = vmatprep.subr.mxu0 0.0
    %3755 = vmatpush1.msra.mxu0 0.0
    %3756 = vmatprep.subr.mxu0 0.0
    %3757 = vmatpush1.msra.mxu0 0.0
    %3758 = vmatprep.subr.mxu0 0.0
    %3759 = vmatpush1.msra.mxu0 0.0
    %3760 = vmatprep.subr.mxu0 0.0
    %3761 = vmatpush1.msra.mxu0 0.0
    %3762 = vmatprep.subr.mxu0 0.0
    %3763 = vmatpush1.msra.mxu0 0.0
    %3764 = vmatprep.subr.mxu0 0.0
    %3765 = vmatpush1.msra.mxu0 0.0
    %3766 = vmatprep.subr.mxu0 0.0
    %3767 = vmatpush1.msra.mxu0 0.0
    %3768 = vmatprep.subr.mxu0 0.0
    %3769 = vmatpush1.msra.mxu0 0.0
    %3770 = vmatprep.subr.mxu0 0.0
    %3771 = vmatpush1.msra.mxu0 0.0
    %3772 = vmatprep.subr.mxu0 0.0
    %3773 = vmatpush1.msra.mxu0 0.0
    %3774 = vmatprep.subr.mxu0 0.0
    %3775 = vmatpush1.msra.mxu0 0.0
    %3776 = vmatprep.subr.mxu0 0.0
    %3777 = vmatpush1.msra.mxu0 0.0
    %3778 = vmatprep.subr.mxu0 0.0
    %3779 = vmatpush1.msra.mxu0 0.0
    %3780 = vmatprep.subr.mxu0 0.0
    %3781 = vmatpush1.msra.mxu0 0.0
    %3782 = vmatprep.subr.mxu0 0.0
    %3783 = vmatpush1.msra.mxu0 0.0
    %3784 = vmatprep.subr.mxu0 0.0
    %3785 = vmatpush1.msra.mxu0 0.0
    %3786 = vmatprep.subr.mxu0 0.0
    %3787 = vmatpush1.msra.mxu0 0.0
    %3788 = vmatprep.subr.mxu0 0.0
    %3789 = vmatpush1.msra.mxu0 0.0
    %3790 = vmatprep.subr.mxu0 0.0
    %3791 = vmatpush1.msra.mxu0 0.0
    %3792 = vmatprep.subr.mxu0 0.0
    %3793 = vmatpush1.msra.mxu0 0.0
    %3794 = vmatprep.subr.mxu0 0.0
    %3795 = vmatpush1.msra.mxu0 0.0
    %3796 = vmatprep.subr.mxu0 0.0
    %3797 = vmatpush1.msra.mxu0 0.0
    %3798 = vmatprep.subr.mxu0 0.0
    %3799 = vmatpush1.msra.mxu0 0.0
    %3800 = vmatprep.mubr.f32.mxu0 0.0
    %3801 = vmatmul.mubr.f32.gmra.mrb[0].mxu0 %v3707
    %v3802 = vpop.f32.mrb[0].mxu0
    %v3803 = vadd.f32 0.0, %v3802
    %v3804 = vpop.f32.mrb[0].mxu0
    %v3805 = vadd.f32 0.0, %v3804
    %3806 = vmatprep.mubr.f32.mxu0 0.0
    %3807 = vmatmul.mubr.f32.gmra.mrb[0].mxu0 %v3710
    %v3808 = vpop.f32.mrb[0].mxu0
    %v3809 = vadd.f32 0.0, %v3808
    %v3810 = vpop.f32.mrb[0].mxu0
    %v3811 = vadd.f32 0.0, %v3810
    %3812 = vmatprep.mubr.f32.mxu0 0.0
    %3813 = vmatmul.mubr.f32.gmra.mrb[0].mxu0 %v3713
    %v3814 = vpop.f32.mrb[0].mxu0
    %v3815 = vadd.f32 0.0, %v3814
    %v3816 = vpop.f32.mrb[0].mxu0
    %v3817 = vadd.f32 0.0, %v3816
    %3818 = vmatprep.mubr.f32.mxu0 0.0
    %3819 = vmatmul.mubr.f32.gmra.mrb[0].mxu0 %v3716
    %v3820 = vpop.f32.mrb[0].mxu0
    %v3821 = vadd.f32 0.0, %v3820
    %v3822 = vpop.f32.mrb[0].mxu0
    %v3823 = vadd.f32 0.0, %v3822
    %3824 = vmatprep.mubr.f32.mxu0 0.0
    %3825 = vmatmul.mubr.f32.gmra.mrb[0].mxu0 %v3719
    %v3826 = vpop.f32.mrb[0].mxu0
    %v3827 = vadd.f32 0.0, %v3826
    %v3828 = vpop.f32.mrb[0].mxu0
    %v3829 = vadd.f32 0.0, %v3828
    %3830 = vmatprep.mubr.f32.mxu0 0.0
    %3831 = vmatmul.mubr.f32.gmra.mrb[0].mxu0 %v3722
    %v3832 = vpop.f32.mrb[0].mxu0
    %v3833 = vadd.f32 0.0, %v3832
    %v3834 = vpop.f32.mrb[0].mxu0
    %v3835 = vadd.f32 0.0, %v3834
    %3836 = vmatprep.mubr.f32.mxu0 0.0
    %3837 = vmatmul.mubr.f32.gmra.mrb[0].mxu0 %v3725
    %v3838 = vpop.f32.mrb[0].mxu0
    %v3839 = vadd.f32 0.0, %v3838
    %v3840 = vpop.f32.mrb[0].mxu0
    %v3841 = vadd.f32 0.0, %v3840
    %3842 = vmatprep.mubr.f32.mxu0 0.0
    %3843 = vmatmul.mubr.f32.gmra.mrb[0].mxu0 %v3728
    %v3844 = vpop.f32.mrb[0].mxu0
    %v3845 = vadd.f32 0.0, %v3844
    %v3846 = vpop.f32.mrb[0].mxu0
    %v3847 = vadd.f32 0.0, %v3846
    %3848 = vdwg.mxu0
    %v3849 = vld [vmem:[%s18] sm:$0xff]
    %v3850 = vld [vmem:[%s18 + $0x8] sm:$0xff]
    %v3851 = vld [vmem:[%s18 + $0x10] sm:$0xff]
    %v3852 = vld [vmem:[%s18 + $0x18] sm:$0xff]
    %v3853 = vld [vmem:[%s18 + $0x20] sm:$0xff]
    %v3854 = vld [vmem:[%s18 + $0x28] sm:$0xff]
    %v3855 = vld [vmem:[%s18 + $0x30] sm:$0xff]
    %v3856 = vld [vmem:[%s18 + $0x38] sm:$0xff]
    %v3857 = vld [vmem:[%s18 + $0x40] sm:$0xff]
    %v3858 = vld [vmem:[%s18 + $0x48] sm:$0xff]
    %v3859 = vld [vmem:[%s18 + $0x50] sm:$0xff]
    %v3860 = vld [vmem:[%s18 + $0x58] sm:$0xff]
    %v3861 = vld [vmem:[%s18 + $0x60] sm:$0xff]
    %v3862 = vld [vmem:[%s18 + $0x68] sm:$0xff]
    %v3863 = vld [vmem:[%s18 + $0x70] sm:$0xff]
    %v3864 = vld [vmem:[%s18 + $0x78] sm:$0xff]
    %v3865 = vld [vmem:[%s18 + $0x80] sm:$0xff]
    %vm3866 = vcmask 64512
    %v3868 = vsel %vm3866, %v3805, 0
    %v3871 = vsel %vm3866, %v3811, 0
    %v3874 = vsel %vm3866, %v3817, 0
    %v3877 = vsel %vm3866, %v3823, 0
    %v3880 = vsel %vm3866, %v3829, 0
    %v3883 = vsel %vm3866, %v3835, 0
    %v3886 = vsel %vm3866, %v3841, 0
    %v3889 = vsel %vm3866, %v3847, 0
    %3891 = vmatprep.subr.mxu0 0.0
    %3892 = vmatpush1.msra.mxu0 %v3849
    %3893 = vmatprep.subr.mxu0 0.0
    %3894 = vmatpush1.msra.mxu0 %v3850
    %3895 = vmatprep.subr.mxu0 0.0
    %3896 = vmatpush1.msra.mxu0 %v3851
    %3897 = vmatprep.subr.mxu0 0.0
    %3898 = vmatpush1.msra.mxu0 %v3852
    %3899 = vmatprep.subr.mxu0 0.0
    %3900 = vmatpush1.msra.mxu0 %v3853
    %3901 = vmatprep.subr.mxu0 0.0
    %3902 = vmatpush1.msra.mxu0 %v3854
    %3903 = vmatprep.subr.mxu0 0.0
    %3904 = vmatpush1.msra.mxu0 %v3855
    %3905 = vmatprep.subr.mxu0 0.0
    %3906 = vmatpush1.msra.mxu0 %v3856
    %3907 = vmatprep.subr.mxu0 0.0
    %3908 = vmatpush1.msra.mxu0 %v3857
    %3909 = vmatprep.subr.mxu0 0.0
    %3910 = vmatpush1.msra.mxu0 %v3858
    %3911 = vmatprep.subr.mxu0 0.0
    %3912 = vmatpush1.msra.mxu0 %v3859
    %3913 = vmatprep.subr.mxu0 0.0
    %3914 = vmatpush1.msra.mxu0 %v3860
    %3915 = vmatprep.subr.mxu0 0.0
    %3916 = vmatpush1.msra.mxu0 %v3861
    %3917 = vmatprep.subr.mxu0 0.0
    %3918 = vmatpush1.msra.mxu0 %v3862
    %3919 = vmatprep.subr.mxu0 0.0
    %3920 = vmatpush1.msra.mxu0 %v3863
    %3921 = vmatprep.subr.mxu0 0.0
    %3922 = vmatpush1.msra.mxu0 %v3864
    %3923 = vmatprep.subr.mxu0 0.0
    %3924 = vmatpush1.msra.mxu0 %v3865
    %3925 = vmatprep.subr.mxu0 0.0
    %3926 = vmatpush1.msra.mxu0 0.0
    %3927 = vmatprep.subr.mxu0 0.0
    %3928 = vmatpush1.msra.mxu0 0.0
    %3929 = vmatprep.subr.mxu0 0.0
    %3930 = vmatpush1.msra.mxu0 0.0
    %3931 = vmatprep.subr.mxu0 0.0
    %3932 = vmatpush1.msra.mxu0 0.0
    %3933 = vmatprep.subr.mxu0 0.0
    %3934 = vmatpush1.msra.mxu0 0.0
    %3935 = vmatprep.subr.mxu0 0.0
    %3936 = vmatpush1.msra.mxu0 0.0
    %3937 = vmatprep.subr.mxu0 0.0
    %3938 = vmatpush1.msra.mxu0 0.0
    %3939 = vmatprep.subr.mxu0 0.0
    %3940 = vmatpush1.msra.mxu0 0.0
    %3941 = vmatprep.subr.mxu0 0.0
    %3942 = vmatpush1.msra.mxu0 0.0
    %3943 = vmatprep.subr.mxu0 0.0
    %3944 = vmatpush1.msra.mxu0 0.0
    %3945 = vmatprep.subr.mxu0 0.0
    %3946 = vmatpush1.msra.mxu0 0.0
    %3947 = vmatprep.subr.mxu0 0.0
    %3948 = vmatpush1.msra.mxu0 0.0
    %3949 = vmatprep.subr.mxu0 0.0
    %3950 = vmatpush1.msra.mxu0 0.0
    %3951 = vmatprep.subr.mxu0 0.0
    %3952 = vmatpush1.msra.mxu0 0.0
    %3953 = vmatprep.subr.mxu0 0.0
    %3954 = vmatpush1.msra.mxu0 0.0
    %3955 = vmatprep.mubr.f32.mxu0 %v3868
    %3956 = vmatmul.mubr.f32.gmra.mrb[0].mxu0 %v3803
    %v3957 = vpop.f32.mrb[0].mxu0
    %v3958 = vadd.f32 0.0, %v3957
    %v3959 = vpop.f32.mrb[0].mxu0
    %3960 = vmatprep.mubr.f32.mxu0 %v3871
    %3961 = vmatmul.mubr.f32.gmra.mrb[0].mxu0 %v3809
    %v3962 = vpop.f32.mrb[0].mxu0
    %v3963 = vadd.f32 0.0, %v3962
    %v3964 = vpop.f32.mrb[0].mxu0
    %3965 = vmatprep.mubr.f32.mxu0 %v3874
    %3966 = vmatmul.mubr.f32.gmra.mrb[0].mxu0 %v3815
    %v3967 = vpop.f32.mrb[0].mxu0
    %v3968 = vadd.f32 0.0, %v3967
    %v3969 = vpop.f32.mrb[0].mxu0
    %3970 = vmatprep.mubr.f32.mxu0 %v3877
    %3971 = vmatmul.mubr.f32.gmra.mrb[0].mxu0 %v3821
    %v3972 = vpop.f32.mrb[0].mxu0
    %v3973 = vadd.f32 0.0, %v3972
    %v3974 = vpop.f32.mrb[0].mxu0
    %3975 = vmatprep.mubr.f32.mxu0 %v3880
    %3976 = vmatmul.mubr.f32.gmra.mrb[0].mxu0 %v3827
    %v3977 = vpop.f32.mrb[0].mxu0
    %v3978 = vadd.f32 0.0, %v3977
    %v3979 = vpop.f32.mrb[0].mxu0
    %3980 = vmatprep.mubr.f32.mxu0 %v3883
    %3981 = vmatmul.mubr.f32.gmra.mrb[0].mxu0 %v3833
    %v3982 = vpop.f32.mrb[0].mxu0
    %v3983 = vadd.f32 0.0, %v3982
    %v3984 = vpop.f32.mrb[0].mxu0
    %3985 = vmatprep.mubr.f32.mxu0 %v3886
    %3986 = vmatmul.mubr.f32.gmra.mrb[0].mxu0 %v3839
    %v3987 = vpop.f32.mrb[0].mxu0
    %v3988 = vadd.f32 0.0, %v3987
    %v3989 = vpop.f32.mrb[0].mxu0
    %3990 = vmatprep.mubr.f32.mxu0 %v3889
    %3991 = vmatmul.mubr.f32.gmra.mrb[0].mxu0 %v3845
    %v3992 = vpop.f32.mrb[0].mxu0
    %v3993 = vadd.f32 0.0, %v3992
    %v3994 = vpop.f32.mrb[0].mxu0
    %3995 = vdwg.mxu0
    %v3997 = vlaneseq
    %v3998 = vshrl.u32 %v3997, 7
    %v3999 = vsub.s32 0, %v3998
    %v4000 = vrot.slane %v3696, %v3999
    %v4002 = vadd.f32 %v4000, %v3958
    %v4003 = vadd.f32 %v4000, %v3963
    %v4004 = vadd.f32 %v4000, %v3968
    %v4005 = vadd.f32 %v4000, %v3973
    %v4006 = vadd.f32 %v4000, %v3978
    %v4007 = vadd.f32 %v4000, %v3983
    %v4008 = vadd.f32 %v4000, %v3988
    %v4009 = vadd.f32 %v4000, %v3993
    %s4010 = scalar_lea.vmem %s17, 64
    %v4011 = vld [vmem:[%s4010] sm:$0xff]
    %v4012 = vld [vmem:[%s4010 + $0x8] sm:$0xff]
    %v4013 = vld [vmem:[%s4010 + $0x10] sm:$0xff]
    %v4014 = vld [vmem:[%s4010 + $0x18] sm:$0xff]
    %v4015 = vld [vmem:[%s4010 + $0x20] sm:$0xff]
    %v4016 = vld [vmem:[%s4010 + $0x28] sm:$0xff]
    %v4017 = vld [vmem:[%s4010 + $0x30] sm:$0xff]
    %v4018 = vld [vmem:[%s4010 + $0x38] sm:$0xff]
    %v4020 = vsel %vm3705, %v4011, 0
    %v4023 = vsel %vm3705, %v4012, 0
    %v4026 = vsel %vm3705, %v4013, 0
    %v4029 = vsel %vm3705, %v4014, 0
    %v4032 = vsel %vm3705, %v4015, 0
    %v4035 = vsel %vm3705, %v4016, 0
    %v4038 = vsel %vm3705, %v4017, 0
    %v4041 = vsel %vm3705, %v4018, 0
    %4043 = vmatprep.subr.mxu0 %v3687
    %4044 = vmatpush1.msra.mxu0 %v3686
    %4045 = vmatprep.subr.mxu0 %v3689
    %4046 = vmatpush1.msra.mxu0 %v3688
    %4047 = vmatprep.subr.mxu0 %v3691
    %4048 = vmatpush1.msra.mxu0 %v3690
    %4049 = vmatprep.subr.mxu0 %v3693
    %4050 = vmatpush1.msra.mxu0 %v3692
    %4051 = vmatprep.subr.mxu0 %v3734
    %4052 = vmatpush1.msra.mxu0 %v3731
    %4053 = vmatprep.subr.mxu0 0.0
    %4054 = vmatpush1.msra.mxu0 0.0
    %4055 = vmatprep.subr.mxu0 0.0
    %4056 = vmatpush1.msra.mxu0 0.0
    %4057 = vmatprep.subr.mxu0 0.0
    %4058 = vmatpush1.msra.mxu0 0.0
    %4059 = vmatprep.subr.mxu0 0.0
    %4060 = vmatpush1.msra.mxu0 0.0
    %4061 = vmatprep.subr.mxu0 0.0
    %4062 = vmatpush1.msra.mxu0 0.0
    %4063 = vmatprep.subr.mxu0 0.0
    %4064 = vmatpush1.msra.mxu0 0.0
    %4065 = vmatprep.subr.mxu0 0.0
    %4066 = vmatpush1.msra.mxu0 0.0
    %4067 = vmatprep.subr.mxu0 0.0
    %4068 = vmatpush1.msra.mxu0 0.0
    %4069 = vmatprep.subr.mxu0 0.0
    %4070 = vmatpush1.msra.mxu0 0.0
    %4071 = vmatprep.subr.mxu0 0.0
    %4072 = vmatpush1.msra.mxu0 0.0
    %4073 = vmatprep.subr.mxu0 0.0
    %4074 = vmatpush1.msra.mxu0 0.0
    %4075 = vmatprep.subr.mxu0 0.0
    %4076 = vmatpush1.msra.mxu0 0.0
    %4077 = vmatprep.subr.mxu0 0.0
    %4078 = vmatpush1.msra.mxu0 0.0
    %4079 = vmatprep.subr.mxu0 0.0
    %4080 = vmatpush1.msra.mxu0 0.0
    %4081 = vmatprep.subr.mxu0 0.0
    %4082 = vmatpush1.msra.mxu0 0.0
    %4083 = vmatprep.subr.mxu0 0.0
    %4084 = vmatpush1.msra.mxu0 0.0
    %4085 = vmatprep.subr.mxu0 0.0
    %4086 = vmatpush1.msra.mxu0 0.0
    %4087 = vmatprep.subr.mxu0 0.0
    %4088 = vmatpush1.msra.mxu0 0.0
    %4089 = vmatprep.subr.mxu0 0.0
    %4090 = vmatpush1.msra.mxu0 0.0
    %4091 = vmatprep.subr.mxu0 0.0
    %4092 = vmatpush1.msra.mxu0 0.0
    %4093 = vmatprep.subr.mxu0 0.0
    %4094 = vmatpush1.msra.mxu0 0.0
    %4095 = vmatprep.subr.mxu0 0.0
    %4096 = vmatpush1.msra.mxu0 0.0
    %4097 = vmatprep.subr.mxu0 0.0
    %4098 = vmatpush1.msra.mxu0 0.0
    %4099 = vmatprep.subr.mxu0 0.0
    %4100 = vmatpush1.msra.mxu0 0.0
    %4101 = vmatprep.subr.mxu0 0.0
    %4102 = vmatpush1.msra.mxu0 0.0
    %4103 = vmatprep.subr.mxu0 0.0
    %4104 = vmatpush1.msra.mxu0 0.0
    %4105 = vmatprep.subr.mxu0 0.0
    %4106 = vmatpush1.msra.mxu0 0.0
    %4107 = vmatprep.mubr.f32.mxu0 0.0
    %4108 = vmatmul.mubr.f32.gmra.mrb[0].mxu0 %v4020
    %v4109 = vpop.f32.mrb[0].mxu0
    %v4110 = vadd.f32 0.0, %v4109
    %v4111 = vpop.f32.mrb[0].mxu0
    %v4112 = vadd.f32 0.0, %v4111
    %4113 = vmatprep.mubr.f32.mxu0 0.0
    %4114 = vmatmul.mubr.f32.gmra.mrb[0].mxu0 %v4023
    %v4115 = vpop.f32.mrb[0].mxu0
    %v4116 = vadd.f32 0.0, %v4115
    %v4117 = vpop.f32.mrb[0].mxu0
    %v4118 = vadd.f32 0.0, %v4117
    %4119 = vmatprep.mubr.f32.mxu0 0.0
    %4120 = vmatmul.mubr.f32.gmra.mrb[0].mxu0 %v4026
    %v4121 = vpop.f32.mrb[0].mxu0
    %v4122 = vadd.f32 0.0, %v4121
    %v4123 = vpop.f32.mrb[0].mxu0
    %v4124 = vadd.f32 0.0, %v4123
    %4125 = vmatprep.mubr.f32.mxu0 0.0
    %4126 = vmatmul.mubr.f32.gmra.mrb[0].mxu0 %v4029
    %v4127 = vpop.f32.mrb[0].mxu0
    %v4128 = vadd.f32 0.0, %v4127
    %v4129 = vpop.f32.mrb[0].mxu0
    %v4130 = vadd.f32 0.0, %v4129
    %4131 = vmatprep.mubr.f32.mxu0 0.0
    %4132 = vmatmul.mubr.f32.gmra.mrb[0].mxu0 %v4032
    %v4133 = vpop.f32.mrb[0].mxu0
    %v4134 = vadd.f32 0.0, %v4133
    %v4135 = vpop.f32.mrb[0].mxu0
    %v4136 = vadd.f32 0.0, %v4135
    %4137 = vmatprep.mubr.f32.mxu0 0.0
    %4138 = vmatmul.mubr.f32.gmra.mrb[0].mxu0 %v4035
    %v4139 = vpop.f32.mrb[0].mxu0
    %v4140 = vadd.f32 0.0, %v4139
    %v4141 = vpop.f32.mrb[0].mxu0
    %v4142 = vadd.f32 0.0, %v4141
    %4143 = vmatprep.mubr.f32.mxu0 0.0
    %4144 = vmatmul.mubr.f32.gmra.mrb[0].mxu0 %v4038
    %v4145 = vpop.f32.mrb[0].mxu0
    %v4146 = vadd.f32 0.0, %v4145
    %v4147 = vpop.f32.mrb[0].mxu0
    %v4148 = vadd.f32 0.0, %v4147
    %4149 = vmatprep.mubr.f32.mxu0 0.0
    %4150 = vmatmul.mubr.f32.gmra.mrb[0].mxu0 %v4041
    %v4151 = vpop.f32.mrb[0].mxu0
    %v4152 = vadd.f32 0.0, %v4151
    %v4153 = vpop.f32.mrb[0].mxu0
    %v4154 = vadd.f32 0.0, %v4153
    %4155 = vdwg.mxu0
    %s4156 = scalar_lea.vmem %s18, 136
    %v4157 = vld [vmem:[%s4156] sm:$0xff]
    %v4158 = vld [vmem:[%s4156 + $0x8] sm:$0xff]
    %v4159 = vld [vmem:[%s4156 + $0x10] sm:$0xff]
    %v4160 = vld [vmem:[%s4156 + $0x18] sm:$0xff]
    %v4161 = vld [vmem:[%s4156 + $0x20] sm:$0xff]
    %v4162 = vld [vmem:[%s4156 + $0x28] sm:$0xff]
    %v4163 = vld [vmem:[%s4156 + $0x30] sm:$0xff]
    %v4164 = vld [vmem:[%s4156 + $0x38] sm:$0xff]
    %v4165 = vld [vmem:[%s4156 + $0x40] sm:$0xff]
    %v4166 = vld [vmem:[%s4156 + $0x48] sm:$0xff]
    %v4167 = vld [vmem:[%s4156 + $0x50] sm:$0xff]
    %v4168 = vld [vmem:[%s4156 + $0x58] sm:$0xff]
    %v4169 = vld [vmem:[%s4156 + $0x60] sm:$0xff]
    %v4170 = vld [vmem:[%s4156 + $0x68] sm:$0xff]
    %v4171 = vld [vmem:[%s4156 + $0x70] sm:$0xff]
    %v4172 = vld [vmem:[%s4156 + $0x78] sm:$0xff]
    %v4173 = vld [vmem:[%s4156 + $0x80] sm:$0xff]
    %v4175 = vsel %vm3866, %v4112, 0
    %v4178 = vsel %vm3866, %v4118, 0
    %v4181 = vsel %vm3866, %v4124, 0
    %v4184 = vsel %vm3866, %v4130, 0
    %v4187 = vsel %vm3866, %v4136, 0
    %v4190 = vsel %vm3866, %v4142, 0
    %v4193 = vsel %vm3866, %v4148, 0
    %v4196 = vsel %vm3866, %v4154, 0
    %4198 = vmatprep.subr.mxu0 0.0
    %4199 = vmatpush1.msra.mxu0 %v4157
    %4200 = vmatprep.subr.mxu0 0.0
    %4201 = vmatpush1.msra.mxu0 %v4158
    %4202 = vmatprep.subr.mxu0 0.0
    %4203 = vmatpush1.msra.mxu0 %v4159
    %4204 = vmatprep.subr.mxu0 0.0
    %4205 = vmatpush1.msra.mxu0 %v4160
    %4206 = vmatprep.subr.mxu0 0.0
    %4207 = vmatpush1.msra.mxu0 %v4161
    %4208 = vmatprep.subr.mxu0 0.0
    %4209 = vmatpush1.msra.mxu0 %v4162
    %4210 = vmatprep.subr.mxu0 0.0
    %4211 = vmatpush1.msra.mxu0 %v4163
    %4212 = vmatprep.subr.mxu0 0.0
    %4213 = vmatpush1.msra.mxu0 %v4164
    %4214 = vmatprep.subr.mxu0 0.0
    %4215 = vmatpush1.msra.mxu0 %v4165
    %4216 = vmatprep.subr.mxu0 0.0
    %4217 = vmatpush1.msra.mxu0 %v4166
    %4218 = vmatprep.subr.mxu0 0.0
    %4219 = vmatpush1.msra.mxu0 %v4167
    %4220 = vmatprep.subr.mxu0 0.0
    %4221 = vmatpush1.msra.mxu0 %v4168
    %4222 = vmatprep.subr.mxu0 0.0
    %4223 = vmatpush1.msra.mxu0 %v4169
    %4224 = vmatprep.subr.mxu0 0.0
    %4225 = vmatpush1.msra.mxu0 %v4170
    %4226 = vmatprep.subr.mxu0 0.0
    %4227 = vmatpush1.msra.mxu0 %v4171
    %4228 = vmatprep.subr.mxu0 0.0
    %4229 = vmatpush1.msra.mxu0 %v4172
    %4230 = vmatprep.subr.mxu0 0.0
    %4231 = vmatpush1.msra.mxu0 %v4173
    %4232 = vmatprep.subr.mxu0 0.0
    %4233 = vmatpush1.msra.mxu0 0.0
    %4234 = vmatprep.subr.mxu0 0.0
    %4235 = vmatpush1.msra.mxu0 0.0
    %4236 = vmatprep.subr.mxu0 0.0
    %4237 = vmatpush1.msra.mxu0 0.0
    %4238 = vmatprep.subr.mxu0 0.0
    %4239 = vmatpush1.msra.mxu0 0.0
    %4240 = vmatprep.subr.mxu0 0.0
    %4241 = vmatpush1.msra.mxu0 0.0
    %4242 = vmatprep.subr.mxu0 0.0
    %4243 = vmatpush1.msra.mxu0 0.0
    %4244 = vmatprep.subr.mxu0 0.0
    %4245 = vmatpush1.msra.mxu0 0.0
    %4246 = vmatprep.subr.mxu0 0.0
    %4247 = vmatpush1.msra.mxu0 0.0
    %4248 = vmatprep.subr.mxu0 0.0
    %4249 = vmatpush1.msra.mxu0 0.0
    %4250 = vmatprep.subr.mxu0 0.0
    %4251 = vmatpush1.msra.mxu0 0.0
    %4252 = vmatprep.subr.mxu0 0.0
    %4253 = vmatpush1.msra.mxu0 0.0
    %4254 = vmatprep.subr.mxu0 0.0
    %4255 = vmatpush1.msra.mxu0 0.0
    %4256 = vmatprep.subr.mxu0 0.0
    %4257 = vmatpush1.msra.mxu0 0.0
    %4258 = vmatprep.subr.mxu0 0.0
    %4259 = vmatpush1.msra.mxu0 0.0
    %4260 = vmatprep.subr.mxu0 0.0
    %4261 = vmatpush1.msra.mxu0 0.0
    %4262 = vmatprep.mubr.f32.mxu0 %v4175
    %4263 = vmatmul.mubr.f32.gmra.mrb[0].mxu0 %v4110
    %v4264 = vpop.f32.mrb[0].mxu0
    %v4265 = vadd.f32 0.0, %v4264
    %v4266 = vpop.f32.mrb[0].mxu0
    %4267 = vmatprep.mubr.f32.mxu0 %v4178
    %4268 = vmatmul.mubr.f32.gmra.mrb[0].mxu0 %v4116
    %v4269 = vpop.f32.mrb[0].mxu0
    %v4270 = vadd.f32 0.0, %v4269
    %v4271 = vpop.f32.mrb[0].mxu0
    %4272 = vmatprep.mubr.f32.mxu0 %v4181
    %4273 = vmatmul.mubr.f32.gmra.mrb[0].mxu0 %v4122
    %v4274 = vpop.f32.mrb[0].mxu0
    %v4275 = vadd.f32 0.0, %v4274
    %v4276 = vpop.f32.mrb[0].mxu0
    %4277 = vmatprep.mubr.f32.mxu0 %v4184
    %4278 = vmatmul.mubr.f32.gmra.mrb[0].mxu0 %v4128
    %v4279 = vpop.f32.mrb[0].mxu0
    %v4280 = vadd.f32 0.0, %v4279
    %v4281 = vpop.f32.mrb[0].mxu0
    %4282 = vmatprep.mubr.f32.mxu0 %v4187
    %4283 = vmatmul.mubr.f32.gmra.mrb[0].mxu0 %v4134
    %v4284 = vpop.f32.mrb[0].mxu0
    %v4285 = vadd.f32 0.0, %v4284
    %v4286 = vpop.f32.mrb[0].mxu0
    %4287 = vmatprep.mubr.f32.mxu0 %v4190
    %4288 = vmatmul.mubr.f32.gmra.mrb[0].mxu0 %v4140
    %v4289 = vpop.f32.mrb[0].mxu0
    %v4290 = vadd.f32 0.0, %v4289
    %v4291 = vpop.f32.mrb[0].mxu0
    %4292 = vmatprep.mubr.f32.mxu0 %v4193
    %4293 = vmatmul.mubr.f32.gmra.mrb[0].mxu0 %v4146
    %v4294 = vpop.f32.mrb[0].mxu0
    %v4295 = vadd.f32 0.0, %v4294
    %v4296 = vpop.f32.mrb[0].mxu0
    %4297 = vmatprep.mubr.f32.mxu0 %v4196
    %4298 = vmatmul.mubr.f32.gmra.mrb[0].mxu0 %v4152
    %v4299 = vpop.f32.mrb[0].mxu0
    %v4300 = vadd.f32 0.0, %v4299
    %v4301 = vpop.f32.mrb[0].mxu0
    %4302 = vdwg.mxu0
    %v4303 = vadd.f32 %v4002, %v4265
    %v4304 = vadd.f32 %v4003, %v4270
    %v4305 = vadd.f32 %v4004, %v4275
    %v4306 = vadd.f32 %v4005, %v4280
    %v4307 = vadd.f32 %v4006, %v4285
    %v4308 = vadd.f32 %v4007, %v4290
    %v4309 = vadd.f32 %v4008, %v4295
    %v4310 = vadd.f32 %v4009, %v4300
    %v4311 = vtanh.pop %v4303
    %v4312 = vtanh.pop %v4304
    %v4313 = vtanh.pop %v4305
    %v4314 = vtanh.pop %v4306
    %v4315 = vtanh.pop %v4307
    %v4316 = vtanh.pop %v4308
    %v4317 = vtanh.pop %v4309
    %v4318 = vtanh.pop %v4310
    %4319 = vst.msk [vmem:[#allocation2] sm:$0xff] %vm912, %v4311
    %4320 = vst.msk [vmem:[#allocation2 + $0x8] sm:$0xff] %vm912, %v4312
    %4321 = vst.msk [vmem:[#allocation2 + $0x10] sm:$0xff] %vm912, %v4313
    %4322 = vst.msk [vmem:[#allocation2 + $0x18] sm:$0xff] %vm912, %v4314
    %4323 = vst.msk [vmem:[#allocation2 + $0x20] sm:$0xff] %vm912, %v4315
    %4324 = vst.msk [vmem:[#allocation2 + $0x28] sm:$0xff] %vm912, %v4316
    %4325 = vst.msk [vmem:[#allocation2 + $0x30] sm:$0xff] %vm912, %v4317
    %4326 = vst.msk [vmem:[#allocation2 + $0x38] sm:$0xff] %vm912, %v4318
    // Predicated region
    $region82: #{autoencoder_forward.1} parent=1 // pred_check
      _
    $region83: #{autoencoder_forward.1} parent=1 // pred_check_branch
      %4328 = sbr.rel (0) target = $region85
    $region84: #{autoencoder_forward.1} parent=1 // pred_region
      %s4330 = ssub.s32 1024, 1024
      %4331 = vsyncadd [#allocation3], %s4330
      %s4332 = sshll.u32 [#allocation2], 4
      %s4333 = int_to_ptr.vmem [resolvable:$true] %s4332
      %4338 = dma.vmem_to_hbm [thread:$0]  %s4333, 1024, %s20, [#allocation3], 128, 128, 8
    $region85: #{autoencoder_forward.1} parent=1 // pred_fallthru
      _
    // Predicated region
    $region86: #{autoencoder_forward.1} parent=1 // pred_check
      _
    $region87: #{autoencoder_forward.1} parent=1 // pred_check_branch
      %4340 = sbr.rel (0) target = $region89
    $region88: #{autoencoder_forward.1} parent=1 // pred_region
      %4341 = dma.done [#allocation3], 1024
    $region89: #{autoencoder_forward.1} parent=1 // pred_fallthru
      _
    %4342 = vsyncpa [#allocation3], 1

</llo_original>
